<compile_context>
chip_gen: v6e
topology: v6e:2x2x1
jax: 0.10.0
libtpu: 0.0.40
codegen_flags: <defaults>
</compile_context>

<pallas_src>
import functools

import jax
import jax.numpy as jnp
from jax.experimental import pallas as pl
from jax.experimental.pallas import tpu as pltpu


# ---------------------------------------------------------------------------
# Pallas kernel
# ---------------------------------------------------------------------------

def _conv_fused_kernel(x_ref, w_ref, b_ref, o_ref, *,
                       kh, kw, sh, sw, dh, dw, nb, th, wo, cin, cout, cout_p,
                       relu):
    """One grid step: nb images x th output rows, all taps in ONE matmul.

    x_ref: (nb, sh*sw, Hq, Wq, Cin)   phase-decomposed padded images (bf16)
    w_ref: (kh*kw*Cin, Cout_p)        full weight matrix (bf16, VMEM resident)
    b_ref: (1, Cout_p)                bias (f32)
    o_ref: (nb, th*wo, Cout)          output tile (f32, true channels only)
    """
    ho0 = pl.program_id(1) * th                     # first output row of tile
    taps = []
    for ih in range(kh):
        for iw in range(kw):
            oh, ow = ih * dh, iw * dw               # tap offsets in padded image
            phase = (oh % sh) * sw + (ow % sw)      # stride phase plane (static)
            taps.append(x_ref[:, phase,
                              pl.ds(ho0 + oh // sh, th),
                              pl.ds(ow // sw, wo),
                              :])                   # (nb, th, wo, cin)
    # Fused LHS: contraction dim = kh*kw*cin along the lane axis, built in
    # VMEM; one MXU dot instead of kh*kw small K=cin dots with acc RMW.
    lhs = jnp.concatenate(taps, axis=-1)            # (nb, th, wo, kh*kw*cin)
    lhs = lhs.reshape(nb * th * wo, kh * kw * cin)
    acc = jnp.dot(lhs, w_ref[...], preferred_element_type=jnp.float32)
    acc = acc + b_ref[...]
    if relu:
        acc = jnp.maximum(acc, 0.0)
    if cout != cout_p:                              # store only true channels
        acc = acc[:, :cout]
    o_ref[...] = acc.reshape(nb, th * wo, cout).astype(o_ref.dtype)


# ---------------------------------------------------------------------------
# Tile / VMEM budgeting helpers
# ---------------------------------------------------------------------------

_M_TARGET = 1024                 # target matmul rows per grid step
_VMEM_BUDGET = 24 * (1 << 20)    # conservative: fits v7x (64 MiB phys) easily


def _row_tile(ho, wo, m_target=_M_TARGET):
    """Largest row tile th | Ho with th*Wo <= m_target and sublane-aligned.

    Falls back to the full image (always a legal full-extent block)."""
    if ho * wo <= m_target:
        return ho
    cands = [d for d in range(1, ho)
             if ho % d == 0 and d * wo <= m_target and (d * wo) % 8 == 0]
    return max(cands) if cands else ho


def _vmem_bytes(nb, th, sh, sw, hq, wq, cin, kh, kw, wo, cout, cout_p):
    """Rough per-step VMEM footprint (double-buffered blocks + matmul temps)."""
    in_blk = nb * sh * sw * hq * wq * cin * 2        # bf16 input block
    w_blk = kh * kw * cin * cout_p * 2               # bf16 weights
    b_blk = cout_p * 4                               # f32 bias
    out_blk = nb * th * wo * cout * 4                # f32 output block
    lhs_tmp = nb * th * wo * kh * kw * cin * 2       # concatenated LHS
    acc_tmp = nb * th * wo * cout_p * 4              # f32 matmul result
    return 2 * (in_blk + w_blk + b_blk + out_blk) + lhs_tmp + acc_tmp


# ---------------------------------------------------------------------------
# Wrapper
# ---------------------------------------------------------------------------

@functools.partial(jax.jit,
                   static_argnames=("stride", "padding", "dilation", "relu"))
def conv2d_pallas(x, w, b, *, stride=(1, 1), padding=(1, 1), dilation=(1, 1),
                  relu=False):
    """Conv2d forward (optionally fused ReLU).

    x: (N, H, W, Cin) float32
    w: (KH, KW, Cin, Cout)  (PyTorch (Cout, Cin, KH, KW) transposed)
    b: (Cout,)
    returns (N, Ho, Wo, Cout) float32
    """
    n, h, wdt, cin = x.shape
    kh, kw, _, cout = w.shape
    sh, sw = stride
    ph, pw = padding
    dh, dw = dilation

    ho = (h + 2 * ph - dh * (kh - 1) - 1) // sh + 1
    wo = (wdt + 2 * pw - dw * (kw - 1) - 1) // sw + 1

    lane = 128
    cout_p = ((cout + lane - 1) // lane) * lane

    # Zero-pad and (for strided convs) phase-decompose by the stride:
    #   x_ph[n, r*sw + s, q, p, c] == x_pad[n, q*sh + r, p*sw + s, c]
    # Pure layout change (no KH*KW inflation); every tap becomes a
    # unit-stride slice inside the kernel.  Stride-1 layers skip the
    # transpose pass entirely (pad + bf16 cast only).
    hq = ho + -(-((kh - 1) * dh) // sh)
    wq = wo + -(-((kw - 1) * dw) // sw)
    xp = jnp.pad(x.astype(jnp.bfloat16),
                 ((0, 0),
                  (ph, hq * sh - h - ph),
                  (pw, wq * sw - wdt - pw),
                  (0, 0)))
    if sh == 1 and sw == 1:
        xp = xp[:, None]                                  # (n, 1, hq, wq, cin)
    else:
        xp = xp.reshape(n, hq, sh, wq, sw, cin).transpose(0, 2, 4, 1, 3, 5)
        xp = xp.reshape(n, sh * sw, hq, wq, cin)

    # Weights flattened to (kh*kw*cin, cout_p): matches the tap-concat order
    # (ih outer, iw inner, cin contiguous) used inside the kernel.
    wmat = jnp.pad(w.reshape(kh * kw * cin, cout),
                   ((0, 0), (0, cout_p - cout))).astype(jnp.bfloat16)
    bias = jnp.pad(b, (0, cout_p - cout)).reshape(1, cout_p).astype(jnp.float32)

    # Tile selection: rows per step, then fold as many images as fit the
    # M target and the VMEM budget.
    th = _row_tile(ho, wo)
    nb = 1
    for d in range(1, n + 1):
        if (n % d == 0 and d * th * wo <= _M_TARGET and
                _vmem_bytes(d, th, sh, sw, hq, wq, cin, kh, kw, wo,
                            cout, cout_p) <= _VMEM_BUDGET):
            nb = d
    est = _vmem_bytes(nb, th, sh, sw, hq, wq, cin, kh, kw, wo, cout, cout_p)
    if est > _VMEM_BUDGET:
        # TODO(synk): row-band input tiling with halo DMAs for large images.
        raise NotImplementedError(
            f"phase-decomposed image tile needs ~{est} B of VMEM "
            f"(> budget {_VMEM_BUDGET} B); halo-tiled path not implemented")
    vmem_lim = int(max(32 * (1 << 20), min(2 * est, 48 * (1 << 20))))

    grid = (n // nb, ho // th)
    kernel = functools.partial(
        _conv_fused_kernel, kh=kh, kw=kw, sh=sh, sw=sw, dh=dh, dw=dw,
        nb=nb, th=th, wo=wo, cin=cin, cout=cout, cout_p=cout_p, relu=relu)

    out = pl.pallas_call(
        kernel,
        out_shape=jax.ShapeDtypeStruct((n, ho * wo, cout), jnp.float32),
        grid=grid,
        in_specs=[
            # nb whole phase-decomposed images; block index constant across
            # the row-tile axis -> DMA'd from HBM once per image block.
            pl.BlockSpec((nb, sh * sw, hq, wq, cin),
                         lambda i, j: (i, 0, 0, 0, 0)),
            # Full weight / bias resident in VMEM (constant block index).
            pl.BlockSpec((kh * kw * cin, cout_p), lambda i, j: (0, 0)),
            pl.BlockSpec((1, cout_p), lambda i, j: (0, 0)),
        ],
        out_specs=pl.BlockSpec((nb, th * wo, cout), lambda i, j: (i, j, 0)),
        compiler_params=pltpu.CompilerParams(
            dimension_semantics=("parallel", "parallel"),
            vmem_limit_bytes=vmem_lim),
    )(xp, wmat, bias)

    return out.reshape(n, ho, wo, cout)


# ---------------------------------------------------------------------------
# Reference + params (PyTorch-style uniform fan-in init)
# ---------------------------------------------------------------------------

def _conv2d_reference(x, w, b, stride, padding, dilation, relu):
    out = jax.lax.conv_general_dilated(
        x, w, window_strides=stride,
        padding=[(padding[0], padding[0]), (padding[1], padding[1])],
        rhs_dilation=dilation,
        dimension_numbers=("NHWC", "HWIO", "NHWC"),
        precision=jax.lax.Precision.HIGHEST)
    out = out + b
    return jnp.maximum(out, 0.0) if relu else out


def init_conv_params(key, kh, kw, cin, cout):
    k1, k2 = jax.random.split(key)
    bound = 1.0 / float(kh * kw * cin) ** 0.5
    w = jax.random.uniform(k1, (kh, kw, cin, cout), jnp.float32, -bound, bound)
    b = jax.random.uniform(k2, (cout,), jnp.float32, -bound, bound)
    return w, b


# ---------------------------------------------------------------------------
# Main
# ---------------------------------------------------------------------------

if __name__ == "__main__":
    key = jax.random.PRNGKey(0)
    kx1, kw1, kx2, kw2, kx3, kw3 = jax.random.split(key, 6)

    N, H, W = 2, 16, 16
    cases = []

    # Module defaults: 3x3, stride 1, pad 1, dilation 1, ReLU activation.
    x1 = jax.random.uniform(kx1, (N, H, W, 4), jnp.float32)
    w1, b1 = init_conv_params(kw1, 3, 3, 4, 64)
    cases.append((x1, w1, b1, (1, 1), (1, 1), (1, 1), True, (N, 16, 16, 64)))

    # Downsampling variant used by the model: 5x5, stride 2, pad 2, ReLU.
    x2 = jax.random.uniform(kx2, (N, H, W, 4), jnp.float32)
    w2, b2 = init_conv_params(kw2, 5, 5, 4, 64)
    cases.append((x2, w2, b2, (2, 2), (2, 2), (1, 1), True, (N, 8, 8, 64)))

    # Wider channels, no activation.
    x3 = jax.random.uniform(kx3, (N, H, W, 64), jnp.float32)
    w3, b3 = init_conv_params(kw3, 3, 3, 64, 128)
    cases.append((x3, w3, b3, (1, 1), (1, 1), (1, 1), False, (N, 16, 16, 128)))

    for x, w, b, stride, padding, dilation, relu, want_shape in cases:
        y = conv2d_pallas(x, w, b, stride=stride, padding=padding,
                          dilation=dilation, relu=relu)
        y = jax.block_until_ready(y)
        assert y.shape == want_shape, y.shape
        assert y.dtype == jnp.float32
        ref = _conv2d_reference(x, w, b, stride, padding, dilation, relu)
        # bf16-MXU / f32-accumulate precision contract -> loose tolerance.
        assert jnp.allclose(y, ref, atol=3e-2, rtol=3e-2), \
            float(jnp.max(jnp.abs(y - ref)))

    print("KERNEL_OK")
</pallas_src>

<mosaic_0001>
module attributes {stable_mosaic.version = 11 : i64} {
  func.func @_conv_fused_kernel(%arg0: i32, %arg1: i32, %arg2: memref<2x1x18x18x4xbf16, #tpu.memory_space<vmem>>, %arg3: memref<36x128xbf16, #tpu.memory_space<vmem>>, %arg4: memref<1x128xf32, #tpu.memory_space<vmem>>, %arg5: memref<2x256x64xf32, #tpu.memory_space<vmem>>) attributes {dimension_semantics = [#tpu.dimension_semantics<parallel>, #tpu.dimension_semantics<parallel>], iteration_bounds = array<i64: 1, 1>, scalar_prefetch = 0 : i64, scratch_operands = 0 : i64, tpu.core_type = #tpu.core_type<tc>, window_params = [{transform_indices = @transform_0, window_bounds = array<i64: 2, 1, 18, 18, 4>}, {pipeline_mode = #tpu.pipeline_mode<synchronous>, transform_indices = @transform_1, window_bounds = array<i64: 36, 128>}, {pipeline_mode = #tpu.pipeline_mode<synchronous>, transform_indices = @transform_2, window_bounds = array<i64: 1, 128>}, {transform_indices = @transform_3, window_bounds = array<i64: 2, 256, 64>}]} {
    %c16_i32 = arith.constant 16 : i32
    %0 = arith.muli %arg1, %c16_i32 : i32
    %c0_i32 = arith.constant 0 : i32
    %1 = arith.addi %0, %c0_i32 : i32
    %c0 = arith.constant 0 : index
    %c0_0 = arith.constant 0 : index
    %2 = arith.index_cast %1 : i32 to index
    %c0_1 = arith.constant 0 : index
    %c0_2 = arith.constant 0 : index
    %3 = vector.load %arg2[%c0, %c0_0, %2, %c0_1, %c0_2] : memref<2x1x18x18x4xbf16, #tpu.memory_space<vmem>>, vector<2x1x16x16x4xbf16>
    %4 = vector.shape_cast %3 : vector<2x1x16x16x4xbf16> to vector<2x16x16x4xbf16>
    %c0_i32_3 = arith.constant 0 : i32
    %5 = arith.addi %0, %c0_i32_3 : i32
    %c0_4 = arith.constant 0 : index
    %c0_5 = arith.constant 0 : index
    %6 = arith.index_cast %5 : i32 to index
    %c1 = arith.constant 1 : index
    %c0_6 = arith.constant 0 : index
    %7 = vector.load %arg2[%c0_4, %c0_5, %6, %c1, %c0_6] : memref<2x1x18x18x4xbf16, #tpu.memory_space<vmem>>, vector<2x1x16x16x4xbf16>
    %8 = vector.shape_cast %7 : vector<2x1x16x16x4xbf16> to vector<2x16x16x4xbf16>
    %c0_i32_7 = arith.constant 0 : i32
    %9 = arith.addi %0, %c0_i32_7 : i32
    %c0_8 = arith.constant 0 : index
    %c0_9 = arith.constant 0 : index
    %10 = arith.index_cast %9 : i32 to index
    %c2 = arith.constant 2 : index
    %c0_10 = arith.constant 0 : index
    %11 = vector.load %arg2[%c0_8, %c0_9, %10, %c2, %c0_10] : memref<2x1x18x18x4xbf16, #tpu.memory_space<vmem>>, vector<2x1x16x16x4xbf16>
    %12 = vector.shape_cast %11 : vector<2x1x16x16x4xbf16> to vector<2x16x16x4xbf16>
    %c1_i32 = arith.constant 1 : i32
    %13 = arith.addi %0, %c1_i32 : i32
    %c0_11 = arith.constant 0 : index
    %c0_12 = arith.constant 0 : index
    %14 = arith.index_cast %13 : i32 to index
    %c0_13 = arith.constant 0 : index
    %c0_14 = arith.constant 0 : index
    %15 = vector.load %arg2[%c0_11, %c0_12, %14, %c0_13, %c0_14] : memref<2x1x18x18x4xbf16, #tpu.memory_space<vmem>>, vector<2x1x16x16x4xbf16>
    %16 = vector.shape_cast %15 : vector<2x1x16x16x4xbf16> to vector<2x16x16x4xbf16>
    %c1_i32_15 = arith.constant 1 : i32
    %17 = arith.addi %0, %c1_i32_15 : i32
    %c0_16 = arith.constant 0 : index
    %c0_17 = arith.constant 0 : index
    %18 = arith.index_cast %17 : i32 to index
    %c1_18 = arith.constant 1 : index
    %c0_19 = arith.constant 0 : index
    %19 = vector.load %arg2[%c0_16, %c0_17, %18, %c1_18, %c0_19] : memref<2x1x18x18x4xbf16, #tpu.memory_space<vmem>>, vector<2x1x16x16x4xbf16>
    %20 = vector.shape_cast %19 : vector<2x1x16x16x4xbf16> to vector<2x16x16x4xbf16>
    %c1_i32_20 = arith.constant 1 : i32
    %21 = arith.addi %0, %c1_i32_20 : i32
    %c0_21 = arith.constant 0 : index
    %c0_22 = arith.constant 0 : index
    %22 = arith.index_cast %21 : i32 to index
    %c2_23 = arith.constant 2 : index
    %c0_24 = arith.constant 0 : index
    %23 = vector.load %arg2[%c0_21, %c0_22, %22, %c2_23, %c0_24] : memref<2x1x18x18x4xbf16, #tpu.memory_space<vmem>>, vector<2x1x16x16x4xbf16>
    %24 = vector.shape_cast %23 : vector<2x1x16x16x4xbf16> to vector<2x16x16x4xbf16>
    %c2_i32 = arith.constant 2 : i32
    %25 = arith.addi %0, %c2_i32 : i32
    %c0_25 = arith.constant 0 : index
    %c0_26 = arith.constant 0 : index
    %26 = arith.index_cast %25 : i32 to index
    %c0_27 = arith.constant 0 : index
    %c0_28 = arith.constant 0 : index
    %27 = vector.load %arg2[%c0_25, %c0_26, %26, %c0_27, %c0_28] : memref<2x1x18x18x4xbf16, #tpu.memory_space<vmem>>, vector<2x1x16x16x4xbf16>
    %28 = vector.shape_cast %27 : vector<2x1x16x16x4xbf16> to vector<2x16x16x4xbf16>
    %c2_i32_29 = arith.constant 2 : i32
    %29 = arith.addi %0, %c2_i32_29 : i32
    %c0_30 = arith.constant 0 : index
    %c0_31 = arith.constant 0 : index
    %30 = arith.index_cast %29 : i32 to index
    %c1_32 = arith.constant 1 : index
    %c0_33 = arith.constant 0 : index
    %31 = vector.load %arg2[%c0_30, %c0_31, %30, %c1_32, %c0_33] : memref<2x1x18x18x4xbf16, #tpu.memory_space<vmem>>, vector<2x1x16x16x4xbf16>
    %32 = vector.shape_cast %31 : vector<2x1x16x16x4xbf16> to vector<2x16x16x4xbf16>
    %c2_i32_34 = arith.constant 2 : i32
    %33 = arith.addi %0, %c2_i32_34 : i32
    %c0_35 = arith.constant 0 : index
    %c0_36 = arith.constant 0 : index
    %34 = arith.index_cast %33 : i32 to index
    %c2_37 = arith.constant 2 : index
    %c0_38 = arith.constant 0 : index
    %35 = vector.load %arg2[%c0_35, %c0_36, %34, %c2_37, %c0_38] : memref<2x1x18x18x4xbf16, #tpu.memory_space<vmem>>, vector<2x1x16x16x4xbf16>
    %36 = vector.shape_cast %35 : vector<2x1x16x16x4xbf16> to vector<2x16x16x4xbf16>
    %37 = tpu.concatenate %4, %8, %12, %16, %20, %24, %28, %32, %36 in 3 : vector<2x16x16x4xbf16>, vector<2x16x16x4xbf16>, vector<2x16x16x4xbf16>, vector<2x16x16x4xbf16>, vector<2x16x16x4xbf16>, vector<2x16x16x4xbf16>, vector<2x16x16x4xbf16>, vector<2x16x16x4xbf16>, vector<2x16x16x4xbf16> -> vector<2x16x16x36xbf16>
    %38 = vector.shape_cast %37 : vector<2x16x16x36xbf16> to vector<512x36xbf16>
    %c0_39 = arith.constant 0 : index
    %c0_40 = arith.constant 0 : index
    %39 = vector.load %arg3[%c0_39, %c0_40] : memref<36x128xbf16, #tpu.memory_space<vmem>>, vector<36x128xbf16>
    %cst = arith.constant dense<0.000000e+00> : vector<512x128xf32>
    %40 = tpu.matmul %38, %39, %cst {dimension_numbers = #tpu.dot_dimension_numbers<[1], [0], [0], [1], [0, 0, 1, 1], [], []>} : vector<512x36xbf16>, vector<36x128xbf16>, vector<512x128xf32> -> vector<512x128xf32>
    %c0_41 = arith.constant 0 : index
    %c0_42 = arith.constant 0 : index
    %41 = vector.load %arg4[%c0_41, %c0_42] : memref<1x128xf32, #tpu.memory_space<vmem>>, vector<1x128xf32>
    %42 = vector.broadcast %41 : vector<1x128xf32> to vector<512x128xf32>
    %43 = arith.addf %40, %42 : vector<512x128xf32>
    %cst_43 = arith.constant 0.000000e+00 : f32
    %44 = vector.broadcast %cst_43 : f32 to vector<512x128xf32>
    %45 = arith.maximumf %43, %44 : vector<512x128xf32>
    %46 = vector.extract_strided_slice %45 {offsets = [0, 0], sizes = [512, 64], strides = [1, 1]} : vector<512x128xf32> to vector<512x64xf32>
    %47 = vector.shape_cast %46 : vector<512x64xf32> to vector<2x256x64xf32>
    %c0_44 = arith.constant 0 : index
    %c0_45 = arith.constant 0 : index
    %c0_46 = arith.constant 0 : index
    %48 = vector.load %arg5[%c0_44, %c0_45, %c0_46] : memref<2x256x64xf32, #tpu.memory_space<vmem>>, vector<2x256x64xf32>
    tpu.vector_store %arg5[%c0_44, %c0_45, %c0_46], %47 {strides = array<i32>} : memref<2x256x64xf32, #tpu.memory_space<vmem>>, vector<2x256x64xf32>,
    return
  }
  func.func @transform_0(%arg0: i32, %arg1: i32) -> (i32, i32, i32, i32, i32) {
    %c0_i32 = arith.constant 0 : i32
    %c0_i32_0 = arith.constant 0 : i32
    %c0_i32_1 = arith.constant 0 : i32
    %c0_i32_2 = arith.constant 0 : i32
    %c0_i32_3 = arith.constant 0 : i32
    return %arg0, %c0_i32, %c0_i32_0, %c0_i32_1, %c0_i32_2 : i32, i32, i32, i32, i32
  }
  func.func @transform_1(%arg0: i32, %arg1: i32) -> (i32, i32) {
    %c0_i32 = arith.constant 0 : i32
    %c0_i32_0 = arith.constant 0 : i32
    %c0_i32_1 = arith.constant 0 : i32
    return %c0_i32, %c0_i32_0 : i32, i32
  }
  func.func @transform_2(%arg0: i32, %arg1: i32) -> (i32, i32) {
    %c0_i32 = arith.constant 0 : i32
    %c0_i32_0 = arith.constant 0 : i32
    %c0_i32_1 = arith.constant 0 : i32
    return %c0_i32, %c0_i32_0 : i32, i32
  }
  func.func @transform_3(%arg0: i32, %arg1: i32) -> (i32, i32, i32) {
    %c0_i32 = arith.constant 0 : i32
    %c0_i32_0 = arith.constant 0 : i32
    return %arg0, %arg1, %c0_i32 : i32, i32, i32
  }
}

</mosaic_0001>

<llo_original>
// kernel: conv2d_pallas.1
$region0: #{conv2d_pallas.1}
  #allocation0 [shape = 'u32[]', space=smem, size = 0x4, offset = 0x4, fixed_abs, tag = 'smem constant byte address 0x4 - core index']
  #allocation1 [shape = 'u32[144,128]{1,0:T(1,128)}', space=vmem, size = 0x12000, scoped, tag = 'internal scratch']
  %s0 = inlined_call_operand.vmem [shape: bf16[2,1,18,18,4], index: 0, kind: input, shape index: {}]
  %s1 = inlined_call_operand.vmem [shape: bf16[36,128], index: 1, kind: input, shape index: {}]
  %s2 = inlined_call_operand.vmem [shape: f32[1,128], index: 2, kind: input, shape index: {}]
  %s3 = inlined_call_operand.hbm [shape: f32[2,256,64], index: 3, kind: output, shape index: {}]
  %s4 = sld [smem:[#allocation0]]
  $region22: #{conv2d_pallas.1} parent=0
    _
  %s6 = ssub.s32 1, %s4
  %s7 = scalar_select 0, %s6, %s4
  $region1: #{conv2d_pallas.1} parent=0
    #allocation2 [shape = 'u8[262144]{0}', space=vmem, size = 0x40000, scoped, tag = 'output window, operand 0, single buffered']
    #allocation3 [shape = 's32[1]{0}', space=sflag, size = 0x4, scoped, tag = 'scoped memory for conv2d_pallas.1']
    %8 = vsyncpa [#allocation3], 0
    // Predicated region
    $region2: #{conv2d_pallas.1} parent=1 // pred_check
      _
    $region3: #{conv2d_pallas.1} parent=1 // pred_check_branch
      %10 = sbr.rel (0) target = $region5
    $region4: #{conv2d_pallas.1} parent=1 // pred_region
      _
    $region5: #{conv2d_pallas.1} parent=1 // pred_fallthru
      _
    // Predicated region
    $region6: #{conv2d_pallas.1} parent=1 // pred_check
      _
    $region7: #{conv2d_pallas.1} parent=1 // pred_check_branch
      %12 = sbr.rel (0) target = $region9
    $region8: #{conv2d_pallas.1} parent=1 // pred_region
      _
    $region9: #{conv2d_pallas.1} parent=1 // pred_fallthru
      _
    // Predicated region
    $region10: #{conv2d_pallas.1} parent=1 // pred_check
      _
    $region11: #{conv2d_pallas.1} parent=1 // pred_check_branch
      %14 = sbr.rel (0) target = $region13
    $region12: #{conv2d_pallas.1} parent=1 // pred_region
      _
    $region13: #{conv2d_pallas.1} parent=1 // pred_fallthru
      _
    %s16 = smul.u32 0, 16
    %s17 = smul.u32 %s16, 3
    %s18 = smul.addr %s17, 4
    %s19 = scalar_lea.vmem %s0, %s18
    %v20 = vld [vmem:[%s19] sm:$0xf]
    %v21 = vld [vmem:[%s19 + $0x4] sm:$0xf]
    %v22 = vld [vmem:[%s19 + $0xc] sm:$0xf]
    %v23 = vld [vmem:[%s19 + $0x10] sm:$0xf]
    %v24 = vld [vmem:[%s19 + $0x18] sm:$0xf]
    %v25 = vld [vmem:[%s19 + $0x1c] sm:$0xf]
    %v26 = vld [vmem:[%s19 + $0x24] sm:$0xf]
    %v27 = vld [vmem:[%s19 + $0x28] sm:$0xf]
    %v28 = vld [vmem:[%s19 + $0x30] sm:$0xf]
    %v29 = vld [vmem:[%s19 + $0x34] sm:$0xf]
    %v30 = vld [vmem:[%s19 + $0x3c] sm:$0xf]
    %v31 = vld [vmem:[%s19 + $0x40] sm:$0xf]
    %v32 = vld [vmem:[%s19 + $0x48] sm:$0xf]
    %v33 = vld [vmem:[%s19 + $0x4c] sm:$0xf]
    %v34 = vld [vmem:[%s19 + $0x54] sm:$0xf]
    %v35 = vld [vmem:[%s19 + $0x58] sm:$0xf]
    %v36 = vld [vmem:[%s19 + $0x60] sm:$0xf]
    %v37 = vld [vmem:[%s19 + $0x64] sm:$0xf]
    %v38 = vld [vmem:[%s19 + $0x6c] sm:$0xf]
    %v39 = vld [vmem:[%s19 + $0x70] sm:$0xf]
    %v40 = vld [vmem:[%s19 + $0x78] sm:$0xf]
    %v41 = vld [vmem:[%s19 + $0x7c] sm:$0xf]
    %v42 = vld [vmem:[%s19 + $0x84] sm:$0xf]
    %v43 = vld [vmem:[%s19 + $0x88] sm:$0xf]
    %v44 = vld [vmem:[%s19 + $0x90] sm:$0xf]
    %v45 = vld [vmem:[%s19 + $0x94] sm:$0xf]
    %v46 = vld [vmem:[%s19 + $0x9c] sm:$0xf]
    %v47 = vld [vmem:[%s19 + $0xa0] sm:$0xf]
    %v48 = vld [vmem:[%s19 + $0xa8] sm:$0xf]
    %v49 = vld [vmem:[%s19 + $0xac] sm:$0xf]
    %v50 = vld [vmem:[%s19 + $0xb4] sm:$0xf]
    %v51 = vld [vmem:[%s19 + $0xb8] sm:$0xf]
    %v52 = vld [vmem:[%s19 + $0xd8] sm:$0xf]
    %v53 = vld [vmem:[%s19 + $0xdc] sm:$0xf]
    %v54 = vld [vmem:[%s19 + $0xe4] sm:$0xf]
    %v55 = vld [vmem:[%s19 + $0xe8] sm:$0xf]
    %v56 = vld [vmem:[%s19 + $0xf0] sm:$0xf]
    %v57 = vld [vmem:[%s19 + $0xf4] sm:$0xf]
    %v58 = vld [vmem:[%s19 + $0xfc] sm:$0xf]
    %v59 = vld [vmem:[%s19 + $0x100] sm:$0xf]
    %v60 = vld [vmem:[%s19 + $0x108] sm:$0xf]
    %v61 = vld [vmem:[%s19 + $0x10c] sm:$0xf]
    %v62 = vld [vmem:[%s19 + $0x114] sm:$0xf]
    %v63 = vld [vmem:[%s19 + $0x118] sm:$0xf]
    %v64 = vld [vmem:[%s19 + $0x120] sm:$0xf]
    %v65 = vld [vmem:[%s19 + $0x124] sm:$0xf]
    %v66 = vld [vmem:[%s19 + $0x12c] sm:$0xf]
    %v67 = vld [vmem:[%s19 + $0x130] sm:$0xf]
    %v68 = vld [vmem:[%s19 + $0x138] sm:$0xf]
    %v69 = vld [vmem:[%s19 + $0x13c] sm:$0xf]
    %v70 = vld [vmem:[%s19 + $0x144] sm:$0xf]
    %v71 = vld [vmem:[%s19 + $0x148] sm:$0xf]
    %v72 = vld [vmem:[%s19 + $0x150] sm:$0xf]
    %v73 = vld [vmem:[%s19 + $0x154] sm:$0xf]
    %v74 = vld [vmem:[%s19 + $0x15c] sm:$0xf]
    %v75 = vld [vmem:[%s19 + $0x160] sm:$0xf]
    %v76 = vld [vmem:[%s19 + $0x168] sm:$0xf]
    %v77 = vld [vmem:[%s19 + $0x16c] sm:$0xf]
    %v78 = vld [vmem:[%s19 + $0x174] sm:$0xf]
    %v79 = vld [vmem:[%s19 + $0x178] sm:$0xf]
    %v80 = vld [vmem:[%s19 + $0x180] sm:$0xf]
    %v81 = vld [vmem:[%s19 + $0x184] sm:$0xf]
    %v82 = vld [vmem:[%s19 + $0x18c] sm:$0xf]
    %v83 = vld [vmem:[%s19 + $0x190] sm:$0xf]
    %v84 = vld [vmem:[%s19 + $0x8] sm:$0x1]
    %v85 = vld [vmem:[%s19 + $0x14] sm:$0x1]
    %v86 = vld [vmem:[%s19 + $0x20] sm:$0x1]
    %v87 = vld [vmem:[%s19 + $0x2c] sm:$0x1]
    %v88 = vld [vmem:[%s19 + $0x38] sm:$0x1]
    %v89 = vld [vmem:[%s19 + $0x44] sm:$0x1]
    %v90 = vld [vmem:[%s19 + $0x50] sm:$0x1]
    %v91 = vld [vmem:[%s19 + $0x5c] sm:$0x1]
    %v92 = vld [vmem:[%s19 + $0x68] sm:$0x1]
    %v93 = vld [vmem:[%s19 + $0x74] sm:$0x1]
    %v94 = vld [vmem:[%s19 + $0x80] sm:$0x1]
    %v95 = vld [vmem:[%s19 + $0x8c] sm:$0x1]
    %v96 = vld [vmem:[%s19 + $0x98] sm:$0x1]
    %v97 = vld [vmem:[%s19 + $0xa4] sm:$0x1]
    %v98 = vld [vmem:[%s19 + $0xb0] sm:$0x1]
    %v99 = vld [vmem:[%s19 + $0xbc] sm:$0x1]
    %v100 = vld [vmem:[%s19 + $0xe0] sm:$0x1]
    %v101 = vld [vmem:[%s19 + $0xec] sm:$0x1]
    %v102 = vld [vmem:[%s19 + $0xf8] sm:$0x1]
    %v103 = vld [vmem:[%s19 + $0x104] sm:$0x1]
    %v104 = vld [vmem:[%s19 + $0x110] sm:$0x1]
    %v105 = vld [vmem:[%s19 + $0x11c] sm:$0x1]
    %v106 = vld [vmem:[%s19 + $0x128] sm:$0x1]
    %v107 = vld [vmem:[%s19 + $0x134] sm:$0x1]
    %v108 = vld [vmem:[%s19 + $0x140] sm:$0x1]
    %v109 = vld [vmem:[%s19 + $0x14c] sm:$0x1]
    %v110 = vld [vmem:[%s19 + $0x158] sm:$0x1]
    %v111 = vld [vmem:[%s19 + $0x164] sm:$0x1]
    %v112 = vld [vmem:[%s19 + $0x170] sm:$0x1]
    %v113 = vld [vmem:[%s19 + $0x17c] sm:$0x1]
    %v114 = vld [vmem:[%s19 + $0x188] sm:$0x1]
    %v115 = vld [vmem:[%s19 + $0x194] sm:$0x1]
    %v116 = vld [vmem:[%s19] sm:$0xe]
    %v117 = vld [vmem:[%s19 + $0xc] sm:$0xe]
    %v118 = vld [vmem:[%s19 + $0x18] sm:$0xe]
    %v119 = vld [vmem:[%s19 + $0x24] sm:$0xe]
    %v120 = vld [vmem:[%s19 + $0x30] sm:$0xe]
    %v121 = vld [vmem:[%s19 + $0x3c] sm:$0xe]
    %v122 = vld [vmem:[%s19 + $0x48] sm:$0xe]
    %v123 = vld [vmem:[%s19 + $0x54] sm:$0xe]
    %v124 = vld [vmem:[%s19 + $0x60] sm:$0xe]
    %v125 = vld [vmem:[%s19 + $0x6c] sm:$0xe]
    %v126 = vld [vmem:[%s19 + $0x78] sm:$0xe]
    %v127 = vld [vmem:[%s19 + $0x84] sm:$0xe]
    %v128 = vld [vmem:[%s19 + $0x90] sm:$0xe]
    %v129 = vld [vmem:[%s19 + $0x9c] sm:$0xe]
    %v130 = vld [vmem:[%s19 + $0xa8] sm:$0xe]
    %v131 = vld [vmem:[%s19 + $0xb4] sm:$0xe]
    %v132 = vld [vmem:[%s19 + $0xd8] sm:$0xe]
    %v133 = vld [vmem:[%s19 + $0xe4] sm:$0xe]
    %v134 = vld [vmem:[%s19 + $0xf0] sm:$0xe]
    %v135 = vld [vmem:[%s19 + $0xfc] sm:$0xe]
    %v136 = vld [vmem:[%s19 + $0x108] sm:$0xe]
    %v137 = vld [vmem:[%s19 + $0x114] sm:$0xe]
    %v138 = vld [vmem:[%s19 + $0x120] sm:$0xe]
    %v139 = vld [vmem:[%s19 + $0x12c] sm:$0xe]
    %v140 = vld [vmem:[%s19 + $0x138] sm:$0xe]
    %v141 = vld [vmem:[%s19 + $0x144] sm:$0xe]
    %v142 = vld [vmem:[%s19 + $0x150] sm:$0xe]
    %v143 = vld [vmem:[%s19 + $0x15c] sm:$0xe]
    %v144 = vld [vmem:[%s19 + $0x168] sm:$0xe]
    %v145 = vld [vmem:[%s19 + $0x174] sm:$0xe]
    %v146 = vld [vmem:[%s19 + $0x180] sm:$0xe]
    %v147 = vld [vmem:[%s19 + $0x18c] sm:$0xe]
    %s148 = sadd.s32 %s16, 1
    %s149 = smul.u32 %s148, 3
    %s150 = smul.addr %s149, 4
    %s151 = scalar_lea.vmem %s0, %s150
    %v152 = vld [vmem:[%s151] sm:$0xf]
    %v153 = vld [vmem:[%s151 + $0x4] sm:$0xf]
    %v154 = vld [vmem:[%s151 + $0xc] sm:$0xf]
    %v155 = vld [vmem:[%s151 + $0x10] sm:$0xf]
    %v156 = vld [vmem:[%s151 + $0x18] sm:$0xf]
    %v157 = vld [vmem:[%s151 + $0x1c] sm:$0xf]
    %v158 = vld [vmem:[%s151 + $0x24] sm:$0xf]
    %v159 = vld [vmem:[%s151 + $0x28] sm:$0xf]
    %v160 = vld [vmem:[%s151 + $0x30] sm:$0xf]
    %v161 = vld [vmem:[%s151 + $0x34] sm:$0xf]
    %v162 = vld [vmem:[%s151 + $0x3c] sm:$0xf]
    %v163 = vld [vmem:[%s151 + $0x40] sm:$0xf]
    %v164 = vld [vmem:[%s151 + $0x48] sm:$0xf]
    %v165 = vld [vmem:[%s151 + $0x4c] sm:$0xf]
    %v166 = vld [vmem:[%s151 + $0x54] sm:$0xf]
    %v167 = vld [vmem:[%s151 + $0x58] sm:$0xf]
    %v168 = vld [vmem:[%s151 + $0x60] sm:$0xf]
    %v169 = vld [vmem:[%s151 + $0x64] sm:$0xf]
    %v170 = vld [vmem:[%s151 + $0x6c] sm:$0xf]
    %v171 = vld [vmem:[%s151 + $0x70] sm:$0xf]
    %v172 = vld [vmem:[%s151 + $0x78] sm:$0xf]
    %v173 = vld [vmem:[%s151 + $0x7c] sm:$0xf]
    %v174 = vld [vmem:[%s151 + $0x84] sm:$0xf]
    %v175 = vld [vmem:[%s151 + $0x88] sm:$0xf]
    %v176 = vld [vmem:[%s151 + $0x90] sm:$0xf]
    %v177 = vld [vmem:[%s151 + $0x94] sm:$0xf]
    %v178 = vld [vmem:[%s151 + $0x9c] sm:$0xf]
    %v179 = vld [vmem:[%s151 + $0xa0] sm:$0xf]
    %v180 = vld [vmem:[%s151 + $0xa8] sm:$0xf]
    %v181 = vld [vmem:[%s151 + $0xac] sm:$0xf]
    %v182 = vld [vmem:[%s151 + $0xb4] sm:$0xf]
    %v183 = vld [vmem:[%s151 + $0xb8] sm:$0xf]
    %v184 = vld [vmem:[%s151 + $0xd8] sm:$0xf]
    %v185 = vld [vmem:[%s151 + $0xdc] sm:$0xf]
    %v186 = vld [vmem:[%s151 + $0xe4] sm:$0xf]
    %v187 = vld [vmem:[%s151 + $0xe8] sm:$0xf]
    %v188 = vld [vmem:[%s151 + $0xf0] sm:$0xf]
    %v189 = vld [vmem:[%s151 + $0xf4] sm:$0xf]
    %v190 = vld [vmem:[%s151 + $0xfc] sm:$0xf]
    %v191 = vld [vmem:[%s151 + $0x100] sm:$0xf]
    %v192 = vld [vmem:[%s151 + $0x108] sm:$0xf]
    %v193 = vld [vmem:[%s151 + $0x10c] sm:$0xf]
    %v194 = vld [vmem:[%s151 + $0x114] sm:$0xf]
    %v195 = vld [vmem:[%s151 + $0x118] sm:$0xf]
    %v196 = vld [vmem:[%s151 + $0x120] sm:$0xf]
    %v197 = vld [vmem:[%s151 + $0x124] sm:$0xf]
    %v198 = vld [vmem:[%s151 + $0x12c] sm:$0xf]
    %v199 = vld [vmem:[%s151 + $0x130] sm:$0xf]
    %v200 = vld [vmem:[%s151 + $0x138] sm:$0xf]
    %v201 = vld [vmem:[%s151 + $0x13c] sm:$0xf]
    %v202 = vld [vmem:[%s151 + $0x144] sm:$0xf]
    %v203 = vld [vmem:[%s151 + $0x148] sm:$0xf]
    %v204 = vld [vmem:[%s151 + $0x150] sm:$0xf]
    %v205 = vld [vmem:[%s151 + $0x154] sm:$0xf]
    %v206 = vld [vmem:[%s151 + $0x15c] sm:$0xf]
    %v207 = vld [vmem:[%s151 + $0x160] sm:$0xf]
    %v208 = vld [vmem:[%s151 + $0x168] sm:$0xf]
    %v209 = vld [vmem:[%s151 + $0x16c] sm:$0xf]
    %v210 = vld [vmem:[%s151 + $0x174] sm:$0xf]
    %v211 = vld [vmem:[%s151 + $0x178] sm:$0xf]
    %v212 = vld [vmem:[%s151 + $0x180] sm:$0xf]
    %v213 = vld [vmem:[%s151 + $0x184] sm:$0xf]
    %v214 = vld [vmem:[%s151 + $0x18c] sm:$0xf]
    %v215 = vld [vmem:[%s151 + $0x190] sm:$0xf]
    %v216 = vld [vmem:[%s151 + $0x8] sm:$0x1]
    %v217 = vld [vmem:[%s151 + $0x14] sm:$0x1]
    %v218 = vld [vmem:[%s151 + $0x20] sm:$0x1]
    %v219 = vld [vmem:[%s151 + $0x2c] sm:$0x1]
    %v220 = vld [vmem:[%s151 + $0x38] sm:$0x1]
    %v221 = vld [vmem:[%s151 + $0x44] sm:$0x1]
    %v222 = vld [vmem:[%s151 + $0x50] sm:$0x1]
    %v223 = vld [vmem:[%s151 + $0x5c] sm:$0x1]
    %v224 = vld [vmem:[%s151 + $0x68] sm:$0x1]
    %v225 = vld [vmem:[%s151 + $0x74] sm:$0x1]
    %v226 = vld [vmem:[%s151 + $0x80] sm:$0x1]
    %v227 = vld [vmem:[%s151 + $0x8c] sm:$0x1]
    %v228 = vld [vmem:[%s151 + $0x98] sm:$0x1]
    %v229 = vld [vmem:[%s151 + $0xa4] sm:$0x1]
    %v230 = vld [vmem:[%s151 + $0xb0] sm:$0x1]
    %v231 = vld [vmem:[%s151 + $0xbc] sm:$0x1]
    %v232 = vld [vmem:[%s151 + $0xe0] sm:$0x1]
    %v233 = vld [vmem:[%s151 + $0xec] sm:$0x1]
    %v234 = vld [vmem:[%s151 + $0xf8] sm:$0x1]
    %v235 = vld [vmem:[%s151 + $0x104] sm:$0x1]
    %v236 = vld [vmem:[%s151 + $0x110] sm:$0x1]
    %v237 = vld [vmem:[%s151 + $0x11c] sm:$0x1]
    %v238 = vld [vmem:[%s151 + $0x128] sm:$0x1]
    %v239 = vld [vmem:[%s151 + $0x134] sm:$0x1]
    %v240 = vld [vmem:[%s151 + $0x140] sm:$0x1]
    %v241 = vld [vmem:[%s151 + $0x14c] sm:$0x1]
    %v242 = vld [vmem:[%s151 + $0x158] sm:$0x1]
    %v243 = vld [vmem:[%s151 + $0x164] sm:$0x1]
    %v244 = vld [vmem:[%s151 + $0x170] sm:$0x1]
    %v245 = vld [vmem:[%s151 + $0x17c] sm:$0x1]
    %v246 = vld [vmem:[%s151 + $0x188] sm:$0x1]
    %v247 = vld [vmem:[%s151 + $0x194] sm:$0x1]
    %v248 = vld [vmem:[%s151] sm:$0xe]
    %v249 = vld [vmem:[%s151 + $0xc] sm:$0xe]
    %v250 = vld [vmem:[%s151 + $0x18] sm:$0xe]
    %v251 = vld [vmem:[%s151 + $0x24] sm:$0xe]
    %v252 = vld [vmem:[%s151 + $0x30] sm:$0xe]
    %v253 = vld [vmem:[%s151 + $0x3c] sm:$0xe]
    %v254 = vld [vmem:[%s151 + $0x48] sm:$0xe]
    %v255 = vld [vmem:[%s151 + $0x54] sm:$0xe]
    %v256 = vld [vmem:[%s151 + $0x60] sm:$0xe]
    %v257 = vld [vmem:[%s151 + $0x6c] sm:$0xe]
    %v258 = vld [vmem:[%s151 + $0x78] sm:$0xe]
    %v259 = vld [vmem:[%s151 + $0x84] sm:$0xe]
    %v260 = vld [vmem:[%s151 + $0x90] sm:$0xe]
    %v261 = vld [vmem:[%s151 + $0x9c] sm:$0xe]
    %v262 = vld [vmem:[%s151 + $0xa8] sm:$0xe]
    %v263 = vld [vmem:[%s151 + $0xb4] sm:$0xe]
    %v264 = vld [vmem:[%s151 + $0xd8] sm:$0xe]
    %v265 = vld [vmem:[%s151 + $0xe4] sm:$0xe]
    %v266 = vld [vmem:[%s151 + $0xf0] sm:$0xe]
    %v267 = vld [vmem:[%s151 + $0xfc] sm:$0xe]
    %v268 = vld [vmem:[%s151 + $0x108] sm:$0xe]
    %v269 = vld [vmem:[%s151 + $0x114] sm:$0xe]
    %v270 = vld [vmem:[%s151 + $0x120] sm:$0xe]
    %v271 = vld [vmem:[%s151 + $0x12c] sm:$0xe]
    %v272 = vld [vmem:[%s151 + $0x138] sm:$0xe]
    %v273 = vld [vmem:[%s151 + $0x144] sm:$0xe]
    %v274 = vld [vmem:[%s151 + $0x150] sm:$0xe]
    %v275 = vld [vmem:[%s151 + $0x15c] sm:$0xe]
    %v276 = vld [vmem:[%s151 + $0x168] sm:$0xe]
    %v277 = vld [vmem:[%s151 + $0x174] sm:$0xe]
    %v278 = vld [vmem:[%s151 + $0x180] sm:$0xe]
    %v279 = vld [vmem:[%s151 + $0x18c] sm:$0xe]
    %s280 = sadd.s32 %s16, 2
    %s281 = smul.u32 %s280, 3
    %s282 = smul.addr %s281, 4
    %s283 = scalar_lea.vmem %s0, %s282
    %v284 = vld [vmem:[%s283] sm:$0xf]
    %v285 = vld [vmem:[%s283 + $0x4] sm:$0xf]
    %v286 = vld [vmem:[%s283 + $0xc] sm:$0xf]
    %v287 = vld [vmem:[%s283 + $0x10] sm:$0xf]
    %v288 = vld [vmem:[%s283 + $0x18] sm:$0xf]
    %v289 = vld [vmem:[%s283 + $0x1c] sm:$0xf]
    %v290 = vld [vmem:[%s283 + $0x24] sm:$0xf]
    %v291 = vld [vmem:[%s283 + $0x28] sm:$0xf]
    %v292 = vld [vmem:[%s283 + $0x30] sm:$0xf]
    %v293 = vld [vmem:[%s283 + $0x34] sm:$0xf]
    %v294 = vld [vmem:[%s283 + $0x3c] sm:$0xf]
    %v295 = vld [vmem:[%s283 + $0x40] sm:$0xf]
    %v296 = vld [vmem:[%s283 + $0x48] sm:$0xf]
    %v297 = vld [vmem:[%s283 + $0x4c] sm:$0xf]
    %v298 = vld [vmem:[%s283 + $0x54] sm:$0xf]
    %v299 = vld [vmem:[%s283 + $0x58] sm:$0xf]
    %v300 = vld [vmem:[%s283 + $0x60] sm:$0xf]
    %v301 = vld [vmem:[%s283 + $0x64] sm:$0xf]
    %v302 = vld [vmem:[%s283 + $0x6c] sm:$0xf]
    %v303 = vld [vmem:[%s283 + $0x70] sm:$0xf]
    %v304 = vld [vmem:[%s283 + $0x78] sm:$0xf]
    %v305 = vld [vmem:[%s283 + $0x7c] sm:$0xf]
    %v306 = vld [vmem:[%s283 + $0x84] sm:$0xf]
    %v307 = vld [vmem:[%s283 + $0x88] sm:$0xf]
    %v308 = vld [vmem:[%s283 + $0x90] sm:$0xf]
    %v309 = vld [vmem:[%s283 + $0x94] sm:$0xf]
    %v310 = vld [vmem:[%s283 + $0x9c] sm:$0xf]
    %v311 = vld [vmem:[%s283 + $0xa0] sm:$0xf]
    %v312 = vld [vmem:[%s283 + $0xa8] sm:$0xf]
    %v313 = vld [vmem:[%s283 + $0xac] sm:$0xf]
    %v314 = vld [vmem:[%s283 + $0xb4] sm:$0xf]
    %v315 = vld [vmem:[%s283 + $0xb8] sm:$0xf]
    %v316 = vld [vmem:[%s283 + $0xd8] sm:$0xf]
    %v317 = vld [vmem:[%s283 + $0xdc] sm:$0xf]
    %v318 = vld [vmem:[%s283 + $0xe4] sm:$0xf]
    %v319 = vld [vmem:[%s283 + $0xe8] sm:$0xf]
    %v320 = vld [vmem:[%s283 + $0xf0] sm:$0xf]
    %v321 = vld [vmem:[%s283 + $0xf4] sm:$0xf]
    %v322 = vld [vmem:[%s283 + $0xfc] sm:$0xf]
    %v323 = vld [vmem:[%s283 + $0x100] sm:$0xf]
    %v324 = vld [vmem:[%s283 + $0x108] sm:$0xf]
    %v325 = vld [vmem:[%s283 + $0x10c] sm:$0xf]
    %v326 = vld [vmem:[%s283 + $0x114] sm:$0xf]
    %v327 = vld [vmem:[%s283 + $0x118] sm:$0xf]
    %v328 = vld [vmem:[%s283 + $0x120] sm:$0xf]
    %v329 = vld [vmem:[%s283 + $0x124] sm:$0xf]
    %v330 = vld [vmem:[%s283 + $0x12c] sm:$0xf]
    %v331 = vld [vmem:[%s283 + $0x130] sm:$0xf]
    %v332 = vld [vmem:[%s283 + $0x138] sm:$0xf]
    %v333 = vld [vmem:[%s283 + $0x13c] sm:$0xf]
    %v334 = vld [vmem:[%s283 + $0x144] sm:$0xf]
    %v335 = vld [vmem:[%s283 + $0x148] sm:$0xf]
    %v336 = vld [vmem:[%s283 + $0x150] sm:$0xf]
    %v337 = vld [vmem:[%s283 + $0x154] sm:$0xf]
    %v338 = vld [vmem:[%s283 + $0x15c] sm:$0xf]
    %v339 = vld [vmem:[%s283 + $0x160] sm:$0xf]
    %v340 = vld [vmem:[%s283 + $0x168] sm:$0xf]
    %v341 = vld [vmem:[%s283 + $0x16c] sm:$0xf]
    %v342 = vld [vmem:[%s283 + $0x174] sm:$0xf]
    %v343 = vld [vmem:[%s283 + $0x178] sm:$0xf]
    %v344 = vld [vmem:[%s283 + $0x180] sm:$0xf]
    %v345 = vld [vmem:[%s283 + $0x184] sm:$0xf]
    %v346 = vld [vmem:[%s283 + $0x18c] sm:$0xf]
    %v347 = vld [vmem:[%s283 + $0x190] sm:$0xf]
    %v348 = vld [vmem:[%s283 + $0x8] sm:$0x1]
    %v349 = vld [vmem:[%s283 + $0x14] sm:$0x1]
    %v350 = vld [vmem:[%s283 + $0x20] sm:$0x1]
    %v351 = vld [vmem:[%s283 + $0x2c] sm:$0x1]
    %v352 = vld [vmem:[%s283 + $0x38] sm:$0x1]
    %v353 = vld [vmem:[%s283 + $0x44] sm:$0x1]
    %v354 = vld [vmem:[%s283 + $0x50] sm:$0x1]
    %v355 = vld [vmem:[%s283 + $0x5c] sm:$0x1]
    %v356 = vld [vmem:[%s283 + $0x68] sm:$0x1]
    %v357 = vld [vmem:[%s283 + $0x74] sm:$0x1]
    %v358 = vld [vmem:[%s283 + $0x80] sm:$0x1]
    %v359 = vld [vmem:[%s283 + $0x8c] sm:$0x1]
    %v360 = vld [vmem:[%s283 + $0x98] sm:$0x1]
    %v361 = vld [vmem:[%s283 + $0xa4] sm:$0x1]
    %v362 = vld [vmem:[%s283 + $0xb0] sm:$0x1]
    %v363 = vld [vmem:[%s283 + $0xbc] sm:$0x1]
    %v364 = vld [vmem:[%s283 + $0xe0] sm:$0x1]
    %v365 = vld [vmem:[%s283 + $0xec] sm:$0x1]
    %v366 = vld [vmem:[%s283 + $0xf8] sm:$0x1]
    %v367 = vld [vmem:[%s283 + $0x104] sm:$0x1]
    %v368 = vld [vmem:[%s283 + $0x110] sm:$0x1]
    %v369 = vld [vmem:[%s283 + $0x11c] sm:$0x1]
    %v370 = vld [vmem:[%s283 + $0x128] sm:$0x1]
    %v371 = vld [vmem:[%s283 + $0x134] sm:$0x1]
    %v372 = vld [vmem:[%s283 + $0x140] sm:$0x1]
    %v373 = vld [vmem:[%s283 + $0x14c] sm:$0x1]
    %v374 = vld [vmem:[%s283 + $0x158] sm:$0x1]
    %v375 = vld [vmem:[%s283 + $0x164] sm:$0x1]
    %v376 = vld [vmem:[%s283 + $0x170] sm:$0x1]
    %v377 = vld [vmem:[%s283 + $0x17c] sm:$0x1]
    %v378 = vld [vmem:[%s283 + $0x188] sm:$0x1]
    %v379 = vld [vmem:[%s283 + $0x194] sm:$0x1]
    %v380 = vld [vmem:[%s283] sm:$0xe]
    %v381 = vld [vmem:[%s283 + $0xc] sm:$0xe]
    %v382 = vld [vmem:[%s283 + $0x18] sm:$0xe]
    %v383 = vld [vmem:[%s283 + $0x24] sm:$0xe]
    %v384 = vld [vmem:[%s283 + $0x30] sm:$0xe]
    %v385 = vld [vmem:[%s283 + $0x3c] sm:$0xe]
    %v386 = vld [vmem:[%s283 + $0x48] sm:$0xe]
    %v387 = vld [vmem:[%s283 + $0x54] sm:$0xe]
    %v388 = vld [vmem:[%s283 + $0x60] sm:$0xe]
    %v389 = vld [vmem:[%s283 + $0x6c] sm:$0xe]
    %v390 = vld [vmem:[%s283 + $0x78] sm:$0xe]
    %v391 = vld [vmem:[%s283 + $0x84] sm:$0xe]
    %v392 = vld [vmem:[%s283 + $0x90] sm:$0xe]
    %v393 = vld [vmem:[%s283 + $0x9c] sm:$0xe]
    %v394 = vld [vmem:[%s283 + $0xa8] sm:$0xe]
    %v395 = vld [vmem:[%s283 + $0xb4] sm:$0xe]
    %v396 = vld [vmem:[%s283 + $0xd8] sm:$0xe]
    %v397 = vld [vmem:[%s283 + $0xe4] sm:$0xe]
    %v398 = vld [vmem:[%s283 + $0xf0] sm:$0xe]
    %v399 = vld [vmem:[%s283 + $0xfc] sm:$0xe]
    %v400 = vld [vmem:[%s283 + $0x108] sm:$0xe]
    %v401 = vld [vmem:[%s283 + $0x114] sm:$0xe]
    %v402 = vld [vmem:[%s283 + $0x120] sm:$0xe]
    %v403 = vld [vmem:[%s283 + $0x12c] sm:$0xe]
    %v404 = vld [vmem:[%s283 + $0x138] sm:$0xe]
    %v405 = vld [vmem:[%s283 + $0x144] sm:$0xe]
    %v406 = vld [vmem:[%s283 + $0x150] sm:$0xe]
    %v407 = vld [vmem:[%s283 + $0x15c] sm:$0xe]
    %v408 = vld [vmem:[%s283 + $0x168] sm:$0xe]
    %v409 = vld [vmem:[%s283 + $0x174] sm:$0xe]
    %v410 = vld [vmem:[%s283 + $0x180] sm:$0xe]
    %v411 = vld [vmem:[%s283 + $0x18c] sm:$0xe]
    %v476 = vunpack.c.l.b16 %v20
    %v477 = vunpack.c.l.b16 %v21
    %v478 = vunpack.c.l.b16 %v22
    %v479 = vunpack.c.l.b16 %v23
    %v480 = vunpack.c.l.b16 %v24
    %v481 = vunpack.c.l.b16 %v25
    %v482 = vunpack.c.l.b16 %v26
    %v483 = vunpack.c.l.b16 %v27
    %v484 = vunpack.c.l.b16 %v28
    %v485 = vunpack.c.l.b16 %v29
    %v486 = vunpack.c.l.b16 %v30
    %v487 = vunpack.c.l.b16 %v31
    %v488 = vunpack.c.l.b16 %v32
    %v489 = vunpack.c.l.b16 %v33
    %v490 = vunpack.c.l.b16 %v34
    %v491 = vunpack.c.l.b16 %v35
    %v492 = vunpack.c.l.b16 %v36
    %v493 = vunpack.c.l.b16 %v37
    %v494 = vunpack.c.l.b16 %v38
    %v495 = vunpack.c.l.b16 %v39
    %v496 = vunpack.c.l.b16 %v40
    %v497 = vunpack.c.l.b16 %v41
    %v498 = vunpack.c.l.b16 %v42
    %v499 = vunpack.c.l.b16 %v43
    %v500 = vunpack.c.l.b16 %v44
    %v501 = vunpack.c.l.b16 %v45
    %v502 = vunpack.c.l.b16 %v46
    %v503 = vunpack.c.l.b16 %v47
    %v504 = vunpack.c.l.b16 %v48
    %v505 = vunpack.c.l.b16 %v49
    %v506 = vunpack.c.l.b16 %v50
    %v507 = vunpack.c.l.b16 %v51
    %v508 = vunpack.c.l.b16 %v52
    %v509 = vunpack.c.l.b16 %v53
    %v510 = vunpack.c.l.b16 %v54
    %v511 = vunpack.c.l.b16 %v55
    %v512 = vunpack.c.l.b16 %v56
    %v513 = vunpack.c.l.b16 %v57
    %v514 = vunpack.c.l.b16 %v58
    %v515 = vunpack.c.l.b16 %v59
    %v516 = vunpack.c.l.b16 %v60
    %v517 = vunpack.c.l.b16 %v61
    %v518 = vunpack.c.l.b16 %v62
    %v519 = vunpack.c.l.b16 %v63
    %v520 = vunpack.c.l.b16 %v64
    %v521 = vunpack.c.l.b16 %v65
    %v522 = vunpack.c.l.b16 %v66
    %v523 = vunpack.c.l.b16 %v67
    %v524 = vunpack.c.l.b16 %v68
    %v525 = vunpack.c.l.b16 %v69
    %v526 = vunpack.c.l.b16 %v70
    %v527 = vunpack.c.l.b16 %v71
    %v528 = vunpack.c.l.b16 %v72
    %v529 = vunpack.c.l.b16 %v73
    %v530 = vunpack.c.l.b16 %v74
    %v531 = vunpack.c.l.b16 %v75
    %v532 = vunpack.c.l.b16 %v76
    %v533 = vunpack.c.l.b16 %v77
    %v534 = vunpack.c.l.b16 %v78
    %v535 = vunpack.c.l.b16 %v79
    %v536 = vunpack.c.l.b16 %v80
    %v537 = vunpack.c.l.b16 %v81
    %v538 = vunpack.c.l.b16 %v82
    %v539 = vunpack.c.l.b16 %v83
    %v540 = vpack.c.b16 %v477, %v476
    %v541 = vpack.c.b16 %v479, %v478
    %v542 = vpack.c.b16 %v481, %v480
    %v543 = vpack.c.b16 %v483, %v482
    %v544 = vpack.c.b16 %v485, %v484
    %v545 = vpack.c.b16 %v487, %v486
    %v546 = vpack.c.b16 %v489, %v488
    %v547 = vpack.c.b16 %v491, %v490
    %v548 = vpack.c.b16 %v493, %v492
    %v549 = vpack.c.b16 %v495, %v494
    %v550 = vpack.c.b16 %v497, %v496
    %v551 = vpack.c.b16 %v499, %v498
    %v552 = vpack.c.b16 %v501, %v500
    %v553 = vpack.c.b16 %v503, %v502
    %v554 = vpack.c.b16 %v505, %v504
    %v555 = vpack.c.b16 %v507, %v506
    %v556 = vpack.c.b16 %v509, %v508
    %v557 = vpack.c.b16 %v511, %v510
    %v558 = vpack.c.b16 %v513, %v512
    %v559 = vpack.c.b16 %v515, %v514
    %v560 = vpack.c.b16 %v517, %v516
    %v561 = vpack.c.b16 %v519, %v518
    %v562 = vpack.c.b16 %v521, %v520
    %v563 = vpack.c.b16 %v523, %v522
    %v564 = vpack.c.b16 %v525, %v524
    %v565 = vpack.c.b16 %v527, %v526
    %v566 = vpack.c.b16 %v529, %v528
    %v567 = vpack.c.b16 %v531, %v530
    %v568 = vpack.c.b16 %v533, %v532
    %v569 = vpack.c.b16 %v535, %v534
    %v570 = vpack.c.b16 %v537, %v536
    %v571 = vpack.c.b16 %v539, %v538
    %v604 = vunpack.c.l.b16 %v84
    %v605 = vunpack.c.l.b16 %v85
    %v606 = vunpack.c.l.b16 %v86
    %v607 = vunpack.c.l.b16 %v87
    %v608 = vunpack.c.l.b16 %v88
    %v609 = vunpack.c.l.b16 %v89
    %v610 = vunpack.c.l.b16 %v90
    %v611 = vunpack.c.l.b16 %v91
    %v612 = vunpack.c.l.b16 %v92
    %v613 = vunpack.c.l.b16 %v93
    %v614 = vunpack.c.l.b16 %v94
    %v615 = vunpack.c.l.b16 %v95
    %v616 = vunpack.c.l.b16 %v96
    %v617 = vunpack.c.l.b16 %v97
    %v618 = vunpack.c.l.b16 %v98
    %v619 = vunpack.c.l.b16 %v99
    %v620 = vunpack.c.l.b16 %v100
    %v621 = vunpack.c.l.b16 %v101
    %v622 = vunpack.c.l.b16 %v102
    %v623 = vunpack.c.l.b16 %v103
    %v624 = vunpack.c.l.b16 %v104
    %v625 = vunpack.c.l.b16 %v105
    %v626 = vunpack.c.l.b16 %v106
    %v627 = vunpack.c.l.b16 %v107
    %v628 = vunpack.c.l.b16 %v108
    %v629 = vunpack.c.l.b16 %v109
    %v630 = vunpack.c.l.b16 %v110
    %v631 = vunpack.c.l.b16 %v111
    %v632 = vunpack.c.l.b16 %v112
    %v633 = vunpack.c.l.b16 %v113
    %v634 = vunpack.c.l.b16 %v114
    %v635 = vunpack.c.l.b16 %v115
    %v636 = vpack.c.b16 %v604, %v604
    %v637 = vpack.c.b16 %v605, %v605
    %v638 = vpack.c.b16 %v606, %v606
    %v639 = vpack.c.b16 %v607, %v607
    %v640 = vpack.c.b16 %v608, %v608
    %v641 = vpack.c.b16 %v609, %v609
    %v642 = vpack.c.b16 %v610, %v610
    %v643 = vpack.c.b16 %v611, %v611
    %v644 = vpack.c.b16 %v612, %v612
    %v645 = vpack.c.b16 %v613, %v613
    %v646 = vpack.c.b16 %v614, %v614
    %v647 = vpack.c.b16 %v615, %v615
    %v648 = vpack.c.b16 %v616, %v616
    %v649 = vpack.c.b16 %v617, %v617
    %v650 = vpack.c.b16 %v618, %v618
    %v651 = vpack.c.b16 %v619, %v619
    %v652 = vpack.c.b16 %v620, %v620
    %v653 = vpack.c.b16 %v621, %v621
    %v654 = vpack.c.b16 %v622, %v622
    %v655 = vpack.c.b16 %v623, %v623
    %v656 = vpack.c.b16 %v624, %v624
    %v657 = vpack.c.b16 %v625, %v625
    %v658 = vpack.c.b16 %v626, %v626
    %v659 = vpack.c.b16 %v627, %v627
    %v660 = vpack.c.b16 %v628, %v628
    %v661 = vpack.c.b16 %v629, %v629
    %v662 = vpack.c.b16 %v630, %v630
    %v663 = vpack.c.b16 %v631, %v631
    %v664 = vpack.c.b16 %v632, %v632
    %v665 = vpack.c.b16 %v633, %v633
    %v666 = vpack.c.b16 %v634, %v634
    %v667 = vpack.c.b16 %v635, %v635
    %vm668 = vsmask.f32 7424
    %v670 = vshrl.u32 %v540, 16
    %v672 = vshll.u32 %v540, 16
    %v674 = vrot.slane %v672, 1
    %v675 = vor.u32 %v670, %v674
    %v677 = vshll.u32 %v636, 16
    %v679 = vrot.slane %v677, 1
    %v680 = vsel %vm668, %v675, %v679
    %v682 = vshrl.u32 %v541, 16
    %v684 = vshll.u32 %v541, 16
    %v686 = vrot.slane %v684, 1
    %v687 = vor.u32 %v682, %v686
    %v689 = vshll.u32 %v637, 16
    %v691 = vrot.slane %v689, 1
    %v692 = vsel %vm668, %v687, %v691
    %v694 = vshrl.u32 %v542, 16
    %v696 = vshll.u32 %v542, 16
    %v698 = vrot.slane %v696, 1
    %v699 = vor.u32 %v694, %v698
    %v701 = vshll.u32 %v638, 16
    %v703 = vrot.slane %v701, 1
    %v704 = vsel %vm668, %v699, %v703
    %v706 = vshrl.u32 %v543, 16
    %v708 = vshll.u32 %v543, 16
    %v710 = vrot.slane %v708, 1
    %v711 = vor.u32 %v706, %v710
    %v713 = vshll.u32 %v639, 16
    %v715 = vrot.slane %v713, 1
    %v716 = vsel %vm668, %v711, %v715
    %v718 = vshrl.u32 %v544, 16
    %v720 = vshll.u32 %v544, 16
    %v722 = vrot.slane %v720, 1
    %v723 = vor.u32 %v718, %v722
    %v725 = vshll.u32 %v640, 16
    %v727 = vrot.slane %v725, 1
    %v728 = vsel %vm668, %v723, %v727
    %v730 = vshrl.u32 %v545, 16
    %v732 = vshll.u32 %v545, 16
    %v734 = vrot.slane %v732, 1
    %v735 = vor.u32 %v730, %v734
    %v737 = vshll.u32 %v641, 16
    %v739 = vrot.slane %v737, 1
    %v740 = vsel %vm668, %v735, %v739
    %v742 = vshrl.u32 %v546, 16
    %v744 = vshll.u32 %v546, 16
    %v746 = vrot.slane %v744, 1
    %v747 = vor.u32 %v742, %v746
    %v749 = vshll.u32 %v642, 16
    %v751 = vrot.slane %v749, 1
    %v752 = vsel %vm668, %v747, %v751
    %v754 = vshrl.u32 %v547, 16
    %v756 = vshll.u32 %v547, 16
    %v758 = vrot.slane %v756, 1
    %v759 = vor.u32 %v754, %v758
    %v761 = vshll.u32 %v643, 16
    %v763 = vrot.slane %v761, 1
    %v764 = vsel %vm668, %v759, %v763
    %v766 = vshrl.u32 %v548, 16
    %v768 = vshll.u32 %v548, 16
    %v770 = vrot.slane %v768, 1
    %v771 = vor.u32 %v766, %v770
    %v773 = vshll.u32 %v644, 16
    %v775 = vrot.slane %v773, 1
    %v776 = vsel %vm668, %v771, %v775
    %v778 = vshrl.u32 %v549, 16
    %v780 = vshll.u32 %v549, 16
    %v782 = vrot.slane %v780, 1
    %v783 = vor.u32 %v778, %v782
    %v785 = vshll.u32 %v645, 16
    %v787 = vrot.slane %v785, 1
    %v788 = vsel %vm668, %v783, %v787
    %v790 = vshrl.u32 %v550, 16
    %v792 = vshll.u32 %v550, 16
    %v794 = vrot.slane %v792, 1
    %v795 = vor.u32 %v790, %v794
    %v797 = vshll.u32 %v646, 16
    %v799 = vrot.slane %v797, 1
    %v800 = vsel %vm668, %v795, %v799
    %v802 = vshrl.u32 %v551, 16
    %v804 = vshll.u32 %v551, 16
    %v806 = vrot.slane %v804, 1
    %v807 = vor.u32 %v802, %v806
    %v809 = vshll.u32 %v647, 16
    %v811 = vrot.slane %v809, 1
    %v812 = vsel %vm668, %v807, %v811
    %v814 = vshrl.u32 %v552, 16
    %v816 = vshll.u32 %v552, 16
    %v818 = vrot.slane %v816, 1
    %v819 = vor.u32 %v814, %v818
    %v821 = vshll.u32 %v648, 16
    %v823 = vrot.slane %v821, 1
    %v824 = vsel %vm668, %v819, %v823
    %v826 = vshrl.u32 %v553, 16
    %v828 = vshll.u32 %v553, 16
    %v830 = vrot.slane %v828, 1
    %v831 = vor.u32 %v826, %v830
    %v833 = vshll.u32 %v649, 16
    %v835 = vrot.slane %v833, 1
    %v836 = vsel %vm668, %v831, %v835
    %v838 = vshrl.u32 %v554, 16
    %v840 = vshll.u32 %v554, 16
    %v842 = vrot.slane %v840, 1
    %v843 = vor.u32 %v838, %v842
    %v845 = vshll.u32 %v650, 16
    %v847 = vrot.slane %v845, 1
    %v848 = vsel %vm668, %v843, %v847
    %v850 = vshrl.u32 %v555, 16
    %v852 = vshll.u32 %v555, 16
    %v854 = vrot.slane %v852, 1
    %v855 = vor.u32 %v850, %v854
    %v857 = vshll.u32 %v651, 16
    %v859 = vrot.slane %v857, 1
    %v860 = vsel %vm668, %v855, %v859
    %v862 = vshrl.u32 %v556, 16
    %v864 = vshll.u32 %v556, 16
    %v866 = vrot.slane %v864, 1
    %v867 = vor.u32 %v862, %v866
    %v869 = vshll.u32 %v652, 16
    %v871 = vrot.slane %v869, 1
    %v872 = vsel %vm668, %v867, %v871
    %v874 = vshrl.u32 %v557, 16
    %v876 = vshll.u32 %v557, 16
    %v878 = vrot.slane %v876, 1
    %v879 = vor.u32 %v874, %v878
    %v881 = vshll.u32 %v653, 16
    %v883 = vrot.slane %v881, 1
    %v884 = vsel %vm668, %v879, %v883
    %v886 = vshrl.u32 %v558, 16
    %v888 = vshll.u32 %v558, 16
    %v890 = vrot.slane %v888, 1
    %v891 = vor.u32 %v886, %v890
    %v893 = vshll.u32 %v654, 16
    %v895 = vrot.slane %v893, 1
    %v896 = vsel %vm668, %v891, %v895
    %v898 = vshrl.u32 %v559, 16
    %v900 = vshll.u32 %v559, 16
    %v902 = vrot.slane %v900, 1
    %v903 = vor.u32 %v898, %v902
    %v905 = vshll.u32 %v655, 16
    %v907 = vrot.slane %v905, 1
    %v908 = vsel %vm668, %v903, %v907
    %v910 = vshrl.u32 %v560, 16
    %v912 = vshll.u32 %v560, 16
    %v914 = vrot.slane %v912, 1
    %v915 = vor.u32 %v910, %v914
    %v917 = vshll.u32 %v656, 16
    %v919 = vrot.slane %v917, 1
    %v920 = vsel %vm668, %v915, %v919
    %v922 = vshrl.u32 %v561, 16
    %v924 = vshll.u32 %v561, 16
    %v926 = vrot.slane %v924, 1
    %v927 = vor.u32 %v922, %v926
    %v929 = vshll.u32 %v657, 16
    %v931 = vrot.slane %v929, 1
    %v932 = vsel %vm668, %v927, %v931
    %v934 = vshrl.u32 %v562, 16
    %v936 = vshll.u32 %v562, 16
    %v938 = vrot.slane %v936, 1
    %v939 = vor.u32 %v934, %v938
    %v941 = vshll.u32 %v658, 16
    %v943 = vrot.slane %v941, 1
    %v944 = vsel %vm668, %v939, %v943
    %v946 = vshrl.u32 %v563, 16
    %v948 = vshll.u32 %v563, 16
    %v950 = vrot.slane %v948, 1
    %v951 = vor.u32 %v946, %v950
    %v953 = vshll.u32 %v659, 16
    %v955 = vrot.slane %v953, 1
    %v956 = vsel %vm668, %v951, %v955
    %v958 = vshrl.u32 %v564, 16
    %v960 = vshll.u32 %v564, 16
    %v962 = vrot.slane %v960, 1
    %v963 = vor.u32 %v958, %v962
    %v965 = vshll.u32 %v660, 16
    %v967 = vrot.slane %v965, 1
    %v968 = vsel %vm668, %v963, %v967
    %v970 = vshrl.u32 %v565, 16
    %v972 = vshll.u32 %v565, 16
    %v974 = vrot.slane %v972, 1
    %v975 = vor.u32 %v970, %v974
    %v977 = vshll.u32 %v661, 16
    %v979 = vrot.slane %v977, 1
    %v980 = vsel %vm668, %v975, %v979
    %v982 = vshrl.u32 %v566, 16
    %v984 = vshll.u32 %v566, 16
    %v986 = vrot.slane %v984, 1
    %v987 = vor.u32 %v982, %v986
    %v989 = vshll.u32 %v662, 16
    %v991 = vrot.slane %v989, 1
    %v992 = vsel %vm668, %v987, %v991
    %v994 = vshrl.u32 %v567, 16
    %v996 = vshll.u32 %v567, 16
    %v998 = vrot.slane %v996, 1
    %v999 = vor.u32 %v994, %v998
    %v1001 = vshll.u32 %v663, 16
    %v1003 = vrot.slane %v1001, 1
    %v1004 = vsel %vm668, %v999, %v1003
    %v1006 = vshrl.u32 %v568, 16
    %v1008 = vshll.u32 %v568, 16
    %v1010 = vrot.slane %v1008, 1
    %v1011 = vor.u32 %v1006, %v1010
    %v1013 = vshll.u32 %v664, 16
    %v1015 = vrot.slane %v1013, 1
    %v1016 = vsel %vm668, %v1011, %v1015
    %v1018 = vshrl.u32 %v569, 16
    %v1020 = vshll.u32 %v569, 16
    %v1022 = vrot.slane %v1020, 1
    %v1023 = vor.u32 %v1018, %v1022
    %v1025 = vshll.u32 %v665, 16
    %v1027 = vrot.slane %v1025, 1
    %v1028 = vsel %vm668, %v1023, %v1027
    %v1030 = vshrl.u32 %v570, 16
    %v1032 = vshll.u32 %v570, 16
    %v1034 = vrot.slane %v1032, 1
    %v1035 = vor.u32 %v1030, %v1034
    %v1037 = vshll.u32 %v666, 16
    %v1039 = vrot.slane %v1037, 1
    %v1040 = vsel %vm668, %v1035, %v1039
    %v1042 = vshrl.u32 %v571, 16
    %v1044 = vshll.u32 %v571, 16
    %v1046 = vrot.slane %v1044, 1
    %v1047 = vor.u32 %v1042, %v1046
    %v1049 = vshll.u32 %v667, 16
    %v1051 = vrot.slane %v1049, 1
    %v1052 = vsel %vm668, %v1047, %v1051
    %1053 = vrot.lane.b32.xlu0 %v680, 4
    %v1054 = vpop.permute.xlu0 %1053
    %1055 = vrot.lane.b32.xlu0 %v692, 4
    %v1056 = vpop.permute.xlu0 %1055
    %1057 = vrot.lane.b32.xlu0 %v704, 4
    %v1058 = vpop.permute.xlu0 %1057
    %1059 = vrot.lane.b32.xlu0 %v716, 4
    %v1060 = vpop.permute.xlu0 %1059
    %1061 = vrot.lane.b32.xlu0 %v728, 4
    %v1062 = vpop.permute.xlu0 %1061
    %1063 = vrot.lane.b32.xlu0 %v740, 4
    %v1064 = vpop.permute.xlu0 %1063
    %1065 = vrot.lane.b32.xlu0 %v752, 4
    %v1066 = vpop.permute.xlu0 %1065
    %1067 = vrot.lane.b32.xlu0 %v764, 4
    %v1068 = vpop.permute.xlu0 %1067
    %1069 = vrot.lane.b32.xlu0 %v776, 4
    %v1070 = vpop.permute.xlu0 %1069
    %1071 = vrot.lane.b32.xlu0 %v788, 4
    %v1072 = vpop.permute.xlu0 %1071
    %1073 = vrot.lane.b32.xlu0 %v800, 4
    %v1074 = vpop.permute.xlu0 %1073
    %1075 = vrot.lane.b32.xlu0 %v812, 4
    %v1076 = vpop.permute.xlu0 %1075
    %1077 = vrot.lane.b32.xlu0 %v824, 4
    %v1078 = vpop.permute.xlu0 %1077
    %1079 = vrot.lane.b32.xlu0 %v836, 4
    %v1080 = vpop.permute.xlu0 %1079
    %1081 = vrot.lane.b32.xlu0 %v848, 4
    %v1082 = vpop.permute.xlu0 %1081
    %1083 = vrot.lane.b32.xlu0 %v860, 4
    %v1084 = vpop.permute.xlu0 %1083
    %1085 = vrot.lane.b32.xlu0 %v872, 4
    %v1086 = vpop.permute.xlu0 %1085
    %1087 = vrot.lane.b32.xlu0 %v884, 4
    %v1088 = vpop.permute.xlu0 %1087
    %1089 = vrot.lane.b32.xlu0 %v896, 4
    %v1090 = vpop.permute.xlu0 %1089
    %1091 = vrot.lane.b32.xlu0 %v908, 4
    %v1092 = vpop.permute.xlu0 %1091
    %1093 = vrot.lane.b32.xlu0 %v920, 4
    %v1094 = vpop.permute.xlu0 %1093
    %1095 = vrot.lane.b32.xlu0 %v932, 4
    %v1096 = vpop.permute.xlu0 %1095
    %1097 = vrot.lane.b32.xlu0 %v944, 4
    %v1098 = vpop.permute.xlu0 %1097
    %1099 = vrot.lane.b32.xlu0 %v956, 4
    %v1100 = vpop.permute.xlu0 %1099
    %1101 = vrot.lane.b32.xlu0 %v968, 4
    %v1102 = vpop.permute.xlu0 %1101
    %1103 = vrot.lane.b32.xlu0 %v980, 4
    %v1104 = vpop.permute.xlu0 %1103
    %1105 = vrot.lane.b32.xlu0 %v992, 4
    %v1106 = vpop.permute.xlu0 %1105
    %1107 = vrot.lane.b32.xlu0 %v1004, 4
    %v1108 = vpop.permute.xlu0 %1107
    %1109 = vrot.lane.b32.xlu0 %v1016, 4
    %v1110 = vpop.permute.xlu0 %1109
    %1111 = vrot.lane.b32.xlu0 %v1028, 4
    %v1112 = vpop.permute.xlu0 %1111
    %1113 = vrot.lane.b32.xlu0 %v1040, 4
    %v1114 = vpop.permute.xlu0 %1113
    %1115 = vrot.lane.b32.xlu0 %v1052, 4
    %v1116 = vpop.permute.xlu0 %1115
    %v1149 = vunpack.c.l.b16 %v116
    %v1150 = vunpack.c.l.b16 %v117
    %v1151 = vunpack.c.l.b16 %v118
    %v1152 = vunpack.c.l.b16 %v119
    %v1153 = vunpack.c.l.b16 %v120
    %v1154 = vunpack.c.l.b16 %v121
    %v1155 = vunpack.c.l.b16 %v122
    %v1156 = vunpack.c.l.b16 %v123
    %v1157 = vunpack.c.l.b16 %v124
    %v1158 = vunpack.c.l.b16 %v125
    %v1159 = vunpack.c.l.b16 %v126
    %v1160 = vunpack.c.l.b16 %v127
    %v1161 = vunpack.c.l.b16 %v128
    %v1162 = vunpack.c.l.b16 %v129
    %v1163 = vunpack.c.l.b16 %v130
    %v1164 = vunpack.c.l.b16 %v131
    %v1165 = vunpack.c.l.b16 %v132
    %v1166 = vunpack.c.l.b16 %v133
    %v1167 = vunpack.c.l.b16 %v134
    %v1168 = vunpack.c.l.b16 %v135
    %v1169 = vunpack.c.l.b16 %v136
    %v1170 = vunpack.c.l.b16 %v137
    %v1171 = vunpack.c.l.b16 %v138
    %v1172 = vunpack.c.l.b16 %v139
    %v1173 = vunpack.c.l.b16 %v140
    %v1174 = vunpack.c.l.b16 %v141
    %v1175 = vunpack.c.l.b16 %v142
    %v1176 = vunpack.c.l.b16 %v143
    %v1177 = vunpack.c.l.b16 %v144
    %v1178 = vunpack.c.l.b16 %v145
    %v1179 = vunpack.c.l.b16 %v146
    %v1180 = vunpack.c.l.b16 %v147
    %v1181 = vpack.c.b16 %v477, %v1149
    %v1182 = vpack.c.b16 %v479, %v1150
    %v1183 = vpack.c.b16 %v481, %v1151
    %v1184 = vpack.c.b16 %v483, %v1152
    %v1185 = vpack.c.b16 %v485, %v1153
    %v1186 = vpack.c.b16 %v487, %v1154
    %v1187 = vpack.c.b16 %v489, %v1155
    %v1188 = vpack.c.b16 %v491, %v1156
    %v1189 = vpack.c.b16 %v493, %v1157
    %v1190 = vpack.c.b16 %v495, %v1158
    %v1191 = vpack.c.b16 %v497, %v1159
    %v1192 = vpack.c.b16 %v499, %v1160
    %v1193 = vpack.c.b16 %v501, %v1161
    %v1194 = vpack.c.b16 %v503, %v1162
    %v1195 = vpack.c.b16 %v505, %v1163
    %v1196 = vpack.c.b16 %v507, %v1164
    %v1197 = vpack.c.b16 %v509, %v1165
    %v1198 = vpack.c.b16 %v511, %v1166
    %v1199 = vpack.c.b16 %v513, %v1167
    %v1200 = vpack.c.b16 %v515, %v1168
    %v1201 = vpack.c.b16 %v517, %v1169
    %v1202 = vpack.c.b16 %v519, %v1170
    %v1203 = vpack.c.b16 %v521, %v1171
    %v1204 = vpack.c.b16 %v523, %v1172
    %v1205 = vpack.c.b16 %v525, %v1173
    %v1206 = vpack.c.b16 %v527, %v1174
    %v1207 = vpack.c.b16 %v529, %v1175
    %v1208 = vpack.c.b16 %v531, %v1176
    %v1209 = vpack.c.b16 %v533, %v1177
    %v1210 = vpack.c.b16 %v535, %v1178
    %v1211 = vpack.c.b16 %v537, %v1179
    %v1212 = vpack.c.b16 %v539, %v1180
    %vm1213 = vcmask 1046528
    %v1214 = vrot.slane %v1181, 1
    %v1215 = vrot.slane %v636, 1
    %v1216 = vsel %vm1213, %v1214, %v1215
    %v1217 = vrot.slane %v1182, 1
    %v1218 = vrot.slane %v637, 1
    %v1219 = vsel %vm1213, %v1217, %v1218
    %v1220 = vrot.slane %v1183, 1
    %v1221 = vrot.slane %v638, 1
    %v1222 = vsel %vm1213, %v1220, %v1221
    %v1223 = vrot.slane %v1184, 1
    %v1224 = vrot.slane %v639, 1
    %v1225 = vsel %vm1213, %v1223, %v1224
    %v1226 = vrot.slane %v1185, 1
    %v1227 = vrot.slane %v640, 1
    %v1228 = vsel %vm1213, %v1226, %v1227
    %v1229 = vrot.slane %v1186, 1
    %v1230 = vrot.slane %v641, 1
    %v1231 = vsel %vm1213, %v1229, %v1230
    %v1232 = vrot.slane %v1187, 1
    %v1233 = vrot.slane %v642, 1
    %v1234 = vsel %vm1213, %v1232, %v1233
    %v1235 = vrot.slane %v1188, 1
    %v1236 = vrot.slane %v643, 1
    %v1237 = vsel %vm1213, %v1235, %v1236
    %v1238 = vrot.slane %v1189, 1
    %v1239 = vrot.slane %v644, 1
    %v1240 = vsel %vm1213, %v1238, %v1239
    %v1241 = vrot.slane %v1190, 1
    %v1242 = vrot.slane %v645, 1
    %v1243 = vsel %vm1213, %v1241, %v1242
    %v1244 = vrot.slane %v1191, 1
    %v1245 = vrot.slane %v646, 1
    %v1246 = vsel %vm1213, %v1244, %v1245
    %v1247 = vrot.slane %v1192, 1
    %v1248 = vrot.slane %v647, 1
    %v1249 = vsel %vm1213, %v1247, %v1248
    %v1250 = vrot.slane %v1193, 1
    %v1251 = vrot.slane %v648, 1
    %v1252 = vsel %vm1213, %v1250, %v1251
    %v1253 = vrot.slane %v1194, 1
    %v1254 = vrot.slane %v649, 1
    %v1255 = vsel %vm1213, %v1253, %v1254
    %v1256 = vrot.slane %v1195, 1
    %v1257 = vrot.slane %v650, 1
    %v1258 = vsel %vm1213, %v1256, %v1257
    %v1259 = vrot.slane %v1196, 1
    %v1260 = vrot.slane %v651, 1
    %v1261 = vsel %vm1213, %v1259, %v1260
    %v1262 = vrot.slane %v1197, 1
    %v1263 = vrot.slane %v652, 1
    %v1264 = vsel %vm1213, %v1262, %v1263
    %v1265 = vrot.slane %v1198, 1
    %v1266 = vrot.slane %v653, 1
    %v1267 = vsel %vm1213, %v1265, %v1266
    %v1268 = vrot.slane %v1199, 1
    %v1269 = vrot.slane %v654, 1
    %v1270 = vsel %vm1213, %v1268, %v1269
    %v1271 = vrot.slane %v1200, 1
    %v1272 = vrot.slane %v655, 1
    %v1273 = vsel %vm1213, %v1271, %v1272
    %v1274 = vrot.slane %v1201, 1
    %v1275 = vrot.slane %v656, 1
    %v1276 = vsel %vm1213, %v1274, %v1275
    %v1277 = vrot.slane %v1202, 1
    %v1278 = vrot.slane %v657, 1
    %v1279 = vsel %vm1213, %v1277, %v1278
    %v1280 = vrot.slane %v1203, 1
    %v1281 = vrot.slane %v658, 1
    %v1282 = vsel %vm1213, %v1280, %v1281
    %v1283 = vrot.slane %v1204, 1
    %v1284 = vrot.slane %v659, 1
    %v1285 = vsel %vm1213, %v1283, %v1284
    %v1286 = vrot.slane %v1205, 1
    %v1287 = vrot.slane %v660, 1
    %v1288 = vsel %vm1213, %v1286, %v1287
    %v1289 = vrot.slane %v1206, 1
    %v1290 = vrot.slane %v661, 1
    %v1291 = vsel %vm1213, %v1289, %v1290
    %v1292 = vrot.slane %v1207, 1
    %v1293 = vrot.slane %v662, 1
    %v1294 = vsel %vm1213, %v1292, %v1293
    %v1295 = vrot.slane %v1208, 1
    %v1296 = vrot.slane %v663, 1
    %v1297 = vsel %vm1213, %v1295, %v1296
    %v1298 = vrot.slane %v1209, 1
    %v1299 = vrot.slane %v664, 1
    %v1300 = vsel %vm1213, %v1298, %v1299
    %v1301 = vrot.slane %v1210, 1
    %v1302 = vrot.slane %v665, 1
    %v1303 = vsel %vm1213, %v1301, %v1302
    %v1304 = vrot.slane %v1211, 1
    %v1305 = vrot.slane %v666, 1
    %v1306 = vsel %vm1213, %v1304, %v1305
    %v1307 = vrot.slane %v1212, 1
    %v1308 = vrot.slane %v667, 1
    %v1309 = vsel %vm1213, %v1307, %v1308
    %1310 = vrot.lane.b32.xlu0 %v1216, 8
    %v1311 = vpop.permute.xlu0 %1310
    %1312 = vrot.lane.b32.xlu0 %v1219, 8
    %v1313 = vpop.permute.xlu0 %1312
    %1314 = vrot.lane.b32.xlu0 %v1222, 8
    %v1315 = vpop.permute.xlu0 %1314
    %1316 = vrot.lane.b32.xlu0 %v1225, 8
    %v1317 = vpop.permute.xlu0 %1316
    %1318 = vrot.lane.b32.xlu0 %v1228, 8
    %v1319 = vpop.permute.xlu0 %1318
    %1320 = vrot.lane.b32.xlu0 %v1231, 8
    %v1321 = vpop.permute.xlu0 %1320
    %1322 = vrot.lane.b32.xlu0 %v1234, 8
    %v1323 = vpop.permute.xlu0 %1322
    %1324 = vrot.lane.b32.xlu0 %v1237, 8
    %v1325 = vpop.permute.xlu0 %1324
    %1326 = vrot.lane.b32.xlu0 %v1240, 8
    %v1327 = vpop.permute.xlu0 %1326
    %1328 = vrot.lane.b32.xlu0 %v1243, 8
    %v1329 = vpop.permute.xlu0 %1328
    %1330 = vrot.lane.b32.xlu0 %v1246, 8
    %v1331 = vpop.permute.xlu0 %1330
    %1332 = vrot.lane.b32.xlu0 %v1249, 8
    %v1333 = vpop.permute.xlu0 %1332
    %1334 = vrot.lane.b32.xlu0 %v1252, 8
    %v1335 = vpop.permute.xlu0 %1334
    %1336 = vrot.lane.b32.xlu0 %v1255, 8
    %v1337 = vpop.permute.xlu0 %1336
    %1338 = vrot.lane.b32.xlu0 %v1258, 8
    %v1339 = vpop.permute.xlu0 %1338
    %1340 = vrot.lane.b32.xlu0 %v1261, 8
    %v1341 = vpop.permute.xlu0 %1340
    %1342 = vrot.lane.b32.xlu0 %v1264, 8
    %v1343 = vpop.permute.xlu0 %1342
    %1344 = vrot.lane.b32.xlu0 %v1267, 8
    %v1345 = vpop.permute.xlu0 %1344
    %1346 = vrot.lane.b32.xlu0 %v1270, 8
    %v1347 = vpop.permute.xlu0 %1346
    %1348 = vrot.lane.b32.xlu0 %v1273, 8
    %v1349 = vpop.permute.xlu0 %1348
    %1350 = vrot.lane.b32.xlu0 %v1276, 8
    %v1351 = vpop.permute.xlu0 %1350
    %1352 = vrot.lane.b32.xlu0 %v1279, 8
    %v1353 = vpop.permute.xlu0 %1352
    %1354 = vrot.lane.b32.xlu0 %v1282, 8
    %v1355 = vpop.permute.xlu0 %1354
    %1356 = vrot.lane.b32.xlu0 %v1285, 8
    %v1357 = vpop.permute.xlu0 %1356
    %1358 = vrot.lane.b32.xlu0 %v1288, 8
    %v1359 = vpop.permute.xlu0 %1358
    %1360 = vrot.lane.b32.xlu0 %v1291, 8
    %v1361 = vpop.permute.xlu0 %1360
    %1362 = vrot.lane.b32.xlu0 %v1294, 8
    %v1363 = vpop.permute.xlu0 %1362
    %1364 = vrot.lane.b32.xlu0 %v1297, 8
    %v1365 = vpop.permute.xlu0 %1364
    %1366 = vrot.lane.b32.xlu0 %v1300, 8
    %v1367 = vpop.permute.xlu0 %1366
    %1368 = vrot.lane.b32.xlu0 %v1303, 8
    %v1369 = vpop.permute.xlu0 %1368
    %1370 = vrot.lane.b32.xlu0 %v1306, 8
    %v1371 = vpop.permute.xlu0 %1370
    %1372 = vrot.lane.b32.xlu0 %v1309, 8
    %v1373 = vpop.permute.xlu0 %1372
    %v1438 = vunpack.c.l.b16 %v152
    %v1439 = vunpack.c.l.b16 %v153
    %v1440 = vunpack.c.l.b16 %v154
    %v1441 = vunpack.c.l.b16 %v155
    %v1442 = vunpack.c.l.b16 %v156
    %v1443 = vunpack.c.l.b16 %v157
    %v1444 = vunpack.c.l.b16 %v158
    %v1445 = vunpack.c.l.b16 %v159
    %v1446 = vunpack.c.l.b16 %v160
    %v1447 = vunpack.c.l.b16 %v161
    %v1448 = vunpack.c.l.b16 %v162
    %v1449 = vunpack.c.l.b16 %v163
    %v1450 = vunpack.c.l.b16 %v164
    %v1451 = vunpack.c.l.b16 %v165
    %v1452 = vunpack.c.l.b16 %v166
    %v1453 = vunpack.c.l.b16 %v167
    %v1454 = vunpack.c.l.b16 %v168
    %v1455 = vunpack.c.l.b16 %v169
    %v1456 = vunpack.c.l.b16 %v170
    %v1457 = vunpack.c.l.b16 %v171
    %v1458 = vunpack.c.l.b16 %v172
    %v1459 = vunpack.c.l.b16 %v173
    %v1460 = vunpack.c.l.b16 %v174
    %v1461 = vunpack.c.l.b16 %v175
    %v1462 = vunpack.c.l.b16 %v176
    %v1463 = vunpack.c.l.b16 %v177
    %v1464 = vunpack.c.l.b16 %v178
    %v1465 = vunpack.c.l.b16 %v179
    %v1466 = vunpack.c.l.b16 %v180
    %v1467 = vunpack.c.l.b16 %v181
    %v1468 = vunpack.c.l.b16 %v182
    %v1469 = vunpack.c.l.b16 %v183
    %v1470 = vunpack.c.l.b16 %v184
    %v1471 = vunpack.c.l.b16 %v185
    %v1472 = vunpack.c.l.b16 %v186
    %v1473 = vunpack.c.l.b16 %v187
    %v1474 = vunpack.c.l.b16 %v188
    %v1475 = vunpack.c.l.b16 %v189
    %v1476 = vunpack.c.l.b16 %v190
    %v1477 = vunpack.c.l.b16 %v191
    %v1478 = vunpack.c.l.b16 %v192
    %v1479 = vunpack.c.l.b16 %v193
    %v1480 = vunpack.c.l.b16 %v194
    %v1481 = vunpack.c.l.b16 %v195
    %v1482 = vunpack.c.l.b16 %v196
    %v1483 = vunpack.c.l.b16 %v197
    %v1484 = vunpack.c.l.b16 %v198
    %v1485 = vunpack.c.l.b16 %v199
    %v1486 = vunpack.c.l.b16 %v200
    %v1487 = vunpack.c.l.b16 %v201
    %v1488 = vunpack.c.l.b16 %v202
    %v1489 = vunpack.c.l.b16 %v203
    %v1490 = vunpack.c.l.b16 %v204
    %v1491 = vunpack.c.l.b16 %v205
    %v1492 = vunpack.c.l.b16 %v206
    %v1493 = vunpack.c.l.b16 %v207
    %v1494 = vunpack.c.l.b16 %v208
    %v1495 = vunpack.c.l.b16 %v209
    %v1496 = vunpack.c.l.b16 %v210
    %v1497 = vunpack.c.l.b16 %v211
    %v1498 = vunpack.c.l.b16 %v212
    %v1499 = vunpack.c.l.b16 %v213
    %v1500 = vunpack.c.l.b16 %v214
    %v1501 = vunpack.c.l.b16 %v215
    %v1502 = vpack.c.b16 %v1439, %v1438
    %v1503 = vpack.c.b16 %v1441, %v1440
    %v1504 = vpack.c.b16 %v1443, %v1442
    %v1505 = vpack.c.b16 %v1445, %v1444
    %v1506 = vpack.c.b16 %v1447, %v1446
    %v1507 = vpack.c.b16 %v1449, %v1448
    %v1508 = vpack.c.b16 %v1451, %v1450
    %v1509 = vpack.c.b16 %v1453, %v1452
    %v1510 = vpack.c.b16 %v1455, %v1454
    %v1511 = vpack.c.b16 %v1457, %v1456
    %v1512 = vpack.c.b16 %v1459, %v1458
    %v1513 = vpack.c.b16 %v1461, %v1460
    %v1514 = vpack.c.b16 %v1463, %v1462
    %v1515 = vpack.c.b16 %v1465, %v1464
    %v1516 = vpack.c.b16 %v1467, %v1466
    %v1517 = vpack.c.b16 %v1469, %v1468
    %v1518 = vpack.c.b16 %v1471, %v1470
    %v1519 = vpack.c.b16 %v1473, %v1472
    %v1520 = vpack.c.b16 %v1475, %v1474
    %v1521 = vpack.c.b16 %v1477, %v1476
    %v1522 = vpack.c.b16 %v1479, %v1478
    %v1523 = vpack.c.b16 %v1481, %v1480
    %v1524 = vpack.c.b16 %v1483, %v1482
    %v1525 = vpack.c.b16 %v1485, %v1484
    %v1526 = vpack.c.b16 %v1487, %v1486
    %v1527 = vpack.c.b16 %v1489, %v1488
    %v1528 = vpack.c.b16 %v1491, %v1490
    %v1529 = vpack.c.b16 %v1493, %v1492
    %v1530 = vpack.c.b16 %v1495, %v1494
    %v1531 = vpack.c.b16 %v1497, %v1496
    %v1532 = vpack.c.b16 %v1499, %v1498
    %v1533 = vpack.c.b16 %v1501, %v1500
    %1534 = vrot.lane.b32.xlu0 %v1502, 12
    %v1535 = vpop.permute.xlu0 %1534
    %1536 = vrot.lane.b32.xlu0 %v1503, 12
    %v1537 = vpop.permute.xlu0 %1536
    %1538 = vrot.lane.b32.xlu0 %v1504, 12
    %v1539 = vpop.permute.xlu0 %1538
    %1540 = vrot.lane.b32.xlu0 %v1505, 12
    %v1541 = vpop.permute.xlu0 %1540
    %1542 = vrot.lane.b32.xlu0 %v1506, 12
    %v1543 = vpop.permute.xlu0 %1542
    %1544 = vrot.lane.b32.xlu0 %v1507, 12
    %v1545 = vpop.permute.xlu0 %1544
    %1546 = vrot.lane.b32.xlu0 %v1508, 12
    %v1547 = vpop.permute.xlu0 %1546
    %1548 = vrot.lane.b32.xlu0 %v1509, 12
    %v1549 = vpop.permute.xlu0 %1548
    %1550 = vrot.lane.b32.xlu0 %v1510, 12
    %v1551 = vpop.permute.xlu0 %1550
    %1552 = vrot.lane.b32.xlu0 %v1511, 12
    %v1553 = vpop.permute.xlu0 %1552
    %1554 = vrot.lane.b32.xlu0 %v1512, 12
    %v1555 = vpop.permute.xlu0 %1554
    %1556 = vrot.lane.b32.xlu0 %v1513, 12
    %v1557 = vpop.permute.xlu0 %1556
    %1558 = vrot.lane.b32.xlu0 %v1514, 12
    %v1559 = vpop.permute.xlu0 %1558
    %1560 = vrot.lane.b32.xlu0 %v1515, 12
    %v1561 = vpop.permute.xlu0 %1560
    %1562 = vrot.lane.b32.xlu0 %v1516, 12
    %v1563 = vpop.permute.xlu0 %1562
    %1564 = vrot.lane.b32.xlu0 %v1517, 12
    %v1565 = vpop.permute.xlu0 %1564
    %1566 = vrot.lane.b32.xlu0 %v1518, 12
    %v1567 = vpop.permute.xlu0 %1566
    %1568 = vrot.lane.b32.xlu0 %v1519, 12
    %v1569 = vpop.permute.xlu0 %1568
    %1570 = vrot.lane.b32.xlu0 %v1520, 12
    %v1571 = vpop.permute.xlu0 %1570
    %1572 = vrot.lane.b32.xlu0 %v1521, 12
    %v1573 = vpop.permute.xlu0 %1572
    %1574 = vrot.lane.b32.xlu0 %v1522, 12
    %v1575 = vpop.permute.xlu0 %1574
    %1576 = vrot.lane.b32.xlu0 %v1523, 12
    %v1577 = vpop.permute.xlu0 %1576
    %1578 = vrot.lane.b32.xlu0 %v1524, 12
    %v1579 = vpop.permute.xlu0 %1578
    %1580 = vrot.lane.b32.xlu0 %v1525, 12
    %v1581 = vpop.permute.xlu0 %1580
    %1582 = vrot.lane.b32.xlu0 %v1526, 12
    %v1583 = vpop.permute.xlu0 %1582
    %1584 = vrot.lane.b32.xlu0 %v1527, 12
    %v1585 = vpop.permute.xlu0 %1584
    %1586 = vrot.lane.b32.xlu0 %v1528, 12
    %v1587 = vpop.permute.xlu0 %1586
    %1588 = vrot.lane.b32.xlu0 %v1529, 12
    %v1589 = vpop.permute.xlu0 %1588
    %1590 = vrot.lane.b32.xlu0 %v1530, 12
    %v1591 = vpop.permute.xlu0 %1590
    %1592 = vrot.lane.b32.xlu0 %v1531, 12
    %v1593 = vpop.permute.xlu0 %1592
    %1594 = vrot.lane.b32.xlu0 %v1532, 12
    %v1595 = vpop.permute.xlu0 %1594
    %1596 = vrot.lane.b32.xlu0 %v1533, 12
    %v1597 = vpop.permute.xlu0 %1596
    %v1630 = vunpack.c.l.b16 %v216
    %v1631 = vunpack.c.l.b16 %v217
    %v1632 = vunpack.c.l.b16 %v218
    %v1633 = vunpack.c.l.b16 %v219
    %v1634 = vunpack.c.l.b16 %v220
    %v1635 = vunpack.c.l.b16 %v221
    %v1636 = vunpack.c.l.b16 %v222
    %v1637 = vunpack.c.l.b16 %v223
    %v1638 = vunpack.c.l.b16 %v224
    %v1639 = vunpack.c.l.b16 %v225
    %v1640 = vunpack.c.l.b16 %v226
    %v1641 = vunpack.c.l.b16 %v227
    %v1642 = vunpack.c.l.b16 %v228
    %v1643 = vunpack.c.l.b16 %v229
    %v1644 = vunpack.c.l.b16 %v230
    %v1645 = vunpack.c.l.b16 %v231
    %v1646 = vunpack.c.l.b16 %v232
    %v1647 = vunpack.c.l.b16 %v233
    %v1648 = vunpack.c.l.b16 %v234
    %v1649 = vunpack.c.l.b16 %v235
    %v1650 = vunpack.c.l.b16 %v236
    %v1651 = vunpack.c.l.b16 %v237
    %v1652 = vunpack.c.l.b16 %v238
    %v1653 = vunpack.c.l.b16 %v239
    %v1654 = vunpack.c.l.b16 %v240
    %v1655 = vunpack.c.l.b16 %v241
    %v1656 = vunpack.c.l.b16 %v242
    %v1657 = vunpack.c.l.b16 %v243
    %v1658 = vunpack.c.l.b16 %v244
    %v1659 = vunpack.c.l.b16 %v245
    %v1660 = vunpack.c.l.b16 %v246
    %v1661 = vunpack.c.l.b16 %v247
    %v1662 = vpack.c.b16 %v1630, %v1630
    %v1663 = vpack.c.b16 %v1631, %v1631
    %v1664 = vpack.c.b16 %v1632, %v1632
    %v1665 = vpack.c.b16 %v1633, %v1633
    %v1666 = vpack.c.b16 %v1634, %v1634
    %v1667 = vpack.c.b16 %v1635, %v1635
    %v1668 = vpack.c.b16 %v1636, %v1636
    %v1669 = vpack.c.b16 %v1637, %v1637
    %v1670 = vpack.c.b16 %v1638, %v1638
    %v1671 = vpack.c.b16 %v1639, %v1639
    %v1672 = vpack.c.b16 %v1640, %v1640
    %v1673 = vpack.c.b16 %v1641, %v1641
    %v1674 = vpack.c.b16 %v1642, %v1642
    %v1675 = vpack.c.b16 %v1643, %v1643
    %v1676 = vpack.c.b16 %v1644, %v1644
    %v1677 = vpack.c.b16 %v1645, %v1645
    %v1678 = vpack.c.b16 %v1646, %v1646
    %v1679 = vpack.c.b16 %v1647, %v1647
    %v1680 = vpack.c.b16 %v1648, %v1648
    %v1681 = vpack.c.b16 %v1649, %v1649
    %v1682 = vpack.c.b16 %v1650, %v1650
    %v1683 = vpack.c.b16 %v1651, %v1651
    %v1684 = vpack.c.b16 %v1652, %v1652
    %v1685 = vpack.c.b16 %v1653, %v1653
    %v1686 = vpack.c.b16 %v1654, %v1654
    %v1687 = vpack.c.b16 %v1655, %v1655
    %v1688 = vpack.c.b16 %v1656, %v1656
    %v1689 = vpack.c.b16 %v1657, %v1657
    %v1690 = vpack.c.b16 %v1658, %v1658
    %v1691 = vpack.c.b16 %v1659, %v1659
    %v1692 = vpack.c.b16 %v1660, %v1660
    %v1693 = vpack.c.b16 %v1661, %v1661
    %v1695 = vshrl.u32 %v1502, 16
    %v1697 = vshll.u32 %v1502, 16
    %v1699 = vrot.slane %v1697, 1
    %v1700 = vor.u32 %v1695, %v1699
    %v1702 = vshll.u32 %v1662, 16
    %v1704 = vrot.slane %v1702, 1
    %v1705 = vsel %vm668, %v1700, %v1704
    %v1707 = vshrl.u32 %v1503, 16
    %v1709 = vshll.u32 %v1503, 16
    %v1711 = vrot.slane %v1709, 1
    %v1712 = vor.u32 %v1707, %v1711
    %v1714 = vshll.u32 %v1663, 16
    %v1716 = vrot.slane %v1714, 1
    %v1717 = vsel %vm668, %v1712, %v1716
    %v1719 = vshrl.u32 %v1504, 16
    %v1721 = vshll.u32 %v1504, 16
    %v1723 = vrot.slane %v1721, 1
    %v1724 = vor.u32 %v1719, %v1723
    %v1726 = vshll.u32 %v1664, 16
    %v1728 = vrot.slane %v1726, 1
    %v1729 = vsel %vm668, %v1724, %v1728
    %v1731 = vshrl.u32 %v1505, 16
    %v1733 = vshll.u32 %v1505, 16
    %v1735 = vrot.slane %v1733, 1
    %v1736 = vor.u32 %v1731, %v1735
    %v1738 = vshll.u32 %v1665, 16
    %v1740 = vrot.slane %v1738, 1
    %v1741 = vsel %vm668, %v1736, %v1740
    %v1743 = vshrl.u32 %v1506, 16
    %v1745 = vshll.u32 %v1506, 16
    %v1747 = vrot.slane %v1745, 1
    %v1748 = vor.u32 %v1743, %v1747
    %v1750 = vshll.u32 %v1666, 16
    %v1752 = vrot.slane %v1750, 1
    %v1753 = vsel %vm668, %v1748, %v1752
    %v1755 = vshrl.u32 %v1507, 16
    %v1757 = vshll.u32 %v1507, 16
    %v1759 = vrot.slane %v1757, 1
    %v1760 = vor.u32 %v1755, %v1759
    %v1762 = vshll.u32 %v1667, 16
    %v1764 = vrot.slane %v1762, 1
    %v1765 = vsel %vm668, %v1760, %v1764
    %v1767 = vshrl.u32 %v1508, 16
    %v1769 = vshll.u32 %v1508, 16
    %v1771 = vrot.slane %v1769, 1
    %v1772 = vor.u32 %v1767, %v1771
    %v1774 = vshll.u32 %v1668, 16
    %v1776 = vrot.slane %v1774, 1
    %v1777 = vsel %vm668, %v1772, %v1776
    %v1779 = vshrl.u32 %v1509, 16
    %v1781 = vshll.u32 %v1509, 16
    %v1783 = vrot.slane %v1781, 1
    %v1784 = vor.u32 %v1779, %v1783
    %v1786 = vshll.u32 %v1669, 16
    %v1788 = vrot.slane %v1786, 1
    %v1789 = vsel %vm668, %v1784, %v1788
    %v1791 = vshrl.u32 %v1510, 16
    %v1793 = vshll.u32 %v1510, 16
    %v1795 = vrot.slane %v1793, 1
    %v1796 = vor.u32 %v1791, %v1795
    %v1798 = vshll.u32 %v1670, 16
    %v1800 = vrot.slane %v1798, 1
    %v1801 = vsel %vm668, %v1796, %v1800
    %v1803 = vshrl.u32 %v1511, 16
    %v1805 = vshll.u32 %v1511, 16
    %v1807 = vrot.slane %v1805, 1
    %v1808 = vor.u32 %v1803, %v1807
    %v1810 = vshll.u32 %v1671, 16
    %v1812 = vrot.slane %v1810, 1
    %v1813 = vsel %vm668, %v1808, %v1812
    %v1815 = vshrl.u32 %v1512, 16
    %v1817 = vshll.u32 %v1512, 16
    %v1819 = vrot.slane %v1817, 1
    %v1820 = vor.u32 %v1815, %v1819
    %v1822 = vshll.u32 %v1672, 16
    %v1824 = vrot.slane %v1822, 1
    %v1825 = vsel %vm668, %v1820, %v1824
    %v1827 = vshrl.u32 %v1513, 16
    %v1829 = vshll.u32 %v1513, 16
    %v1831 = vrot.slane %v1829, 1
    %v1832 = vor.u32 %v1827, %v1831
    %v1834 = vshll.u32 %v1673, 16
    %v1836 = vrot.slane %v1834, 1
    %v1837 = vsel %vm668, %v1832, %v1836
    %v1839 = vshrl.u32 %v1514, 16
    %v1841 = vshll.u32 %v1514, 16
    %v1843 = vrot.slane %v1841, 1
    %v1844 = vor.u32 %v1839, %v1843
    %v1846 = vshll.u32 %v1674, 16
    %v1848 = vrot.slane %v1846, 1
    %v1849 = vsel %vm668, %v1844, %v1848
    %v1851 = vshrl.u32 %v1515, 16
    %v1853 = vshll.u32 %v1515, 16
    %v1855 = vrot.slane %v1853, 1
    %v1856 = vor.u32 %v1851, %v1855
    %v1858 = vshll.u32 %v1675, 16
    %v1860 = vrot.slane %v1858, 1
    %v1861 = vsel %vm668, %v1856, %v1860
    %v1863 = vshrl.u32 %v1516, 16
    %v1865 = vshll.u32 %v1516, 16
    %v1867 = vrot.slane %v1865, 1
    %v1868 = vor.u32 %v1863, %v1867
    %v1870 = vshll.u32 %v1676, 16
    %v1872 = vrot.slane %v1870, 1
    %v1873 = vsel %vm668, %v1868, %v1872
    %v1875 = vshrl.u32 %v1517, 16
    %v1877 = vshll.u32 %v1517, 16
    %v1879 = vrot.slane %v1877, 1
    %v1880 = vor.u32 %v1875, %v1879
    %v1882 = vshll.u32 %v1677, 16
    %v1884 = vrot.slane %v1882, 1
    %v1885 = vsel %vm668, %v1880, %v1884
    %v1887 = vshrl.u32 %v1518, 16
    %v1889 = vshll.u32 %v1518, 16
    %v1891 = vrot.slane %v1889, 1
    %v1892 = vor.u32 %v1887, %v1891
    %v1894 = vshll.u32 %v1678, 16
    %v1896 = vrot.slane %v1894, 1
    %v1897 = vsel %vm668, %v1892, %v1896
    %v1899 = vshrl.u32 %v1519, 16
    %v1901 = vshll.u32 %v1519, 16
    %v1903 = vrot.slane %v1901, 1
    %v1904 = vor.u32 %v1899, %v1903
    %v1906 = vshll.u32 %v1679, 16
    %v1908 = vrot.slane %v1906, 1
    %v1909 = vsel %vm668, %v1904, %v1908
    %v1911 = vshrl.u32 %v1520, 16
    %v1913 = vshll.u32 %v1520, 16
    %v1915 = vrot.slane %v1913, 1
    %v1916 = vor.u32 %v1911, %v1915
    %v1918 = vshll.u32 %v1680, 16
    %v1920 = vrot.slane %v1918, 1
    %v1921 = vsel %vm668, %v1916, %v1920
    %v1923 = vshrl.u32 %v1521, 16
    %v1925 = vshll.u32 %v1521, 16
    %v1927 = vrot.slane %v1925, 1
    %v1928 = vor.u32 %v1923, %v1927
    %v1930 = vshll.u32 %v1681, 16
    %v1932 = vrot.slane %v1930, 1
    %v1933 = vsel %vm668, %v1928, %v1932
    %v1935 = vshrl.u32 %v1522, 16
    %v1937 = vshll.u32 %v1522, 16
    %v1939 = vrot.slane %v1937, 1
    %v1940 = vor.u32 %v1935, %v1939
    %v1942 = vshll.u32 %v1682, 16
    %v1944 = vrot.slane %v1942, 1
    %v1945 = vsel %vm668, %v1940, %v1944
    %v1947 = vshrl.u32 %v1523, 16
    %v1949 = vshll.u32 %v1523, 16
    %v1951 = vrot.slane %v1949, 1
    %v1952 = vor.u32 %v1947, %v1951
    %v1954 = vshll.u32 %v1683, 16
    %v1956 = vrot.slane %v1954, 1
    %v1957 = vsel %vm668, %v1952, %v1956
    %v1959 = vshrl.u32 %v1524, 16
    %v1961 = vshll.u32 %v1524, 16
    %v1963 = vrot.slane %v1961, 1
    %v1964 = vor.u32 %v1959, %v1963
    %v1966 = vshll.u32 %v1684, 16
    %v1968 = vrot.slane %v1966, 1
    %v1969 = vsel %vm668, %v1964, %v1968
    %v1971 = vshrl.u32 %v1525, 16
    %v1973 = vshll.u32 %v1525, 16
    %v1975 = vrot.slane %v1973, 1
    %v1976 = vor.u32 %v1971, %v1975
    %v1978 = vshll.u32 %v1685, 16
    %v1980 = vrot.slane %v1978, 1
    %v1981 = vsel %vm668, %v1976, %v1980
    %v1983 = vshrl.u32 %v1526, 16
    %v1985 = vshll.u32 %v1526, 16
    %v1987 = vrot.slane %v1985, 1
    %v1988 = vor.u32 %v1983, %v1987
    %v1990 = vshll.u32 %v1686, 16
    %v1992 = vrot.slane %v1990, 1
    %v1993 = vsel %vm668, %v1988, %v1992
    %v1995 = vshrl.u32 %v1527, 16
    %v1997 = vshll.u32 %v1527, 16
    %v1999 = vrot.slane %v1997, 1
    %v2000 = vor.u32 %v1995, %v1999
    %v2002 = vshll.u32 %v1687, 16
    %v2004 = vrot.slane %v2002, 1
    %v2005 = vsel %vm668, %v2000, %v2004
    %v2007 = vshrl.u32 %v1528, 16
    %v2009 = vshll.u32 %v1528, 16
    %v2011 = vrot.slane %v2009, 1
    %v2012 = vor.u32 %v2007, %v2011
    %v2014 = vshll.u32 %v1688, 16
    %v2016 = vrot.slane %v2014, 1
    %v2017 = vsel %vm668, %v2012, %v2016
    %v2019 = vshrl.u32 %v1529, 16
    %v2021 = vshll.u32 %v1529, 16
    %v2023 = vrot.slane %v2021, 1
    %v2024 = vor.u32 %v2019, %v2023
    %v2026 = vshll.u32 %v1689, 16
    %v2028 = vrot.slane %v2026, 1
    %v2029 = vsel %vm668, %v2024, %v2028
    %v2031 = vshrl.u32 %v1530, 16
    %v2033 = vshll.u32 %v1530, 16
    %v2035 = vrot.slane %v2033, 1
    %v2036 = vor.u32 %v2031, %v2035
    %v2038 = vshll.u32 %v1690, 16
    %v2040 = vrot.slane %v2038, 1
    %v2041 = vsel %vm668, %v2036, %v2040
    %v2043 = vshrl.u32 %v1531, 16
    %v2045 = vshll.u32 %v1531, 16
    %v2047 = vrot.slane %v2045, 1
    %v2048 = vor.u32 %v2043, %v2047
    %v2050 = vshll.u32 %v1691, 16
    %v2052 = vrot.slane %v2050, 1
    %v2053 = vsel %vm668, %v2048, %v2052
    %v2055 = vshrl.u32 %v1532, 16
    %v2057 = vshll.u32 %v1532, 16
    %v2059 = vrot.slane %v2057, 1
    %v2060 = vor.u32 %v2055, %v2059
    %v2062 = vshll.u32 %v1692, 16
    %v2064 = vrot.slane %v2062, 1
    %v2065 = vsel %vm668, %v2060, %v2064
    %v2067 = vshrl.u32 %v1533, 16
    %v2069 = vshll.u32 %v1533, 16
    %v2071 = vrot.slane %v2069, 1
    %v2072 = vor.u32 %v2067, %v2071
    %v2074 = vshll.u32 %v1693, 16
    %v2076 = vrot.slane %v2074, 1
    %v2077 = vsel %vm668, %v2072, %v2076
    %2078 = vrot.lane.b32.xlu0 %v1705, 16
    %v2079 = vpop.permute.xlu0 %2078
    %2080 = vrot.lane.b32.xlu0 %v1717, 16
    %v2081 = vpop.permute.xlu0 %2080
    %2082 = vrot.lane.b32.xlu0 %v1729, 16
    %v2083 = vpop.permute.xlu0 %2082
    %2084 = vrot.lane.b32.xlu0 %v1741, 16
    %v2085 = vpop.permute.xlu0 %2084
    %2086 = vrot.lane.b32.xlu0 %v1753, 16
    %v2087 = vpop.permute.xlu0 %2086
    %2088 = vrot.lane.b32.xlu0 %v1765, 16
    %v2089 = vpop.permute.xlu0 %2088
    %2090 = vrot.lane.b32.xlu0 %v1777, 16
    %v2091 = vpop.permute.xlu0 %2090
    %2092 = vrot.lane.b32.xlu0 %v1789, 16
    %v2093 = vpop.permute.xlu0 %2092
    %2094 = vrot.lane.b32.xlu0 %v1801, 16
    %v2095 = vpop.permute.xlu0 %2094
    %2096 = vrot.lane.b32.xlu0 %v1813, 16
    %v2097 = vpop.permute.xlu0 %2096
    %2098 = vrot.lane.b32.xlu0 %v1825, 16
    %v2099 = vpop.permute.xlu0 %2098
    %2100 = vrot.lane.b32.xlu0 %v1837, 16
    %v2101 = vpop.permute.xlu0 %2100
    %2102 = vrot.lane.b32.xlu0 %v1849, 16
    %v2103 = vpop.permute.xlu0 %2102
    %2104 = vrot.lane.b32.xlu0 %v1861, 16
    %v2105 = vpop.permute.xlu0 %2104
    %2106 = vrot.lane.b32.xlu0 %v1873, 16
    %v2107 = vpop.permute.xlu0 %2106
    %2108 = vrot.lane.b32.xlu0 %v1885, 16
    %v2109 = vpop.permute.xlu0 %2108
    %2110 = vrot.lane.b32.xlu0 %v1897, 16
    %v2111 = vpop.permute.xlu0 %2110
    %2112 = vrot.lane.b32.xlu0 %v1909, 16
    %v2113 = vpop.permute.xlu0 %2112
    %2114 = vrot.lane.b32.xlu0 %v1921, 16
    %v2115 = vpop.permute.xlu0 %2114
    %2116 = vrot.lane.b32.xlu0 %v1933, 16
    %v2117 = vpop.permute.xlu0 %2116
    %2118 = vrot.lane.b32.xlu0 %v1945, 16
    %v2119 = vpop.permute.xlu0 %2118
    %2120 = vrot.lane.b32.xlu0 %v1957, 16
    %v2121 = vpop.permute.xlu0 %2120
    %2122 = vrot.lane.b32.xlu0 %v1969, 16
    %v2123 = vpop.permute.xlu0 %2122
    %2124 = vrot.lane.b32.xlu0 %v1981, 16
    %v2125 = vpop.permute.xlu0 %2124
    %2126 = vrot.lane.b32.xlu0 %v1993, 16
    %v2127 = vpop.permute.xlu0 %2126
    %2128 = vrot.lane.b32.xlu0 %v2005, 16
    %v2129 = vpop.permute.xlu0 %2128
    %2130 = vrot.lane.b32.xlu0 %v2017, 16
    %v2131 = vpop.permute.xlu0 %2130
    %2132 = vrot.lane.b32.xlu0 %v2029, 16
    %v2133 = vpop.permute.xlu0 %2132
    %2134 = vrot.lane.b32.xlu0 %v2041, 16
    %v2135 = vpop.permute.xlu0 %2134
    %2136 = vrot.lane.b32.xlu0 %v2053, 16
    %v2137 = vpop.permute.xlu0 %2136
    %2138 = vrot.lane.b32.xlu0 %v2065, 16
    %v2139 = vpop.permute.xlu0 %2138
    %2140 = vrot.lane.b32.xlu0 %v2077, 16
    %v2141 = vpop.permute.xlu0 %2140
    %v2174 = vunpack.c.l.b16 %v248
    %v2175 = vunpack.c.l.b16 %v249
    %v2176 = vunpack.c.l.b16 %v250
    %v2177 = vunpack.c.l.b16 %v251
    %v2178 = vunpack.c.l.b16 %v252
    %v2179 = vunpack.c.l.b16 %v253
    %v2180 = vunpack.c.l.b16 %v254
    %v2181 = vunpack.c.l.b16 %v255
    %v2182 = vunpack.c.l.b16 %v256
    %v2183 = vunpack.c.l.b16 %v257
    %v2184 = vunpack.c.l.b16 %v258
    %v2185 = vunpack.c.l.b16 %v259
    %v2186 = vunpack.c.l.b16 %v260
    %v2187 = vunpack.c.l.b16 %v261
    %v2188 = vunpack.c.l.b16 %v262
    %v2189 = vunpack.c.l.b16 %v263
    %v2190 = vunpack.c.l.b16 %v264
    %v2191 = vunpack.c.l.b16 %v265
    %v2192 = vunpack.c.l.b16 %v266
    %v2193 = vunpack.c.l.b16 %v267
    %v2194 = vunpack.c.l.b16 %v268
    %v2195 = vunpack.c.l.b16 %v269
    %v2196 = vunpack.c.l.b16 %v270
    %v2197 = vunpack.c.l.b16 %v271
    %v2198 = vunpack.c.l.b16 %v272
    %v2199 = vunpack.c.l.b16 %v273
    %v2200 = vunpack.c.l.b16 %v274
    %v2201 = vunpack.c.l.b16 %v275
    %v2202 = vunpack.c.l.b16 %v276
    %v2203 = vunpack.c.l.b16 %v277
    %v2204 = vunpack.c.l.b16 %v278
    %v2205 = vunpack.c.l.b16 %v279
    %v2206 = vpack.c.b16 %v1439, %v2174
    %v2207 = vpack.c.b16 %v1441, %v2175
    %v2208 = vpack.c.b16 %v1443, %v2176
    %v2209 = vpack.c.b16 %v1445, %v2177
    %v2210 = vpack.c.b16 %v1447, %v2178
    %v2211 = vpack.c.b16 %v1449, %v2179
    %v2212 = vpack.c.b16 %v1451, %v2180
    %v2213 = vpack.c.b16 %v1453, %v2181
    %v2214 = vpack.c.b16 %v1455, %v2182
    %v2215 = vpack.c.b16 %v1457, %v2183
    %v2216 = vpack.c.b16 %v1459, %v2184
    %v2217 = vpack.c.b16 %v1461, %v2185
    %v2218 = vpack.c.b16 %v1463, %v2186
    %v2219 = vpack.c.b16 %v1465, %v2187
    %v2220 = vpack.c.b16 %v1467, %v2188
    %v2221 = vpack.c.b16 %v1469, %v2189
    %v2222 = vpack.c.b16 %v1471, %v2190
    %v2223 = vpack.c.b16 %v1473, %v2191
    %v2224 = vpack.c.b16 %v1475, %v2192
    %v2225 = vpack.c.b16 %v1477, %v2193
    %v2226 = vpack.c.b16 %v1479, %v2194
    %v2227 = vpack.c.b16 %v1481, %v2195
    %v2228 = vpack.c.b16 %v1483, %v2196
    %v2229 = vpack.c.b16 %v1485, %v2197
    %v2230 = vpack.c.b16 %v1487, %v2198
    %v2231 = vpack.c.b16 %v1489, %v2199
    %v2232 = vpack.c.b16 %v1491, %v2200
    %v2233 = vpack.c.b16 %v1493, %v2201
    %v2234 = vpack.c.b16 %v1495, %v2202
    %v2235 = vpack.c.b16 %v1497, %v2203
    %v2236 = vpack.c.b16 %v1499, %v2204
    %v2237 = vpack.c.b16 %v1501, %v2205
    %v2238 = vrot.slane %v2206, 1
    %v2239 = vrot.slane %v1662, 1
    %v2240 = vsel %vm1213, %v2238, %v2239
    %v2241 = vrot.slane %v2207, 1
    %v2242 = vrot.slane %v1663, 1
    %v2243 = vsel %vm1213, %v2241, %v2242
    %v2244 = vrot.slane %v2208, 1
    %v2245 = vrot.slane %v1664, 1
    %v2246 = vsel %vm1213, %v2244, %v2245
    %v2247 = vrot.slane %v2209, 1
    %v2248 = vrot.slane %v1665, 1
    %v2249 = vsel %vm1213, %v2247, %v2248
    %v2250 = vrot.slane %v2210, 1
    %v2251 = vrot.slane %v1666, 1
    %v2252 = vsel %vm1213, %v2250, %v2251
    %v2253 = vrot.slane %v2211, 1
    %v2254 = vrot.slane %v1667, 1
    %v2255 = vsel %vm1213, %v2253, %v2254
    %v2256 = vrot.slane %v2212, 1
    %v2257 = vrot.slane %v1668, 1
    %v2258 = vsel %vm1213, %v2256, %v2257
    %v2259 = vrot.slane %v2213, 1
    %v2260 = vrot.slane %v1669, 1
    %v2261 = vsel %vm1213, %v2259, %v2260
    %v2262 = vrot.slane %v2214, 1
    %v2263 = vrot.slane %v1670, 1
    %v2264 = vsel %vm1213, %v2262, %v2263
    %v2265 = vrot.slane %v2215, 1
    %v2266 = vrot.slane %v1671, 1
    %v2267 = vsel %vm1213, %v2265, %v2266
    %v2268 = vrot.slane %v2216, 1
    %v2269 = vrot.slane %v1672, 1
    %v2270 = vsel %vm1213, %v2268, %v2269
    %v2271 = vrot.slane %v2217, 1
    %v2272 = vrot.slane %v1673, 1
    %v2273 = vsel %vm1213, %v2271, %v2272
    %v2274 = vrot.slane %v2218, 1
    %v2275 = vrot.slane %v1674, 1
    %v2276 = vsel %vm1213, %v2274, %v2275
    %v2277 = vrot.slane %v2219, 1
    %v2278 = vrot.slane %v1675, 1
    %v2279 = vsel %vm1213, %v2277, %v2278
    %v2280 = vrot.slane %v2220, 1
    %v2281 = vrot.slane %v1676, 1
    %v2282 = vsel %vm1213, %v2280, %v2281
    %v2283 = vrot.slane %v2221, 1
    %v2284 = vrot.slane %v1677, 1
    %v2285 = vsel %vm1213, %v2283, %v2284
    %v2286 = vrot.slane %v2222, 1
    %v2287 = vrot.slane %v1678, 1
    %v2288 = vsel %vm1213, %v2286, %v2287
    %v2289 = vrot.slane %v2223, 1
    %v2290 = vrot.slane %v1679, 1
    %v2291 = vsel %vm1213, %v2289, %v2290
    %v2292 = vrot.slane %v2224, 1
    %v2293 = vrot.slane %v1680, 1
    %v2294 = vsel %vm1213, %v2292, %v2293
    %v2295 = vrot.slane %v2225, 1
    %v2296 = vrot.slane %v1681, 1
    %v2297 = vsel %vm1213, %v2295, %v2296
    %v2298 = vrot.slane %v2226, 1
    %v2299 = vrot.slane %v1682, 1
    %v2300 = vsel %vm1213, %v2298, %v2299
    %v2301 = vrot.slane %v2227, 1
    %v2302 = vrot.slane %v1683, 1
    %v2303 = vsel %vm1213, %v2301, %v2302
    %v2304 = vrot.slane %v2228, 1
    %v2305 = vrot.slane %v1684, 1
    %v2306 = vsel %vm1213, %v2304, %v2305
    %v2307 = vrot.slane %v2229, 1
    %v2308 = vrot.slane %v1685, 1
    %v2309 = vsel %vm1213, %v2307, %v2308
    %v2310 = vrot.slane %v2230, 1
    %v2311 = vrot.slane %v1686, 1
    %v2312 = vsel %vm1213, %v2310, %v2311
    %v2313 = vrot.slane %v2231, 1
    %v2314 = vrot.slane %v1687, 1
    %v2315 = vsel %vm1213, %v2313, %v2314
    %v2316 = vrot.slane %v2232, 1
    %v2317 = vrot.slane %v1688, 1
    %v2318 = vsel %vm1213, %v2316, %v2317
    %v2319 = vrot.slane %v2233, 1
    %v2320 = vrot.slane %v1689, 1
    %v2321 = vsel %vm1213, %v2319, %v2320
    %v2322 = vrot.slane %v2234, 1
    %v2323 = vrot.slane %v1690, 1
    %v2324 = vsel %vm1213, %v2322, %v2323
    %v2325 = vrot.slane %v2235, 1
    %v2326 = vrot.slane %v1691, 1
    %v2327 = vsel %vm1213, %v2325, %v2326
    %v2328 = vrot.slane %v2236, 1
    %v2329 = vrot.slane %v1692, 1
    %v2330 = vsel %vm1213, %v2328, %v2329
    %v2331 = vrot.slane %v2237, 1
    %v2332 = vrot.slane %v1693, 1
    %v2333 = vsel %vm1213, %v2331, %v2332
    %2334 = vrot.lane.b32.xlu0 %v2240, 20
    %v2335 = vpop.permute.xlu0 %2334
    %2336 = vrot.lane.b32.xlu0 %v2243, 20
    %v2337 = vpop.permute.xlu0 %2336
    %2338 = vrot.lane.b32.xlu0 %v2246, 20
    %v2339 = vpop.permute.xlu0 %2338
    %2340 = vrot.lane.b32.xlu0 %v2249, 20
    %v2341 = vpop.permute.xlu0 %2340
    %2342 = vrot.lane.b32.xlu0 %v2252, 20
    %v2343 = vpop.permute.xlu0 %2342
    %2344 = vrot.lane.b32.xlu0 %v2255, 20
    %v2345 = vpop.permute.xlu0 %2344
    %2346 = vrot.lane.b32.xlu0 %v2258, 20
    %v2347 = vpop.permute.xlu0 %2346
    %2348 = vrot.lane.b32.xlu0 %v2261, 20
    %v2349 = vpop.permute.xlu0 %2348
    %2350 = vrot.lane.b32.xlu0 %v2264, 20
    %v2351 = vpop.permute.xlu0 %2350
    %2352 = vrot.lane.b32.xlu0 %v2267, 20
    %v2353 = vpop.permute.xlu0 %2352
    %2354 = vrot.lane.b32.xlu0 %v2270, 20
    %v2355 = vpop.permute.xlu0 %2354
    %2356 = vrot.lane.b32.xlu0 %v2273, 20
    %v2357 = vpop.permute.xlu0 %2356
    %2358 = vrot.lane.b32.xlu0 %v2276, 20
    %v2359 = vpop.permute.xlu0 %2358
    %2360 = vrot.lane.b32.xlu0 %v2279, 20
    %v2361 = vpop.permute.xlu0 %2360
    %2362 = vrot.lane.b32.xlu0 %v2282, 20
    %v2363 = vpop.permute.xlu0 %2362
    %2364 = vrot.lane.b32.xlu0 %v2285, 20
    %v2365 = vpop.permute.xlu0 %2364
    %2366 = vrot.lane.b32.xlu0 %v2288, 20
    %v2367 = vpop.permute.xlu0 %2366
    %2368 = vrot.lane.b32.xlu0 %v2291, 20
    %v2369 = vpop.permute.xlu0 %2368
    %2370 = vrot.lane.b32.xlu0 %v2294, 20
    %v2371 = vpop.permute.xlu0 %2370
    %2372 = vrot.lane.b32.xlu0 %v2297, 20
    %v2373 = vpop.permute.xlu0 %2372
    %2374 = vrot.lane.b32.xlu0 %v2300, 20
    %v2375 = vpop.permute.xlu0 %2374
    %2376 = vrot.lane.b32.xlu0 %v2303, 20
    %v2377 = vpop.permute.xlu0 %2376
    %2378 = vrot.lane.b32.xlu0 %v2306, 20
    %v2379 = vpop.permute.xlu0 %2378
    %2380 = vrot.lane.b32.xlu0 %v2309, 20
    %v2381 = vpop.permute.xlu0 %2380
    %2382 = vrot.lane.b32.xlu0 %v2312, 20
    %v2383 = vpop.permute.xlu0 %2382
    %2384 = vrot.lane.b32.xlu0 %v2315, 20
    %v2385 = vpop.permute.xlu0 %2384
    %2386 = vrot.lane.b32.xlu0 %v2318, 20
    %v2387 = vpop.permute.xlu0 %2386
    %2388 = vrot.lane.b32.xlu0 %v2321, 20
    %v2389 = vpop.permute.xlu0 %2388
    %2390 = vrot.lane.b32.xlu0 %v2324, 20
    %v2391 = vpop.permute.xlu0 %2390
    %2392 = vrot.lane.b32.xlu0 %v2327, 20
    %v2393 = vpop.permute.xlu0 %2392
    %2394 = vrot.lane.b32.xlu0 %v2330, 20
    %v2395 = vpop.permute.xlu0 %2394
    %2396 = vrot.lane.b32.xlu0 %v2333, 20
    %v2397 = vpop.permute.xlu0 %2396
    %v2462 = vunpack.c.l.b16 %v284
    %v2463 = vunpack.c.l.b16 %v285
    %v2464 = vunpack.c.l.b16 %v286
    %v2465 = vunpack.c.l.b16 %v287
    %v2466 = vunpack.c.l.b16 %v288
    %v2467 = vunpack.c.l.b16 %v289
    %v2468 = vunpack.c.l.b16 %v290
    %v2469 = vunpack.c.l.b16 %v291
    %v2470 = vunpack.c.l.b16 %v292
    %v2471 = vunpack.c.l.b16 %v293
    %v2472 = vunpack.c.l.b16 %v294
    %v2473 = vunpack.c.l.b16 %v295
    %v2474 = vunpack.c.l.b16 %v296
    %v2475 = vunpack.c.l.b16 %v297
    %v2476 = vunpack.c.l.b16 %v298
    %v2477 = vunpack.c.l.b16 %v299
    %v2478 = vunpack.c.l.b16 %v300
    %v2479 = vunpack.c.l.b16 %v301
    %v2480 = vunpack.c.l.b16 %v302
    %v2481 = vunpack.c.l.b16 %v303
    %v2482 = vunpack.c.l.b16 %v304
    %v2483 = vunpack.c.l.b16 %v305
    %v2484 = vunpack.c.l.b16 %v306
    %v2485 = vunpack.c.l.b16 %v307
    %v2486 = vunpack.c.l.b16 %v308
    %v2487 = vunpack.c.l.b16 %v309
    %v2488 = vunpack.c.l.b16 %v310
    %v2489 = vunpack.c.l.b16 %v311
    %v2490 = vunpack.c.l.b16 %v312
    %v2491 = vunpack.c.l.b16 %v313
    %v2492 = vunpack.c.l.b16 %v314
    %v2493 = vunpack.c.l.b16 %v315
    %v2494 = vunpack.c.l.b16 %v316
    %v2495 = vunpack.c.l.b16 %v317
    %v2496 = vunpack.c.l.b16 %v318
    %v2497 = vunpack.c.l.b16 %v319
    %v2498 = vunpack.c.l.b16 %v320
    %v2499 = vunpack.c.l.b16 %v321
    %v2500 = vunpack.c.l.b16 %v322
    %v2501 = vunpack.c.l.b16 %v323
    %v2502 = vunpack.c.l.b16 %v324
    %v2503 = vunpack.c.l.b16 %v325
    %v2504 = vunpack.c.l.b16 %v326
    %v2505 = vunpack.c.l.b16 %v327
    %v2506 = vunpack.c.l.b16 %v328
    %v2507 = vunpack.c.l.b16 %v329
    %v2508 = vunpack.c.l.b16 %v330
    %v2509 = vunpack.c.l.b16 %v331
    %v2510 = vunpack.c.l.b16 %v332
    %v2511 = vunpack.c.l.b16 %v333
    %v2512 = vunpack.c.l.b16 %v334
    %v2513 = vunpack.c.l.b16 %v335
    %v2514 = vunpack.c.l.b16 %v336
    %v2515 = vunpack.c.l.b16 %v337
    %v2516 = vunpack.c.l.b16 %v338
    %v2517 = vunpack.c.l.b16 %v339
    %v2518 = vunpack.c.l.b16 %v340
    %v2519 = vunpack.c.l.b16 %v341
    %v2520 = vunpack.c.l.b16 %v342
    %v2521 = vunpack.c.l.b16 %v343
    %v2522 = vunpack.c.l.b16 %v344
    %v2523 = vunpack.c.l.b16 %v345
    %v2524 = vunpack.c.l.b16 %v346
    %v2525 = vunpack.c.l.b16 %v347
    %v2526 = vpack.c.b16 %v2463, %v2462
    %v2527 = vpack.c.b16 %v2465, %v2464
    %v2528 = vpack.c.b16 %v2467, %v2466
    %v2529 = vpack.c.b16 %v2469, %v2468
    %v2530 = vpack.c.b16 %v2471, %v2470
    %v2531 = vpack.c.b16 %v2473, %v2472
    %v2532 = vpack.c.b16 %v2475, %v2474
    %v2533 = vpack.c.b16 %v2477, %v2476
    %v2534 = vpack.c.b16 %v2479, %v2478
    %v2535 = vpack.c.b16 %v2481, %v2480
    %v2536 = vpack.c.b16 %v2483, %v2482
    %v2537 = vpack.c.b16 %v2485, %v2484
    %v2538 = vpack.c.b16 %v2487, %v2486
    %v2539 = vpack.c.b16 %v2489, %v2488
    %v2540 = vpack.c.b16 %v2491, %v2490
    %v2541 = vpack.c.b16 %v2493, %v2492
    %v2542 = vpack.c.b16 %v2495, %v2494
    %v2543 = vpack.c.b16 %v2497, %v2496
    %v2544 = vpack.c.b16 %v2499, %v2498
    %v2545 = vpack.c.b16 %v2501, %v2500
    %v2546 = vpack.c.b16 %v2503, %v2502
    %v2547 = vpack.c.b16 %v2505, %v2504
    %v2548 = vpack.c.b16 %v2507, %v2506
    %v2549 = vpack.c.b16 %v2509, %v2508
    %v2550 = vpack.c.b16 %v2511, %v2510
    %v2551 = vpack.c.b16 %v2513, %v2512
    %v2552 = vpack.c.b16 %v2515, %v2514
    %v2553 = vpack.c.b16 %v2517, %v2516
    %v2554 = vpack.c.b16 %v2519, %v2518
    %v2555 = vpack.c.b16 %v2521, %v2520
    %v2556 = vpack.c.b16 %v2523, %v2522
    %v2557 = vpack.c.b16 %v2525, %v2524
    %2558 = vrot.lane.b32.xlu0 %v2526, 24
    %v2559 = vpop.permute.xlu0 %2558
    %2560 = vrot.lane.b32.xlu0 %v2527, 24
    %v2561 = vpop.permute.xlu0 %2560
    %2562 = vrot.lane.b32.xlu0 %v2528, 24
    %v2563 = vpop.permute.xlu0 %2562
    %2564 = vrot.lane.b32.xlu0 %v2529, 24
    %v2565 = vpop.permute.xlu0 %2564
    %2566 = vrot.lane.b32.xlu0 %v2530, 24
    %v2567 = vpop.permute.xlu0 %2566
    %2568 = vrot.lane.b32.xlu0 %v2531, 24
    %v2569 = vpop.permute.xlu0 %2568
    %2570 = vrot.lane.b32.xlu0 %v2532, 24
    %v2571 = vpop.permute.xlu0 %2570
    %2572 = vrot.lane.b32.xlu0 %v2533, 24
    %v2573 = vpop.permute.xlu0 %2572
    %2574 = vrot.lane.b32.xlu0 %v2534, 24
    %v2575 = vpop.permute.xlu0 %2574
    %2576 = vrot.lane.b32.xlu0 %v2535, 24
    %v2577 = vpop.permute.xlu0 %2576
    %2578 = vrot.lane.b32.xlu0 %v2536, 24
    %v2579 = vpop.permute.xlu0 %2578
    %2580 = vrot.lane.b32.xlu0 %v2537, 24
    %v2581 = vpop.permute.xlu0 %2580
    %2582 = vrot.lane.b32.xlu0 %v2538, 24
    %v2583 = vpop.permute.xlu0 %2582
    %2584 = vrot.lane.b32.xlu0 %v2539, 24
    %v2585 = vpop.permute.xlu0 %2584
    %2586 = vrot.lane.b32.xlu0 %v2540, 24
    %v2587 = vpop.permute.xlu0 %2586
    %2588 = vrot.lane.b32.xlu0 %v2541, 24
    %v2589 = vpop.permute.xlu0 %2588
    %2590 = vrot.lane.b32.xlu0 %v2542, 24
    %v2591 = vpop.permute.xlu0 %2590
    %2592 = vrot.lane.b32.xlu0 %v2543, 24
    %v2593 = vpop.permute.xlu0 %2592
    %2594 = vrot.lane.b32.xlu0 %v2544, 24
    %v2595 = vpop.permute.xlu0 %2594
    %2596 = vrot.lane.b32.xlu0 %v2545, 24
    %v2597 = vpop.permute.xlu0 %2596
    %2598 = vrot.lane.b32.xlu0 %v2546, 24
    %v2599 = vpop.permute.xlu0 %2598
    %2600 = vrot.lane.b32.xlu0 %v2547, 24
    %v2601 = vpop.permute.xlu0 %2600
    %2602 = vrot.lane.b32.xlu0 %v2548, 24
    %v2603 = vpop.permute.xlu0 %2602
    %2604 = vrot.lane.b32.xlu0 %v2549, 24
    %v2605 = vpop.permute.xlu0 %2604
    %2606 = vrot.lane.b32.xlu0 %v2550, 24
    %v2607 = vpop.permute.xlu0 %2606
    %2608 = vrot.lane.b32.xlu0 %v2551, 24
    %v2609 = vpop.permute.xlu0 %2608
    %2610 = vrot.lane.b32.xlu0 %v2552, 24
    %v2611 = vpop.permute.xlu0 %2610
    %2612 = vrot.lane.b32.xlu0 %v2553, 24
    %v2613 = vpop.permute.xlu0 %2612
    %2614 = vrot.lane.b32.xlu0 %v2554, 24
    %v2615 = vpop.permute.xlu0 %2614
    %2616 = vrot.lane.b32.xlu0 %v2555, 24
    %v2617 = vpop.permute.xlu0 %2616
    %2618 = vrot.lane.b32.xlu0 %v2556, 24
    %v2619 = vpop.permute.xlu0 %2618
    %2620 = vrot.lane.b32.xlu0 %v2557, 24
    %v2621 = vpop.permute.xlu0 %2620
    %v2654 = vunpack.c.l.b16 %v348
    %v2655 = vunpack.c.l.b16 %v349
    %v2656 = vunpack.c.l.b16 %v350
    %v2657 = vunpack.c.l.b16 %v351
    %v2658 = vunpack.c.l.b16 %v352
    %v2659 = vunpack.c.l.b16 %v353
    %v2660 = vunpack.c.l.b16 %v354
    %v2661 = vunpack.c.l.b16 %v355
    %v2662 = vunpack.c.l.b16 %v356
    %v2663 = vunpack.c.l.b16 %v357
    %v2664 = vunpack.c.l.b16 %v358
    %v2665 = vunpack.c.l.b16 %v359
    %v2666 = vunpack.c.l.b16 %v360
    %v2667 = vunpack.c.l.b16 %v361
    %v2668 = vunpack.c.l.b16 %v362
    %v2669 = vunpack.c.l.b16 %v363
    %v2670 = vunpack.c.l.b16 %v364
    %v2671 = vunpack.c.l.b16 %v365
    %v2672 = vunpack.c.l.b16 %v366
    %v2673 = vunpack.c.l.b16 %v367
    %v2674 = vunpack.c.l.b16 %v368
    %v2675 = vunpack.c.l.b16 %v369
    %v2676 = vunpack.c.l.b16 %v370
    %v2677 = vunpack.c.l.b16 %v371
    %v2678 = vunpack.c.l.b16 %v372
    %v2679 = vunpack.c.l.b16 %v373
    %v2680 = vunpack.c.l.b16 %v374
    %v2681 = vunpack.c.l.b16 %v375
    %v2682 = vunpack.c.l.b16 %v376
    %v2683 = vunpack.c.l.b16 %v377
    %v2684 = vunpack.c.l.b16 %v378
    %v2685 = vunpack.c.l.b16 %v379
    %v2686 = vpack.c.b16 %v2654, %v2654
    %v2687 = vpack.c.b16 %v2655, %v2655
    %v2688 = vpack.c.b16 %v2656, %v2656
    %v2689 = vpack.c.b16 %v2657, %v2657
    %v2690 = vpack.c.b16 %v2658, %v2658
    %v2691 = vpack.c.b16 %v2659, %v2659
    %v2692 = vpack.c.b16 %v2660, %v2660
    %v2693 = vpack.c.b16 %v2661, %v2661
    %v2694 = vpack.c.b16 %v2662, %v2662
    %v2695 = vpack.c.b16 %v2663, %v2663
    %v2696 = vpack.c.b16 %v2664, %v2664
    %v2697 = vpack.c.b16 %v2665, %v2665
    %v2698 = vpack.c.b16 %v2666, %v2666
    %v2699 = vpack.c.b16 %v2667, %v2667
    %v2700 = vpack.c.b16 %v2668, %v2668
    %v2701 = vpack.c.b16 %v2669, %v2669
    %v2702 = vpack.c.b16 %v2670, %v2670
    %v2703 = vpack.c.b16 %v2671, %v2671
    %v2704 = vpack.c.b16 %v2672, %v2672
    %v2705 = vpack.c.b16 %v2673, %v2673
    %v2706 = vpack.c.b16 %v2674, %v2674
    %v2707 = vpack.c.b16 %v2675, %v2675
    %v2708 = vpack.c.b16 %v2676, %v2676
    %v2709 = vpack.c.b16 %v2677, %v2677
    %v2710 = vpack.c.b16 %v2678, %v2678
    %v2711 = vpack.c.b16 %v2679, %v2679
    %v2712 = vpack.c.b16 %v2680, %v2680
    %v2713 = vpack.c.b16 %v2681, %v2681
    %v2714 = vpack.c.b16 %v2682, %v2682
    %v2715 = vpack.c.b16 %v2683, %v2683
    %v2716 = vpack.c.b16 %v2684, %v2684
    %v2717 = vpack.c.b16 %v2685, %v2685
    %v2719 = vshrl.u32 %v2526, 16
    %v2721 = vshll.u32 %v2526, 16
    %v2723 = vrot.slane %v2721, 1
    %v2724 = vor.u32 %v2719, %v2723
    %v2726 = vshll.u32 %v2686, 16
    %v2728 = vrot.slane %v2726, 1
    %v2729 = vsel %vm668, %v2724, %v2728
    %v2731 = vshrl.u32 %v2527, 16
    %v2733 = vshll.u32 %v2527, 16
    %v2735 = vrot.slane %v2733, 1
    %v2736 = vor.u32 %v2731, %v2735
    %v2738 = vshll.u32 %v2687, 16
    %v2740 = vrot.slane %v2738, 1
    %v2741 = vsel %vm668, %v2736, %v2740
    %v2743 = vshrl.u32 %v2528, 16
    %v2745 = vshll.u32 %v2528, 16
    %v2747 = vrot.slane %v2745, 1
    %v2748 = vor.u32 %v2743, %v2747
    %v2750 = vshll.u32 %v2688, 16
    %v2752 = vrot.slane %v2750, 1
    %v2753 = vsel %vm668, %v2748, %v2752
    %v2755 = vshrl.u32 %v2529, 16
    %v2757 = vshll.u32 %v2529, 16
    %v2759 = vrot.slane %v2757, 1
    %v2760 = vor.u32 %v2755, %v2759
    %v2762 = vshll.u32 %v2689, 16
    %v2764 = vrot.slane %v2762, 1
    %v2765 = vsel %vm668, %v2760, %v2764
    %v2767 = vshrl.u32 %v2530, 16
    %v2769 = vshll.u32 %v2530, 16
    %v2771 = vrot.slane %v2769, 1
    %v2772 = vor.u32 %v2767, %v2771
    %v2774 = vshll.u32 %v2690, 16
    %v2776 = vrot.slane %v2774, 1
    %v2777 = vsel %vm668, %v2772, %v2776
    %v2779 = vshrl.u32 %v2531, 16
    %v2781 = vshll.u32 %v2531, 16
    %v2783 = vrot.slane %v2781, 1
    %v2784 = vor.u32 %v2779, %v2783
    %v2786 = vshll.u32 %v2691, 16
    %v2788 = vrot.slane %v2786, 1
    %v2789 = vsel %vm668, %v2784, %v2788
    %v2791 = vshrl.u32 %v2532, 16
    %v2793 = vshll.u32 %v2532, 16
    %v2795 = vrot.slane %v2793, 1
    %v2796 = vor.u32 %v2791, %v2795
    %v2798 = vshll.u32 %v2692, 16
    %v2800 = vrot.slane %v2798, 1
    %v2801 = vsel %vm668, %v2796, %v2800
    %v2803 = vshrl.u32 %v2533, 16
    %v2805 = vshll.u32 %v2533, 16
    %v2807 = vrot.slane %v2805, 1
    %v2808 = vor.u32 %v2803, %v2807
    %v2810 = vshll.u32 %v2693, 16
    %v2812 = vrot.slane %v2810, 1
    %v2813 = vsel %vm668, %v2808, %v2812
    %v2815 = vshrl.u32 %v2534, 16
    %v2817 = vshll.u32 %v2534, 16
    %v2819 = vrot.slane %v2817, 1
    %v2820 = vor.u32 %v2815, %v2819
    %v2822 = vshll.u32 %v2694, 16
    %v2824 = vrot.slane %v2822, 1
    %v2825 = vsel %vm668, %v2820, %v2824
    %v2827 = vshrl.u32 %v2535, 16
    %v2829 = vshll.u32 %v2535, 16
    %v2831 = vrot.slane %v2829, 1
    %v2832 = vor.u32 %v2827, %v2831
    %v2834 = vshll.u32 %v2695, 16
    %v2836 = vrot.slane %v2834, 1
    %v2837 = vsel %vm668, %v2832, %v2836
    %v2839 = vshrl.u32 %v2536, 16
    %v2841 = vshll.u32 %v2536, 16
    %v2843 = vrot.slane %v2841, 1
    %v2844 = vor.u32 %v2839, %v2843
    %v2846 = vshll.u32 %v2696, 16
    %v2848 = vrot.slane %v2846, 1
    %v2849 = vsel %vm668, %v2844, %v2848
    %v2851 = vshrl.u32 %v2537, 16
    %v2853 = vshll.u32 %v2537, 16
    %v2855 = vrot.slane %v2853, 1
    %v2856 = vor.u32 %v2851, %v2855
    %v2858 = vshll.u32 %v2697, 16
    %v2860 = vrot.slane %v2858, 1
    %v2861 = vsel %vm668, %v2856, %v2860
    %v2863 = vshrl.u32 %v2538, 16
    %v2865 = vshll.u32 %v2538, 16
    %v2867 = vrot.slane %v2865, 1
    %v2868 = vor.u32 %v2863, %v2867
    %v2870 = vshll.u32 %v2698, 16
    %v2872 = vrot.slane %v2870, 1
    %v2873 = vsel %vm668, %v2868, %v2872
    %v2875 = vshrl.u32 %v2539, 16
    %v2877 = vshll.u32 %v2539, 16
    %v2879 = vrot.slane %v2877, 1
    %v2880 = vor.u32 %v2875, %v2879
    %v2882 = vshll.u32 %v2699, 16
    %v2884 = vrot.slane %v2882, 1
    %v2885 = vsel %vm668, %v2880, %v2884
    %v2887 = vshrl.u32 %v2540, 16
    %v2889 = vshll.u32 %v2540, 16
    %v2891 = vrot.slane %v2889, 1
    %v2892 = vor.u32 %v2887, %v2891
    %v2894 = vshll.u32 %v2700, 16
    %v2896 = vrot.slane %v2894, 1
    %v2897 = vsel %vm668, %v2892, %v2896
    %v2899 = vshrl.u32 %v2541, 16
    %v2901 = vshll.u32 %v2541, 16
    %v2903 = vrot.slane %v2901, 1
    %v2904 = vor.u32 %v2899, %v2903
    %v2906 = vshll.u32 %v2701, 16
    %v2908 = vrot.slane %v2906, 1
    %v2909 = vsel %vm668, %v2904, %v2908
    %v2911 = vshrl.u32 %v2542, 16
    %v2913 = vshll.u32 %v2542, 16
    %v2915 = vrot.slane %v2913, 1
    %v2916 = vor.u32 %v2911, %v2915
    %v2918 = vshll.u32 %v2702, 16
    %v2920 = vrot.slane %v2918, 1
    %v2921 = vsel %vm668, %v2916, %v2920
    %v2923 = vshrl.u32 %v2543, 16
    %v2925 = vshll.u32 %v2543, 16
    %v2927 = vrot.slane %v2925, 1
    %v2928 = vor.u32 %v2923, %v2927
    %v2930 = vshll.u32 %v2703, 16
    %v2932 = vrot.slane %v2930, 1
    %v2933 = vsel %vm668, %v2928, %v2932
    %v2935 = vshrl.u32 %v2544, 16
    %v2937 = vshll.u32 %v2544, 16
    %v2939 = vrot.slane %v2937, 1
    %v2940 = vor.u32 %v2935, %v2939
    %v2942 = vshll.u32 %v2704, 16
    %v2944 = vrot.slane %v2942, 1
    %v2945 = vsel %vm668, %v2940, %v2944
    %v2947 = vshrl.u32 %v2545, 16
    %v2949 = vshll.u32 %v2545, 16
    %v2951 = vrot.slane %v2949, 1
    %v2952 = vor.u32 %v2947, %v2951
    %v2954 = vshll.u32 %v2705, 16
    %v2956 = vrot.slane %v2954, 1
    %v2957 = vsel %vm668, %v2952, %v2956
    %v2959 = vshrl.u32 %v2546, 16
    %v2961 = vshll.u32 %v2546, 16
    %v2963 = vrot.slane %v2961, 1
    %v2964 = vor.u32 %v2959, %v2963
    %v2966 = vshll.u32 %v2706, 16
    %v2968 = vrot.slane %v2966, 1
    %v2969 = vsel %vm668, %v2964, %v2968
    %v2971 = vshrl.u32 %v2547, 16
    %v2973 = vshll.u32 %v2547, 16
    %v2975 = vrot.slane %v2973, 1
    %v2976 = vor.u32 %v2971, %v2975
    %v2978 = vshll.u32 %v2707, 16
    %v2980 = vrot.slane %v2978, 1
    %v2981 = vsel %vm668, %v2976, %v2980
    %v2983 = vshrl.u32 %v2548, 16
    %v2985 = vshll.u32 %v2548, 16
    %v2987 = vrot.slane %v2985, 1
    %v2988 = vor.u32 %v2983, %v2987
    %v2990 = vshll.u32 %v2708, 16
    %v2992 = vrot.slane %v2990, 1
    %v2993 = vsel %vm668, %v2988, %v2992
    %v2995 = vshrl.u32 %v2549, 16
    %v2997 = vshll.u32 %v2549, 16
    %v2999 = vrot.slane %v2997, 1
    %v3000 = vor.u32 %v2995, %v2999
    %v3002 = vshll.u32 %v2709, 16
    %v3004 = vrot.slane %v3002, 1
    %v3005 = vsel %vm668, %v3000, %v3004
    %v3007 = vshrl.u32 %v2550, 16
    %v3009 = vshll.u32 %v2550, 16
    %v3011 = vrot.slane %v3009, 1
    %v3012 = vor.u32 %v3007, %v3011
    %v3014 = vshll.u32 %v2710, 16
    %v3016 = vrot.slane %v3014, 1
    %v3017 = vsel %vm668, %v3012, %v3016
    %v3019 = vshrl.u32 %v2551, 16
    %v3021 = vshll.u32 %v2551, 16
    %v3023 = vrot.slane %v3021, 1
    %v3024 = vor.u32 %v3019, %v3023
    %v3026 = vshll.u32 %v2711, 16
    %v3028 = vrot.slane %v3026, 1
    %v3029 = vsel %vm668, %v3024, %v3028
    %v3031 = vshrl.u32 %v2552, 16
    %v3033 = vshll.u32 %v2552, 16
    %v3035 = vrot.slane %v3033, 1
    %v3036 = vor.u32 %v3031, %v3035
    %v3038 = vshll.u32 %v2712, 16
    %v3040 = vrot.slane %v3038, 1
    %v3041 = vsel %vm668, %v3036, %v3040
    %v3043 = vshrl.u32 %v2553, 16
    %v3045 = vshll.u32 %v2553, 16
    %v3047 = vrot.slane %v3045, 1
    %v3048 = vor.u32 %v3043, %v3047
    %v3050 = vshll.u32 %v2713, 16
    %v3052 = vrot.slane %v3050, 1
    %v3053 = vsel %vm668, %v3048, %v3052
    %v3055 = vshrl.u32 %v2554, 16
    %v3057 = vshll.u32 %v2554, 16
    %v3059 = vrot.slane %v3057, 1
    %v3060 = vor.u32 %v3055, %v3059
    %v3062 = vshll.u32 %v2714, 16
    %v3064 = vrot.slane %v3062, 1
    %v3065 = vsel %vm668, %v3060, %v3064
    %v3067 = vshrl.u32 %v2555, 16
    %v3069 = vshll.u32 %v2555, 16
    %v3071 = vrot.slane %v3069, 1
    %v3072 = vor.u32 %v3067, %v3071
    %v3074 = vshll.u32 %v2715, 16
    %v3076 = vrot.slane %v3074, 1
    %v3077 = vsel %vm668, %v3072, %v3076
    %v3079 = vshrl.u32 %v2556, 16
    %v3081 = vshll.u32 %v2556, 16
    %v3083 = vrot.slane %v3081, 1
    %v3084 = vor.u32 %v3079, %v3083
    %v3086 = vshll.u32 %v2716, 16
    %v3088 = vrot.slane %v3086, 1
    %v3089 = vsel %vm668, %v3084, %v3088
    %v3091 = vshrl.u32 %v2557, 16
    %v3093 = vshll.u32 %v2557, 16
    %v3095 = vrot.slane %v3093, 1
    %v3096 = vor.u32 %v3091, %v3095
    %v3098 = vshll.u32 %v2717, 16
    %v3100 = vrot.slane %v3098, 1
    %v3101 = vsel %vm668, %v3096, %v3100
    %3102 = vrot.lane.b32.xlu0 %v2729, 28
    %v3103 = vpop.permute.xlu0 %3102
    %3104 = vrot.lane.b32.xlu0 %v2741, 28
    %v3105 = vpop.permute.xlu0 %3104
    %3106 = vrot.lane.b32.xlu0 %v2753, 28
    %v3107 = vpop.permute.xlu0 %3106
    %3108 = vrot.lane.b32.xlu0 %v2765, 28
    %v3109 = vpop.permute.xlu0 %3108
    %3110 = vrot.lane.b32.xlu0 %v2777, 28
    %v3111 = vpop.permute.xlu0 %3110
    %3112 = vrot.lane.b32.xlu0 %v2789, 28
    %v3113 = vpop.permute.xlu0 %3112
    %3114 = vrot.lane.b32.xlu0 %v2801, 28
    %v3115 = vpop.permute.xlu0 %3114
    %3116 = vrot.lane.b32.xlu0 %v2813, 28
    %v3117 = vpop.permute.xlu0 %3116
    %3118 = vrot.lane.b32.xlu0 %v2825, 28
    %v3119 = vpop.permute.xlu0 %3118
    %3120 = vrot.lane.b32.xlu0 %v2837, 28
    %v3121 = vpop.permute.xlu0 %3120
    %3122 = vrot.lane.b32.xlu0 %v2849, 28
    %v3123 = vpop.permute.xlu0 %3122
    %3124 = vrot.lane.b32.xlu0 %v2861, 28
    %v3125 = vpop.permute.xlu0 %3124
    %3126 = vrot.lane.b32.xlu0 %v2873, 28
    %v3127 = vpop.permute.xlu0 %3126
    %3128 = vrot.lane.b32.xlu0 %v2885, 28
    %v3129 = vpop.permute.xlu0 %3128
    %3130 = vrot.lane.b32.xlu0 %v2897, 28
    %v3131 = vpop.permute.xlu0 %3130
    %3132 = vrot.lane.b32.xlu0 %v2909, 28
    %v3133 = vpop.permute.xlu0 %3132
    %3134 = vrot.lane.b32.xlu0 %v2921, 28
    %v3135 = vpop.permute.xlu0 %3134
    %3136 = vrot.lane.b32.xlu0 %v2933, 28
    %v3137 = vpop.permute.xlu0 %3136
    %3138 = vrot.lane.b32.xlu0 %v2945, 28
    %v3139 = vpop.permute.xlu0 %3138
    %3140 = vrot.lane.b32.xlu0 %v2957, 28
    %v3141 = vpop.permute.xlu0 %3140
    %3142 = vrot.lane.b32.xlu0 %v2969, 28
    %v3143 = vpop.permute.xlu0 %3142
    %3144 = vrot.lane.b32.xlu0 %v2981, 28
    %v3145 = vpop.permute.xlu0 %3144
    %3146 = vrot.lane.b32.xlu0 %v2993, 28
    %v3147 = vpop.permute.xlu0 %3146
    %3148 = vrot.lane.b32.xlu0 %v3005, 28
    %v3149 = vpop.permute.xlu0 %3148
    %3150 = vrot.lane.b32.xlu0 %v3017, 28
    %v3151 = vpop.permute.xlu0 %3150
    %3152 = vrot.lane.b32.xlu0 %v3029, 28
    %v3153 = vpop.permute.xlu0 %3152
    %3154 = vrot.lane.b32.xlu0 %v3041, 28
    %v3155 = vpop.permute.xlu0 %3154
    %3156 = vrot.lane.b32.xlu0 %v3053, 28
    %v3157 = vpop.permute.xlu0 %3156
    %3158 = vrot.lane.b32.xlu0 %v3065, 28
    %v3159 = vpop.permute.xlu0 %3158
    %3160 = vrot.lane.b32.xlu0 %v3077, 28
    %v3161 = vpop.permute.xlu0 %3160
    %3162 = vrot.lane.b32.xlu0 %v3089, 28
    %v3163 = vpop.permute.xlu0 %3162
    %3164 = vrot.lane.b32.xlu0 %v3101, 28
    %v3165 = vpop.permute.xlu0 %3164
    %v3198 = vunpack.c.l.b16 %v380
    %v3199 = vunpack.c.l.b16 %v381
    %v3200 = vunpack.c.l.b16 %v382
    %v3201 = vunpack.c.l.b16 %v383
    %v3202 = vunpack.c.l.b16 %v384
    %v3203 = vunpack.c.l.b16 %v385
    %v3204 = vunpack.c.l.b16 %v386
    %v3205 = vunpack.c.l.b16 %v387
    %v3206 = vunpack.c.l.b16 %v388
    %v3207 = vunpack.c.l.b16 %v389
    %v3208 = vunpack.c.l.b16 %v390
    %v3209 = vunpack.c.l.b16 %v391
    %v3210 = vunpack.c.l.b16 %v392
    %v3211 = vunpack.c.l.b16 %v393
    %v3212 = vunpack.c.l.b16 %v394
    %v3213 = vunpack.c.l.b16 %v395
    %v3214 = vunpack.c.l.b16 %v396
    %v3215 = vunpack.c.l.b16 %v397
    %v3216 = vunpack.c.l.b16 %v398
    %v3217 = vunpack.c.l.b16 %v399
    %v3218 = vunpack.c.l.b16 %v400
    %v3219 = vunpack.c.l.b16 %v401
    %v3220 = vunpack.c.l.b16 %v402
    %v3221 = vunpack.c.l.b16 %v403
    %v3222 = vunpack.c.l.b16 %v404
    %v3223 = vunpack.c.l.b16 %v405
    %v3224 = vunpack.c.l.b16 %v406
    %v3225 = vunpack.c.l.b16 %v407
    %v3226 = vunpack.c.l.b16 %v408
    %v3227 = vunpack.c.l.b16 %v409
    %v3228 = vunpack.c.l.b16 %v410
    %v3229 = vunpack.c.l.b16 %v411
    %v3230 = vpack.c.b16 %v2463, %v3198
    %v3231 = vpack.c.b16 %v2465, %v3199
    %v3232 = vpack.c.b16 %v2467, %v3200
    %v3233 = vpack.c.b16 %v2469, %v3201
    %v3234 = vpack.c.b16 %v2471, %v3202
    %v3235 = vpack.c.b16 %v2473, %v3203
    %v3236 = vpack.c.b16 %v2475, %v3204
    %v3237 = vpack.c.b16 %v2477, %v3205
    %v3238 = vpack.c.b16 %v2479, %v3206
    %v3239 = vpack.c.b16 %v2481, %v3207
    %v3240 = vpack.c.b16 %v2483, %v3208
    %v3241 = vpack.c.b16 %v2485, %v3209
    %v3242 = vpack.c.b16 %v2487, %v3210
    %v3243 = vpack.c.b16 %v2489, %v3211
    %v3244 = vpack.c.b16 %v2491, %v3212
    %v3245 = vpack.c.b16 %v2493, %v3213
    %v3246 = vpack.c.b16 %v2495, %v3214
    %v3247 = vpack.c.b16 %v2497, %v3215
    %v3248 = vpack.c.b16 %v2499, %v3216
    %v3249 = vpack.c.b16 %v2501, %v3217
    %v3250 = vpack.c.b16 %v2503, %v3218
    %v3251 = vpack.c.b16 %v2505, %v3219
    %v3252 = vpack.c.b16 %v2507, %v3220
    %v3253 = vpack.c.b16 %v2509, %v3221
    %v3254 = vpack.c.b16 %v2511, %v3222
    %v3255 = vpack.c.b16 %v2513, %v3223
    %v3256 = vpack.c.b16 %v2515, %v3224
    %v3257 = vpack.c.b16 %v2517, %v3225
    %v3258 = vpack.c.b16 %v2519, %v3226
    %v3259 = vpack.c.b16 %v2521, %v3227
    %v3260 = vpack.c.b16 %v2523, %v3228
    %v3261 = vpack.c.b16 %v2525, %v3229
    %v3262 = vrot.slane %v3230, 1
    %v3263 = vrot.slane %v2686, 1
    %v3264 = vsel %vm1213, %v3262, %v3263
    %v3265 = vrot.slane %v3231, 1
    %v3266 = vrot.slane %v2687, 1
    %v3267 = vsel %vm1213, %v3265, %v3266
    %v3268 = vrot.slane %v3232, 1
    %v3269 = vrot.slane %v2688, 1
    %v3270 = vsel %vm1213, %v3268, %v3269
    %v3271 = vrot.slane %v3233, 1
    %v3272 = vrot.slane %v2689, 1
    %v3273 = vsel %vm1213, %v3271, %v3272
    %v3274 = vrot.slane %v3234, 1
    %v3275 = vrot.slane %v2690, 1
    %v3276 = vsel %vm1213, %v3274, %v3275
    %v3277 = vrot.slane %v3235, 1
    %v3278 = vrot.slane %v2691, 1
    %v3279 = vsel %vm1213, %v3277, %v3278
    %v3280 = vrot.slane %v3236, 1
    %v3281 = vrot.slane %v2692, 1
    %v3282 = vsel %vm1213, %v3280, %v3281
    %v3283 = vrot.slane %v3237, 1
    %v3284 = vrot.slane %v2693, 1
    %v3285 = vsel %vm1213, %v3283, %v3284
    %v3286 = vrot.slane %v3238, 1
    %v3287 = vrot.slane %v2694, 1
    %v3288 = vsel %vm1213, %v3286, %v3287
    %v3289 = vrot.slane %v3239, 1
    %v3290 = vrot.slane %v2695, 1
    %v3291 = vsel %vm1213, %v3289, %v3290
    %v3292 = vrot.slane %v3240, 1
    %v3293 = vrot.slane %v2696, 1
    %v3294 = vsel %vm1213, %v3292, %v3293
    %v3295 = vrot.slane %v3241, 1
    %v3296 = vrot.slane %v2697, 1
    %v3297 = vsel %vm1213, %v3295, %v3296
    %v3298 = vrot.slane %v3242, 1
    %v3299 = vrot.slane %v2698, 1
    %v3300 = vsel %vm1213, %v3298, %v3299
    %v3301 = vrot.slane %v3243, 1
    %v3302 = vrot.slane %v2699, 1
    %v3303 = vsel %vm1213, %v3301, %v3302
    %v3304 = vrot.slane %v3244, 1
    %v3305 = vrot.slane %v2700, 1
    %v3306 = vsel %vm1213, %v3304, %v3305
    %v3307 = vrot.slane %v3245, 1
    %v3308 = vrot.slane %v2701, 1
    %v3309 = vsel %vm1213, %v3307, %v3308
    %v3310 = vrot.slane %v3246, 1
    %v3311 = vrot.slane %v2702, 1
    %v3312 = vsel %vm1213, %v3310, %v3311
    %v3313 = vrot.slane %v3247, 1
    %v3314 = vrot.slane %v2703, 1
    %v3315 = vsel %vm1213, %v3313, %v3314
    %v3316 = vrot.slane %v3248, 1
    %v3317 = vrot.slane %v2704, 1
    %v3318 = vsel %vm1213, %v3316, %v3317
    %v3319 = vrot.slane %v3249, 1
    %v3320 = vrot.slane %v2705, 1
    %v3321 = vsel %vm1213, %v3319, %v3320
    %v3322 = vrot.slane %v3250, 1
    %v3323 = vrot.slane %v2706, 1
    %v3324 = vsel %vm1213, %v3322, %v3323
    %v3325 = vrot.slane %v3251, 1
    %v3326 = vrot.slane %v2707, 1
    %v3327 = vsel %vm1213, %v3325, %v3326
    %v3328 = vrot.slane %v3252, 1
    %v3329 = vrot.slane %v2708, 1
    %v3330 = vsel %vm1213, %v3328, %v3329
    %v3331 = vrot.slane %v3253, 1
    %v3332 = vrot.slane %v2709, 1
    %v3333 = vsel %vm1213, %v3331, %v3332
    %v3334 = vrot.slane %v3254, 1
    %v3335 = vrot.slane %v2710, 1
    %v3336 = vsel %vm1213, %v3334, %v3335
    %v3337 = vrot.slane %v3255, 1
    %v3338 = vrot.slane %v2711, 1
    %v3339 = vsel %vm1213, %v3337, %v3338
    %v3340 = vrot.slane %v3256, 1
    %v3341 = vrot.slane %v2712, 1
    %v3342 = vsel %vm1213, %v3340, %v3341
    %v3343 = vrot.slane %v3257, 1
    %v3344 = vrot.slane %v2713, 1
    %v3345 = vsel %vm1213, %v3343, %v3344
    %v3346 = vrot.slane %v3258, 1
    %v3347 = vrot.slane %v2714, 1
    %v3348 = vsel %vm1213, %v3346, %v3347
    %v3349 = vrot.slane %v3259, 1
    %v3350 = vrot.slane %v2715, 1
    %v3351 = vsel %vm1213, %v3349, %v3350
    %v3352 = vrot.slane %v3260, 1
    %v3353 = vrot.slane %v2716, 1
    %v3354 = vsel %vm1213, %v3352, %v3353
    %v3355 = vrot.slane %v3261, 1
    %v3356 = vrot.slane %v2717, 1
    %v3357 = vsel %vm1213, %v3355, %v3356
    %3358 = vrot.lane.b32.xlu0 %v3264, 32
    %v3359 = vpop.permute.xlu0 %3358
    %3360 = vrot.lane.b32.xlu0 %v3267, 32
    %v3361 = vpop.permute.xlu0 %3360
    %3362 = vrot.lane.b32.xlu0 %v3270, 32
    %v3363 = vpop.permute.xlu0 %3362
    %3364 = vrot.lane.b32.xlu0 %v3273, 32
    %v3365 = vpop.permute.xlu0 %3364
    %3366 = vrot.lane.b32.xlu0 %v3276, 32
    %v3367 = vpop.permute.xlu0 %3366
    %3368 = vrot.lane.b32.xlu0 %v3279, 32
    %v3369 = vpop.permute.xlu0 %3368
    %3370 = vrot.lane.b32.xlu0 %v3282, 32
    %v3371 = vpop.permute.xlu0 %3370
    %3372 = vrot.lane.b32.xlu0 %v3285, 32
    %v3373 = vpop.permute.xlu0 %3372
    %3374 = vrot.lane.b32.xlu0 %v3288, 32
    %v3375 = vpop.permute.xlu0 %3374
    %3376 = vrot.lane.b32.xlu0 %v3291, 32
    %v3377 = vpop.permute.xlu0 %3376
    %3378 = vrot.lane.b32.xlu0 %v3294, 32
    %v3379 = vpop.permute.xlu0 %3378
    %3380 = vrot.lane.b32.xlu0 %v3297, 32
    %v3381 = vpop.permute.xlu0 %3380
    %3382 = vrot.lane.b32.xlu0 %v3300, 32
    %v3383 = vpop.permute.xlu0 %3382
    %3384 = vrot.lane.b32.xlu0 %v3303, 32
    %v3385 = vpop.permute.xlu0 %3384
    %3386 = vrot.lane.b32.xlu0 %v3306, 32
    %v3387 = vpop.permute.xlu0 %3386
    %3388 = vrot.lane.b32.xlu0 %v3309, 32
    %v3389 = vpop.permute.xlu0 %3388
    %3390 = vrot.lane.b32.xlu0 %v3312, 32
    %v3391 = vpop.permute.xlu0 %3390
    %3392 = vrot.lane.b32.xlu0 %v3315, 32
    %v3393 = vpop.permute.xlu0 %3392
    %3394 = vrot.lane.b32.xlu0 %v3318, 32
    %v3395 = vpop.permute.xlu0 %3394
    %3396 = vrot.lane.b32.xlu0 %v3321, 32
    %v3397 = vpop.permute.xlu0 %3396
    %3398 = vrot.lane.b32.xlu0 %v3324, 32
    %v3399 = vpop.permute.xlu0 %3398
    %3400 = vrot.lane.b32.xlu0 %v3327, 32
    %v3401 = vpop.permute.xlu0 %3400
    %3402 = vrot.lane.b32.xlu0 %v3330, 32
    %v3403 = vpop.permute.xlu0 %3402
    %3404 = vrot.lane.b32.xlu0 %v3333, 32
    %v3405 = vpop.permute.xlu0 %3404
    %3406 = vrot.lane.b32.xlu0 %v3336, 32
    %v3407 = vpop.permute.xlu0 %3406
    %3408 = vrot.lane.b32.xlu0 %v3339, 32
    %v3409 = vpop.permute.xlu0 %3408
    %3410 = vrot.lane.b32.xlu0 %v3342, 32
    %v3411 = vpop.permute.xlu0 %3410
    %3412 = vrot.lane.b32.xlu0 %v3345, 32
    %v3413 = vpop.permute.xlu0 %3412
    %3414 = vrot.lane.b32.xlu0 %v3348, 32
    %v3415 = vpop.permute.xlu0 %3414
    %3416 = vrot.lane.b32.xlu0 %v3351, 32
    %v3417 = vpop.permute.xlu0 %3416
    %3418 = vrot.lane.b32.xlu0 %v3354, 32
    %v3419 = vpop.permute.xlu0 %3418
    %3420 = vrot.lane.b32.xlu0 %v3357, 32
    %v3421 = vpop.permute.xlu0 %3420
    %vm3422 = vcmask 31744
    %v3424 = vsel %vm3422, %v540, %v1054
    %v3426 = vsel %vm3422, %v541, %v1056
    %v3428 = vsel %vm3422, %v542, %v1058
    %v3430 = vsel %vm3422, %v543, %v1060
    %v3432 = vsel %vm3422, %v544, %v1062
    %v3434 = vsel %vm3422, %v545, %v1064
    %v3436 = vsel %vm3422, %v546, %v1066
    %v3438 = vsel %vm3422, %v547, %v1068
    %v3440 = vsel %vm3422, %v548, %v1070
    %v3442 = vsel %vm3422, %v549, %v1072
    %v3444 = vsel %vm3422, %v550, %v1074
    %v3446 = vsel %vm3422, %v551, %v1076
    %v3448 = vsel %vm3422, %v552, %v1078
    %v3450 = vsel %vm3422, %v553, %v1080
    %v3452 = vsel %vm3422, %v554, %v1082
    %v3454 = vsel %vm3422, %v555, %v1084
    %v3456 = vsel %vm3422, %v556, %v1086
    %v3458 = vsel %vm3422, %v557, %v1088
    %v3460 = vsel %vm3422, %v558, %v1090
    %v3462 = vsel %vm3422, %v559, %v1092
    %v3464 = vsel %vm3422, %v560, %v1094
    %v3466 = vsel %vm3422, %v561, %v1096
    %v3468 = vsel %vm3422, %v562, %v1098
    %v3470 = vsel %vm3422, %v563, %v1100
    %v3472 = vsel %vm3422, %v564, %v1102
    %v3474 = vsel %vm3422, %v565, %v1104
    %v3476 = vsel %vm3422, %v566, %v1106
    %v3478 = vsel %vm3422, %v567, %v1108
    %v3480 = vsel %vm3422, %v568, %v1110
    %v3482 = vsel %vm3422, %v569, %v1112
    %v3484 = vsel %vm3422, %v570, %v1114
    %v3486 = vsel %vm3422, %v571, %v1116
    %vm3487 = vcmask 64512
    %v3489 = vsel %vm3487, %v3424, %v1311
    %v3491 = vsel %vm3487, %v3426, %v1313
    %v3493 = vsel %vm3487, %v3428, %v1315
    %v3495 = vsel %vm3487, %v3430, %v1317
    %v3497 = vsel %vm3487, %v3432, %v1319
    %v3499 = vsel %vm3487, %v3434, %v1321
    %v3501 = vsel %vm3487, %v3436, %v1323
    %v3503 = vsel %vm3487, %v3438, %v1325
    %v3505 = vsel %vm3487, %v3440, %v1327
    %v3507 = vsel %vm3487, %v3442, %v1329
    %v3509 = vsel %vm3487, %v3444, %v1331
    %v3511 = vsel %vm3487, %v3446, %v1333
    %v3513 = vsel %vm3487, %v3448, %v1335
    %v3515 = vsel %vm3487, %v3450, %v1337
    %v3517 = vsel %vm3487, %v3452, %v1339
    %v3519 = vsel %vm3487, %v3454, %v1341
    %v3521 = vsel %vm3487, %v3456, %v1343
    %v3523 = vsel %vm3487, %v3458, %v1345
    %v3525 = vsel %vm3487, %v3460, %v1347
    %v3527 = vsel %vm3487, %v3462, %v1349
    %v3529 = vsel %vm3487, %v3464, %v1351
    %v3531 = vsel %vm3487, %v3466, %v1353
    %v3533 = vsel %vm3487, %v3468, %v1355
    %v3535 = vsel %vm3487, %v3470, %v1357
    %v3537 = vsel %vm3487, %v3472, %v1359
    %v3539 = vsel %vm3487, %v3474, %v1361
    %v3541 = vsel %vm3487, %v3476, %v1363
    %v3543 = vsel %vm3487, %v3478, %v1365
    %v3545 = vsel %vm3487, %v3480, %v1367
    %v3547 = vsel %vm3487, %v3482, %v1369
    %v3549 = vsel %vm3487, %v3484, %v1371
    %v3551 = vsel %vm3487, %v3486, %v1373
    %vm3552 = vcmask 97280
    %v3554 = vsel %vm3552, %v3489, %v1535
    %v3556 = vsel %vm3552, %v3491, %v1537
    %v3558 = vsel %vm3552, %v3493, %v1539
    %v3560 = vsel %vm3552, %v3495, %v1541
    %v3562 = vsel %vm3552, %v3497, %v1543
    %v3564 = vsel %vm3552, %v3499, %v1545
    %v3566 = vsel %vm3552, %v3501, %v1547
    %v3568 = vsel %vm3552, %v3503, %v1549
    %v3570 = vsel %vm3552, %v3505, %v1551
    %v3572 = vsel %vm3552, %v3507, %v1553
    %v3574 = vsel %vm3552, %v3509, %v1555
    %v3576 = vsel %vm3552, %v3511, %v1557
    %v3578 = vsel %vm3552, %v3513, %v1559
    %v3580 = vsel %vm3552, %v3515, %v1561
    %v3582 = vsel %vm3552, %v3517, %v1563
    %v3584 = vsel %vm3552, %v3519, %v1565
    %v3586 = vsel %vm3552, %v3521, %v1567
    %v3588 = vsel %vm3552, %v3523, %v1569
    %v3590 = vsel %vm3552, %v3525, %v1571
    %v3592 = vsel %vm3552, %v3527, %v1573
    %v3594 = vsel %vm3552, %v3529, %v1575
    %v3596 = vsel %vm3552, %v3531, %v1577
    %v3598 = vsel %vm3552, %v3533, %v1579
    %v3600 = vsel %vm3552, %v3535, %v1581
    %v3602 = vsel %vm3552, %v3537, %v1583
    %v3604 = vsel %vm3552, %v3539, %v1585
    %v3606 = vsel %vm3552, %v3541, %v1587
    %v3608 = vsel %vm3552, %v3543, %v1589
    %v3610 = vsel %vm3552, %v3545, %v1591
    %v3612 = vsel %vm3552, %v3547, %v1593
    %v3614 = vsel %vm3552, %v3549, %v1595
    %v3616 = vsel %vm3552, %v3551, %v1597
    %vm3617 = vcmask 130048
    %v3619 = vsel %vm3617, %v3554, %v2079
    %v3621 = vsel %vm3617, %v3556, %v2081
    %v3623 = vsel %vm3617, %v3558, %v2083
    %v3625 = vsel %vm3617, %v3560, %v2085
    %v3627 = vsel %vm3617, %v3562, %v2087
    %v3629 = vsel %vm3617, %v3564, %v2089
    %v3631 = vsel %vm3617, %v3566, %v2091
    %v3633 = vsel %vm3617, %v3568, %v2093
    %v3635 = vsel %vm3617, %v3570, %v2095
    %v3637 = vsel %vm3617, %v3572, %v2097
    %v3639 = vsel %vm3617, %v3574, %v2099
    %v3641 = vsel %vm3617, %v3576, %v2101
    %v3643 = vsel %vm3617, %v3578, %v2103
    %v3645 = vsel %vm3617, %v3580, %v2105
    %v3647 = vsel %vm3617, %v3582, %v2107
    %v3649 = vsel %vm3617, %v3584, %v2109
    %v3651 = vsel %vm3617, %v3586, %v2111
    %v3653 = vsel %vm3617, %v3588, %v2113
    %v3655 = vsel %vm3617, %v3590, %v2115
    %v3657 = vsel %vm3617, %v3592, %v2117
    %v3659 = vsel %vm3617, %v3594, %v2119
    %v3661 = vsel %vm3617, %v3596, %v2121
    %v3663 = vsel %vm3617, %v3598, %v2123
    %v3665 = vsel %vm3617, %v3600, %v2125
    %v3667 = vsel %vm3617, %v3602, %v2127
    %v3669 = vsel %vm3617, %v3604, %v2129
    %v3671 = vsel %vm3617, %v3606, %v2131
    %v3673 = vsel %vm3617, %v3608, %v2133
    %v3675 = vsel %vm3617, %v3610, %v2135
    %v3677 = vsel %vm3617, %v3612, %v2137
    %v3679 = vsel %vm3617, %v3614, %v2139
    %v3681 = vsel %vm3617, %v3616, %v2141
    %vm3682 = vcmask 162816
    %v3684 = vsel %vm3682, %v3619, %v2335
    %v3686 = vsel %vm3682, %v3621, %v2337
    %v3688 = vsel %vm3682, %v3623, %v2339
    %v3690 = vsel %vm3682, %v3625, %v2341
    %v3692 = vsel %vm3682, %v3627, %v2343
    %v3694 = vsel %vm3682, %v3629, %v2345
    %v3696 = vsel %vm3682, %v3631, %v2347
    %v3698 = vsel %vm3682, %v3633, %v2349
    %v3700 = vsel %vm3682, %v3635, %v2351
    %v3702 = vsel %vm3682, %v3637, %v2353
    %v3704 = vsel %vm3682, %v3639, %v2355
    %v3706 = vsel %vm3682, %v3641, %v2357
    %v3708 = vsel %vm3682, %v3643, %v2359
    %v3710 = vsel %vm3682, %v3645, %v2361
    %v3712 = vsel %vm3682, %v3647, %v2363
    %v3714 = vsel %vm3682, %v3649, %v2365
    %v3716 = vsel %vm3682, %v3651, %v2367
    %v3718 = vsel %vm3682, %v3653, %v2369
    %v3720 = vsel %vm3682, %v3655, %v2371
    %v3722 = vsel %vm3682, %v3657, %v2373
    %v3724 = vsel %vm3682, %v3659, %v2375
    %v3726 = vsel %vm3682, %v3661, %v2377
    %v3728 = vsel %vm3682, %v3663, %v2379
    %v3730 = vsel %vm3682, %v3665, %v2381
    %v3732 = vsel %vm3682, %v3667, %v2383
    %v3734 = vsel %vm3682, %v3669, %v2385
    %v3736 = vsel %vm3682, %v3671, %v2387
    %v3738 = vsel %vm3682, %v3673, %v2389
    %v3740 = vsel %vm3682, %v3675, %v2391
    %v3742 = vsel %vm3682, %v3677, %v2393
    %v3744 = vsel %vm3682, %v3679, %v2395
    %v3746 = vsel %vm3682, %v3681, %v2397
    %vm3747 = vcmask 195584
    %v3749 = vsel %vm3747, %v3684, %v2559
    %v3751 = vsel %vm3747, %v3686, %v2561
    %v3753 = vsel %vm3747, %v3688, %v2563
    %v3755 = vsel %vm3747, %v3690, %v2565
    %v3757 = vsel %vm3747, %v3692, %v2567
    %v3759 = vsel %vm3747, %v3694, %v2569
    %v3761 = vsel %vm3747, %v3696, %v2571
    %v3763 = vsel %vm3747, %v3698, %v2573
    %v3765 = vsel %vm3747, %v3700, %v2575
    %v3767 = vsel %vm3747, %v3702, %v2577
    %v3769 = vsel %vm3747, %v3704, %v2579
    %v3771 = vsel %vm3747, %v3706, %v2581
    %v3773 = vsel %vm3747, %v3708, %v2583
    %v3775 = vsel %vm3747, %v3710, %v2585
    %v3777 = vsel %vm3747, %v3712, %v2587
    %v3779 = vsel %vm3747, %v3714, %v2589
    %v3781 = vsel %vm3747, %v3716, %v2591
    %v3783 = vsel %vm3747, %v3718, %v2593
    %v3785 = vsel %vm3747, %v3720, %v2595
    %v3787 = vsel %vm3747, %v3722, %v2597
    %v3789 = vsel %vm3747, %v3724, %v2599
    %v3791 = vsel %vm3747, %v3726, %v2601
    %v3793 = vsel %vm3747, %v3728, %v2603
    %v3795 = vsel %vm3747, %v3730, %v2605
    %v3797 = vsel %vm3747, %v3732, %v2607
    %v3799 = vsel %vm3747, %v3734, %v2609
    %v3801 = vsel %vm3747, %v3736, %v2611
    %v3803 = vsel %vm3747, %v3738, %v2613
    %v3805 = vsel %vm3747, %v3740, %v2615
    %v3807 = vsel %vm3747, %v3742, %v2617
    %v3809 = vsel %vm3747, %v3744, %v2619
    %v3811 = vsel %vm3747, %v3746, %v2621
    %vm3812 = vcmask 228352
    %v3814 = vsel %vm3812, %v3749, %v3103
    %v3816 = vsel %vm3812, %v3751, %v3105
    %v3818 = vsel %vm3812, %v3753, %v3107
    %v3820 = vsel %vm3812, %v3755, %v3109
    %v3822 = vsel %vm3812, %v3757, %v3111
    %v3824 = vsel %vm3812, %v3759, %v3113
    %v3826 = vsel %vm3812, %v3761, %v3115
    %v3828 = vsel %vm3812, %v3763, %v3117
    %v3830 = vsel %vm3812, %v3765, %v3119
    %v3832 = vsel %vm3812, %v3767, %v3121
    %v3834 = vsel %vm3812, %v3769, %v3123
    %v3836 = vsel %vm3812, %v3771, %v3125
    %v3838 = vsel %vm3812, %v3773, %v3127
    %v3840 = vsel %vm3812, %v3775, %v3129
    %v3842 = vsel %vm3812, %v3777, %v3131
    %v3844 = vsel %vm3812, %v3779, %v3133
    %v3846 = vsel %vm3812, %v3781, %v3135
    %v3848 = vsel %vm3812, %v3783, %v3137
    %v3850 = vsel %vm3812, %v3785, %v3139
    %v3852 = vsel %vm3812, %v3787, %v3141
    %v3854 = vsel %vm3812, %v3789, %v3143
    %v3856 = vsel %vm3812, %v3791, %v3145
    %v3858 = vsel %vm3812, %v3793, %v3147
    %v3860 = vsel %vm3812, %v3795, %v3149
    %v3862 = vsel %vm3812, %v3797, %v3151
    %v3864 = vsel %vm3812, %v3799, %v3153
    %v3866 = vsel %vm3812, %v3801, %v3155
    %v3868 = vsel %vm3812, %v3803, %v3157
    %v3870 = vsel %vm3812, %v3805, %v3159
    %v3872 = vsel %vm3812, %v3807, %v3161
    %v3874 = vsel %vm3812, %v3809, %v3163
    %v3876 = vsel %vm3812, %v3811, %v3165
    %vm3877 = vcmask 261120
    %v3879 = vsel %vm3877, %v3814, %v3359
    %v3881 = vsel %vm3877, %v3816, %v3361
    %v3883 = vsel %vm3877, %v3818, %v3363
    %v3885 = vsel %vm3877, %v3820, %v3365
    %v3887 = vsel %vm3877, %v3822, %v3367
    %v3889 = vsel %vm3877, %v3824, %v3369
    %v3891 = vsel %vm3877, %v3826, %v3371
    %v3893 = vsel %vm3877, %v3828, %v3373
    %v3895 = vsel %vm3877, %v3830, %v3375
    %v3897 = vsel %vm3877, %v3832, %v3377
    %v3899 = vsel %vm3877, %v3834, %v3379
    %v3901 = vsel %vm3877, %v3836, %v3381
    %v3903 = vsel %vm3877, %v3838, %v3383
    %v3905 = vsel %vm3877, %v3840, %v3385
    %v3907 = vsel %vm3877, %v3842, %v3387
    %v3909 = vsel %vm3877, %v3844, %v3389
    %v3911 = vsel %vm3877, %v3846, %v3391
    %v3913 = vsel %vm3877, %v3848, %v3393
    %v3915 = vsel %vm3877, %v3850, %v3395
    %v3917 = vsel %vm3877, %v3852, %v3397
    %v3919 = vsel %vm3877, %v3854, %v3399
    %v3921 = vsel %vm3877, %v3856, %v3401
    %v3923 = vsel %vm3877, %v3858, %v3403
    %v3925 = vsel %vm3877, %v3860, %v3405
    %v3927 = vsel %vm3877, %v3862, %v3407
    %v3929 = vsel %vm3877, %v3864, %v3409
    %v3931 = vsel %vm3877, %v3866, %v3411
    %v3933 = vsel %vm3877, %v3868, %v3413
    %v3935 = vsel %vm3877, %v3870, %v3415
    %v3937 = vsel %vm3877, %v3872, %v3417
    %v3939 = vsel %vm3877, %v3874, %v3419
    %v3941 = vsel %vm3877, %v3876, %v3421
    %v3942 = vld [vmem:[%s1] sm:$0xf]
    %v3943 = vld [vmem:[%s1 + $0x4] sm:$0xf]
    %v3944 = vld [vmem:[%s1 + $0x8] sm:$0xf]
    %v3945 = vld [vmem:[%s1 + $0xc] sm:$0xf]
    %v3946 = vld [vmem:[%s1 + $0x10] sm:$0x3]
    %v3947 = vld [vmem:[%s2] sm:$0x1]
    %v3949 = vlaneseq
    %v3950 = vshrl.u32 %v3949, 7
    %v3951 = vsub.s32 0, %v3950
    %v3952 = vrot.slane %v3947, %v3951
    %v3959 = vunpack.c.l.b16 %v3942
    %v3960 = vunpack.c.l.b16 %v3943
    %v3961 = vunpack.c.l.b16 %v3944
    %v3962 = vunpack.c.l.b16 %v3945
    %v3963 = vunpack.c.l.b16 %v3946
    %v3964 = vpack.c.b16 %v3960, %v3959
    %v3965 = vpack.c.b16 %v3962, %v3961
    %v3966 = vpack.c.b16 %v3963, %v3963
    %vm3969 = vcmask 293888
    %v3970 = vsel %vm3969, %v3879, 0
    %v3972 = vsel %vm3969, %v3881, 0
    %v3974 = vsel %vm3969, %v3883, 0
    %v3976 = vsel %vm3969, %v3885, 0
    %v3978 = vsel %vm3969, %v3887, 0
    %v3980 = vsel %vm3969, %v3889, 0
    %v3982 = vsel %vm3969, %v3891, 0
    %v3984 = vsel %vm3969, %v3893, 0
    %v3986 = vsel %vm3969, %v3895, 0
    %v3988 = vsel %vm3969, %v3897, 0
    %v3990 = vsel %vm3969, %v3899, 0
    %v3992 = vsel %vm3969, %v3901, 0
    %v3994 = vsel %vm3969, %v3903, 0
    %v3996 = vsel %vm3969, %v3905, 0
    %v3998 = vsel %vm3969, %v3907, 0
    %v4000 = vsel %vm3969, %v3909, 0
    %v4002 = vsel %vm3969, %v3911, 0
    %v4004 = vsel %vm3969, %v3913, 0
    %v4006 = vsel %vm3969, %v3915, 0
    %v4008 = vsel %vm3969, %v3917, 0
    %v4010 = vsel %vm3969, %v3919, 0
    %v4012 = vsel %vm3969, %v3921, 0
    %v4014 = vsel %vm3969, %v3923, 0
    %v4016 = vsel %vm3969, %v3925, 0
    %v4018 = vsel %vm3969, %v3927, 0
    %v4020 = vsel %vm3969, %v3929, 0
    %v4022 = vsel %vm3969, %v3931, 0
    %v4024 = vsel %vm3969, %v3933, 0
    %v4026 = vsel %vm3969, %v3935, 0
    %v4028 = vsel %vm3969, %v3937, 0
    %v4030 = vsel %vm3969, %v3939, 0
    %v4032 = vsel %vm3969, %v3941, 0
    %vm4034 = vcmask 1041408
    %v4036 = vsel %vm4034, %v3966, 0
    %4038 = vmatprep.subr.bf16.mxu0 0
    %4039 = vmatpush1.bf16.msra.mxu0 0
    %4040 = vmatprep.subr.bf16.mxu0 0
    %4041 = vmatpush1.bf16.msra.mxu0 0
    %4042 = vmatprep.subr.bf16.mxu0 0
    %4043 = vmatpush1.bf16.msra.mxu0 0
    %4044 = vmatprep.subr.bf16.mxu0 0
    %4045 = vmatpush1.bf16.msra.mxu0 0
    %4046 = vmatprep.subr.bf16.mxu0 0
    %4047 = vmatpush1.bf16.msra.mxu0 0
    %4048 = vmatprep.subr.bf16.mxu0 0
    %4049 = vmatpush1.bf16.msra.mxu0 %v4036
    %4050 = vmatprep.subr.bf16.mxu0 0
    %4051 = vmatpush1.bf16.msra.mxu0 %v3965
    %4052 = vmatprep.subr.bf16.mxu0 0
    %4053 = vmatpush1.bf16.msra.mxu0 %v3964
    %4054 = vmatprep.subr.bf16.mxu0 0
    %4055 = vmatpush2.bf16.msra.mxu0 0
    %4056 = vmatprep.subr.bf16.mxu0 0
    %4057 = vmatpush2.bf16.msra.mxu0 0
    %4058 = vmatprep.subr.bf16.mxu0 0
    %4059 = vmatpush2.bf16.msra.mxu0 0
    %4060 = vmatprep.subr.bf16.mxu0 0
    %4061 = vmatpush2.bf16.msra.mxu0 0
    %4062 = vmatprep.subr.bf16.mxu0 0
    %4063 = vmatpush2.bf16.msra.mxu0 0
    %4064 = vmatprep.subr.bf16.mxu0 0
    %4065 = vmatpush2.bf16.msra.mxu0 0
    %4066 = vmatprep.subr.bf16.mxu0 0
    %4067 = vmatpush2.bf16.msra.mxu0 0
    %4068 = vmatprep.subr.bf16.mxu0 0
    %4069 = vmatpush2.bf16.msra.mxu0 0
    %4070 = vmatprep.mubr.bf16.mxu0 0
    %4071 = vmatmul.mubr.bf16.gmra.mxu0 %v3970
    %v4072 = vpop.f32.mrf.mxu0
    %v4073 = vadd.f32 %v3952, %v4072
    %v4074 = vpop.f32.mrf.mxu0
    %v4075 = vpop.f32.mrf.mxu0
    %v4076 = vadd.f32 %v3952, %v4075
    %v4077 = vpop.f32.mrf.mxu0
    %4078 = vmatprep.mubr.bf16.mxu0 0
    %4079 = vmatmul.mubr.bf16.gmra.mxu0 %v3972
    %v4080 = vpop.f32.mrf.mxu0
    %v4081 = vadd.f32 %v3952, %v4080
    %v4082 = vpop.f32.mrf.mxu0
    %v4083 = vpop.f32.mrf.mxu0
    %v4084 = vadd.f32 %v3952, %v4083
    %v4085 = vpop.f32.mrf.mxu0
    %4086 = vmatprep.mubr.bf16.mxu0 0
    %4087 = vmatmul.mubr.bf16.gmra.mxu0 %v3974
    %v4088 = vpop.f32.mrf.mxu0
    %v4089 = vadd.f32 %v3952, %v4088
    %v4090 = vpop.f32.mrf.mxu0
    %v4091 = vpop.f32.mrf.mxu0
    %v4092 = vadd.f32 %v3952, %v4091
    %v4093 = vpop.f32.mrf.mxu0
    %4094 = vmatprep.mubr.bf16.mxu0 0
    %4095 = vmatmul.mubr.bf16.gmra.mxu0 %v3976
    %v4096 = vpop.f32.mrf.mxu0
    %v4097 = vadd.f32 %v3952, %v4096
    %v4098 = vpop.f32.mrf.mxu0
    %v4099 = vpop.f32.mrf.mxu0
    %v4100 = vadd.f32 %v3952, %v4099
    %v4101 = vpop.f32.mrf.mxu0
    %4102 = vmatprep.mubr.bf16.mxu0 0
    %4103 = vmatmul.mubr.bf16.gmra.mxu0 %v3978
    %v4104 = vpop.f32.mrf.mxu0
    %v4105 = vadd.f32 %v3952, %v4104
    %v4106 = vpop.f32.mrf.mxu0
    %v4107 = vpop.f32.mrf.mxu0
    %v4108 = vadd.f32 %v3952, %v4107
    %v4109 = vpop.f32.mrf.mxu0
    %4110 = vmatprep.mubr.bf16.mxu0 0
    %4111 = vmatmul.mubr.bf16.gmra.mxu0 %v3980
    %v4112 = vpop.f32.mrf.mxu0
    %v4113 = vadd.f32 %v3952, %v4112
    %v4114 = vpop.f32.mrf.mxu0
    %v4115 = vpop.f32.mrf.mxu0
    %v4116 = vadd.f32 %v3952, %v4115
    %v4117 = vpop.f32.mrf.mxu0
    %4118 = vmatprep.mubr.bf16.mxu0 0
    %4119 = vmatmul.mubr.bf16.gmra.mxu0 %v3982
    %v4120 = vpop.f32.mrf.mxu0
    %v4121 = vadd.f32 %v3952, %v4120
    %v4122 = vpop.f32.mrf.mxu0
    %v4123 = vpop.f32.mrf.mxu0
    %v4124 = vadd.f32 %v3952, %v4123
    %v4125 = vpop.f32.mrf.mxu0
    %4126 = vmatprep.mubr.bf16.mxu0 0
    %4127 = vmatmul.mubr.bf16.gmra.mxu0 %v3984
    %v4128 = vpop.f32.mrf.mxu0
    %v4129 = vadd.f32 %v3952, %v4128
    %v4130 = vpop.f32.mrf.mxu0
    %v4131 = vpop.f32.mrf.mxu0
    %v4132 = vadd.f32 %v3952, %v4131
    %v4133 = vpop.f32.mrf.mxu0
    %4134 = vmatprep.mubr.bf16.mxu0 0
    %4135 = vmatmul.mubr.bf16.gmra.mxu0 %v3986
    %v4136 = vpop.f32.mrf.mxu0
    %v4137 = vadd.f32 %v3952, %v4136
    %v4138 = vpop.f32.mrf.mxu0
    %v4139 = vpop.f32.mrf.mxu0
    %v4140 = vadd.f32 %v3952, %v4139
    %v4141 = vpop.f32.mrf.mxu0
    %4142 = vmatprep.mubr.bf16.mxu0 0
    %4143 = vmatmul.mubr.bf16.gmra.mxu0 %v3988
    %v4144 = vpop.f32.mrf.mxu0
    %v4145 = vadd.f32 %v3952, %v4144
    %v4146 = vpop.f32.mrf.mxu0
    %v4147 = vpop.f32.mrf.mxu0
    %v4148 = vadd.f32 %v3952, %v4147
    %v4149 = vpop.f32.mrf.mxu0
    %4150 = vmatprep.mubr.bf16.mxu0 0
    %4151 = vmatmul.mubr.bf16.gmra.mxu0 %v3990
    %v4152 = vpop.f32.mrf.mxu0
    %v4153 = vadd.f32 %v3952, %v4152
    %v4154 = vpop.f32.mrf.mxu0
    %v4155 = vpop.f32.mrf.mxu0
    %v4156 = vadd.f32 %v3952, %v4155
    %v4157 = vpop.f32.mrf.mxu0
    %4158 = vmatprep.mubr.bf16.mxu0 0
    %4159 = vmatmul.mubr.bf16.gmra.mxu0 %v3992
    %v4160 = vpop.f32.mrf.mxu0
    %v4161 = vadd.f32 %v3952, %v4160
    %v4162 = vpop.f32.mrf.mxu0
    %v4163 = vpop.f32.mrf.mxu0
    %v4164 = vadd.f32 %v3952, %v4163
    %v4165 = vpop.f32.mrf.mxu0
    %4166 = vmatprep.mubr.bf16.mxu0 0
    %4167 = vmatmul.mubr.bf16.gmra.mxu0 %v3994
    %v4168 = vpop.f32.mrf.mxu0
    %v4169 = vadd.f32 %v3952, %v4168
    %v4170 = vpop.f32.mrf.mxu0
    %v4171 = vpop.f32.mrf.mxu0
    %v4172 = vadd.f32 %v3952, %v4171
    %v4173 = vpop.f32.mrf.mxu0
    %4174 = vmatprep.mubr.bf16.mxu0 0
    %4175 = vmatmul.mubr.bf16.gmra.mxu0 %v3996
    %v4176 = vpop.f32.mrf.mxu0
    %v4177 = vadd.f32 %v3952, %v4176
    %v4178 = vpop.f32.mrf.mxu0
    %v4179 = vpop.f32.mrf.mxu0
    %v4180 = vadd.f32 %v3952, %v4179
    %v4181 = vpop.f32.mrf.mxu0
    %4182 = vmatprep.mubr.bf16.mxu0 0
    %4183 = vmatmul.mubr.bf16.gmra.mxu0 %v3998
    %v4184 = vpop.f32.mrf.mxu0
    %v4185 = vadd.f32 %v3952, %v4184
    %v4186 = vpop.f32.mrf.mxu0
    %v4187 = vpop.f32.mrf.mxu0
    %v4188 = vadd.f32 %v3952, %v4187
    %v4189 = vpop.f32.mrf.mxu0
    %4190 = vmatprep.mubr.bf16.mxu0 0
    %4191 = vmatmul.mubr.bf16.gmra.mxu0 %v4000
    %v4192 = vpop.f32.mrf.mxu0
    %v4193 = vadd.f32 %v3952, %v4192
    %v4194 = vpop.f32.mrf.mxu0
    %v4195 = vpop.f32.mrf.mxu0
    %v4196 = vadd.f32 %v3952, %v4195
    %v4197 = vpop.f32.mrf.mxu0
    %4198 = vmatprep.mubr.bf16.mxu0 0
    %4199 = vmatmul.mubr.bf16.gmra.mxu0 %v4002
    %v4200 = vpop.f32.mrf.mxu0
    %v4201 = vadd.f32 %v3952, %v4200
    %v4202 = vpop.f32.mrf.mxu0
    %v4203 = vpop.f32.mrf.mxu0
    %v4204 = vadd.f32 %v3952, %v4203
    %v4205 = vpop.f32.mrf.mxu0
    %4206 = vmatprep.mubr.bf16.mxu0 0
    %4207 = vmatmul.mubr.bf16.gmra.mxu0 %v4004
    %v4208 = vpop.f32.mrf.mxu0
    %v4209 = vadd.f32 %v3952, %v4208
    %v4210 = vpop.f32.mrf.mxu0
    %v4211 = vpop.f32.mrf.mxu0
    %v4212 = vadd.f32 %v3952, %v4211
    %v4213 = vpop.f32.mrf.mxu0
    %4214 = vmatprep.mubr.bf16.mxu0 0
    %4215 = vmatmul.mubr.bf16.gmra.mxu0 %v4006
    %v4216 = vpop.f32.mrf.mxu0
    %v4217 = vadd.f32 %v3952, %v4216
    %v4218 = vpop.f32.mrf.mxu0
    %v4219 = vpop.f32.mrf.mxu0
    %v4220 = vadd.f32 %v3952, %v4219
    %v4221 = vpop.f32.mrf.mxu0
    %4222 = vmatprep.mubr.bf16.mxu0 0
    %4223 = vmatmul.mubr.bf16.gmra.mxu0 %v4008
    %v4224 = vpop.f32.mrf.mxu0
    %v4225 = vadd.f32 %v3952, %v4224
    %v4226 = vpop.f32.mrf.mxu0
    %v4227 = vpop.f32.mrf.mxu0
    %v4228 = vadd.f32 %v3952, %v4227
    %v4229 = vpop.f32.mrf.mxu0
    %4230 = vmatprep.mubr.bf16.mxu0 0
    %4231 = vmatmul.mubr.bf16.gmra.mxu0 %v4010
    %v4232 = vpop.f32.mrf.mxu0
    %v4233 = vadd.f32 %v3952, %v4232
    %v4234 = vpop.f32.mrf.mxu0
    %v4235 = vpop.f32.mrf.mxu0
    %v4236 = vadd.f32 %v3952, %v4235
    %v4237 = vpop.f32.mrf.mxu0
    %4238 = vmatprep.mubr.bf16.mxu0 0
    %4239 = vmatmul.mubr.bf16.gmra.mxu0 %v4012
    %v4240 = vpop.f32.mrf.mxu0
    %v4241 = vadd.f32 %v3952, %v4240
    %v4242 = vpop.f32.mrf.mxu0
    %v4243 = vpop.f32.mrf.mxu0
    %v4244 = vadd.f32 %v3952, %v4243
    %v4245 = vpop.f32.mrf.mxu0
    %4246 = vmatprep.mubr.bf16.mxu0 0
    %4247 = vmatmul.mubr.bf16.gmra.mxu0 %v4014
    %v4248 = vpop.f32.mrf.mxu0
    %v4249 = vadd.f32 %v3952, %v4248
    %v4250 = vpop.f32.mrf.mxu0
    %v4251 = vpop.f32.mrf.mxu0
    %v4252 = vadd.f32 %v3952, %v4251
    %v4253 = vpop.f32.mrf.mxu0
    %4254 = vmatprep.mubr.bf16.mxu0 0
    %4255 = vmatmul.mubr.bf16.gmra.mxu0 %v4016
    %v4256 = vpop.f32.mrf.mxu0
    %v4257 = vadd.f32 %v3952, %v4256
    %v4258 = vpop.f32.mrf.mxu0
    %v4259 = vpop.f32.mrf.mxu0
    %v4260 = vadd.f32 %v3952, %v4259
    %v4261 = vpop.f32.mrf.mxu0
    %4262 = vmatprep.mubr.bf16.mxu0 0
    %4263 = vmatmul.mubr.bf16.gmra.mxu0 %v4018
    %v4264 = vpop.f32.mrf.mxu0
    %v4265 = vadd.f32 %v3952, %v4264
    %v4266 = vpop.f32.mrf.mxu0
    %v4267 = vpop.f32.mrf.mxu0
    %v4268 = vadd.f32 %v3952, %v4267
    %v4269 = vpop.f32.mrf.mxu0
    %4270 = vmatprep.mubr.bf16.mxu0 0
    %4271 = vmatmul.mubr.bf16.gmra.mxu0 %v4020
    %v4272 = vpop.f32.mrf.mxu0
    %v4273 = vadd.f32 %v3952, %v4272
    %v4274 = vpop.f32.mrf.mxu0
    %v4275 = vpop.f32.mrf.mxu0
    %v4276 = vadd.f32 %v3952, %v4275
    %v4277 = vpop.f32.mrf.mxu0
    %4278 = vmatprep.mubr.bf16.mxu0 0
    %4279 = vmatmul.mubr.bf16.gmra.mxu0 %v4022
    %v4280 = vpop.f32.mrf.mxu0
    %v4281 = vadd.f32 %v3952, %v4280
    %v4282 = vpop.f32.mrf.mxu0
    %v4283 = vpop.f32.mrf.mxu0
    %v4284 = vadd.f32 %v3952, %v4283
    %v4285 = vpop.f32.mrf.mxu0
    %4286 = vmatprep.mubr.bf16.mxu0 0
    %4287 = vmatmul.mubr.bf16.gmra.mxu0 %v4024
    %v4288 = vpop.f32.mrf.mxu0
    %v4289 = vadd.f32 %v3952, %v4288
    %v4290 = vpop.f32.mrf.mxu0
    %v4291 = vpop.f32.mrf.mxu0
    %v4292 = vadd.f32 %v3952, %v4291
    %v4293 = vpop.f32.mrf.mxu0
    %4294 = vmatprep.mubr.bf16.mxu0 0
    %4295 = vmatmul.mubr.bf16.gmra.mxu0 %v4026
    %v4296 = vpop.f32.mrf.mxu0
    %v4297 = vadd.f32 %v3952, %v4296
    %v4298 = vpop.f32.mrf.mxu0
    %v4299 = vpop.f32.mrf.mxu0
    %v4300 = vadd.f32 %v3952, %v4299
    %v4301 = vpop.f32.mrf.mxu0
    %4302 = vmatprep.mubr.bf16.mxu0 0
    %4303 = vmatmul.mubr.bf16.gmra.mxu0 %v4028
    %v4304 = vpop.f32.mrf.mxu0
    %v4305 = vadd.f32 %v3952, %v4304
    %v4306 = vpop.f32.mrf.mxu0
    %v4307 = vpop.f32.mrf.mxu0
    %v4308 = vadd.f32 %v3952, %v4307
    %v4309 = vpop.f32.mrf.mxu0
    %4310 = vmatprep.mubr.bf16.mxu0 0
    %4311 = vmatmul.mubr.bf16.gmra.mxu0 %v4030
    %v4312 = vpop.f32.mrf.mxu0
    %v4313 = vadd.f32 %v3952, %v4312
    %v4314 = vpop.f32.mrf.mxu0
    %v4315 = vpop.f32.mrf.mxu0
    %v4316 = vadd.f32 %v3952, %v4315
    %v4317 = vpop.f32.mrf.mxu0
    %4318 = vmatprep.mubr.bf16.mxu0 0
    %4319 = vmatmul.mubr.bf16.gmra.mxu0 %v4032
    %v4320 = vpop.f32.mrf.mxu0
    %v4321 = vadd.f32 %v3952, %v4320
    %v4322 = vpop.f32.mrf.mxu0
    %v4323 = vpop.f32.mrf.mxu0
    %v4324 = vadd.f32 %v3952, %v4323
    %v4325 = vpop.f32.mrf.mxu0
    %4326 = vdwg.mxu0
    %v4327 = vmax.f32 %v4073, 0.0
    %v4328 = vmax.f32 %v4076, 0.0
    %v4329 = vmax.f32 %v4081, 0.0
    %v4330 = vmax.f32 %v4084, 0.0
    %v4331 = vmax.f32 %v4089, 0.0
    %v4332 = vmax.f32 %v4092, 0.0
    %v4333 = vmax.f32 %v4097, 0.0
    %v4334 = vmax.f32 %v4100, 0.0
    %v4335 = vmax.f32 %v4105, 0.0
    %v4336 = vmax.f32 %v4108, 0.0
    %v4337 = vmax.f32 %v4113, 0.0
    %v4338 = vmax.f32 %v4116, 0.0
    %v4339 = vmax.f32 %v4121, 0.0
    %v4340 = vmax.f32 %v4124, 0.0
    %v4341 = vmax.f32 %v4129, 0.0
    %v4342 = vmax.f32 %v4132, 0.0
    %v4343 = vmax.f32 %v4137, 0.0
    %v4344 = vmax.f32 %v4140, 0.0
    %v4345 = vmax.f32 %v4145, 0.0
    %v4346 = vmax.f32 %v4148, 0.0
    %v4347 = vmax.f32 %v4153, 0.0
    %v4348 = vmax.f32 %v4156, 0.0
    %v4349 = vmax.f32 %v4161, 0.0
    %v4350 = vmax.f32 %v4164, 0.0
    %v4351 = vmax.f32 %v4169, 0.0
    %v4352 = vmax.f32 %v4172, 0.0
    %v4353 = vmax.f32 %v4177, 0.0
    %v4354 = vmax.f32 %v4180, 0.0
    %v4355 = vmax.f32 %v4185, 0.0
    %v4356 = vmax.f32 %v4188, 0.0
    %v4357 = vmax.f32 %v4193, 0.0
    %v4358 = vmax.f32 %v4196, 0.0
    %v4359 = vmax.f32 %v4201, 0.0
    %v4360 = vmax.f32 %v4204, 0.0
    %v4361 = vmax.f32 %v4209, 0.0
    %v4362 = vmax.f32 %v4212, 0.0
    %v4363 = vmax.f32 %v4217, 0.0
    %v4364 = vmax.f32 %v4220, 0.0
    %v4365 = vmax.f32 %v4225, 0.0
    %v4366 = vmax.f32 %v4228, 0.0
    %v4367 = vmax.f32 %v4233, 0.0
    %v4368 = vmax.f32 %v4236, 0.0
    %v4369 = vmax.f32 %v4241, 0.0
    %v4370 = vmax.f32 %v4244, 0.0
    %v4371 = vmax.f32 %v4249, 0.0
    %v4372 = vmax.f32 %v4252, 0.0
    %v4373 = vmax.f32 %v4257, 0.0
    %v4374 = vmax.f32 %v4260, 0.0
    %v4375 = vmax.f32 %v4265, 0.0
    %v4376 = vmax.f32 %v4268, 0.0
    %v4377 = vmax.f32 %v4273, 0.0
    %v4378 = vmax.f32 %v4276, 0.0
    %v4379 = vmax.f32 %v4281, 0.0
    %v4380 = vmax.f32 %v4284, 0.0
    %v4381 = vmax.f32 %v4289, 0.0
    %v4382 = vmax.f32 %v4292, 0.0
    %v4383 = vmax.f32 %v4297, 0.0
    %v4384 = vmax.f32 %v4300, 0.0
    %v4385 = vmax.f32 %v4305, 0.0
    %v4386 = vmax.f32 %v4308, 0.0
    %v4387 = vmax.f32 %v4313, 0.0
    %v4388 = vmax.f32 %v4316, 0.0
    %v4389 = vmax.f32 %v4321, 0.0
    %v4390 = vmax.f32 %v4324, 0.0
    %vm4391 = vcmask 523264
    %4392 = vst.msk [vmem:[#allocation2] sm:$0xff] %vm4391, %v4327
    %4393 = vst.msk [vmem:[#allocation2 + $0x8] sm:$0xff] %vm4391, %v4328
    %4394 = vst.msk [vmem:[#allocation2 + $0x10] sm:$0xff] %vm4391, %v4329
    %4395 = vst.msk [vmem:[#allocation2 + $0x18] sm:$0xff] %vm4391, %v4330
    %4396 = vst.msk [vmem:[#allocation2 + $0x20] sm:$0xff] %vm4391, %v4331
    %4397 = vst.msk [vmem:[#allocation2 + $0x28] sm:$0xff] %vm4391, %v4332
    %4398 = vst.msk [vmem:[#allocation2 + $0x30] sm:$0xff] %vm4391, %v4333
    %4399 = vst.msk [vmem:[#allocation2 + $0x38] sm:$0xff] %vm4391, %v4334
    %4400 = vst.msk [vmem:[#allocation2 + $0x40] sm:$0xff] %vm4391, %v4335
    %4401 = vst.msk [vmem:[#allocation2 + $0x48] sm:$0xff] %vm4391, %v4336
    %4402 = vst.msk [vmem:[#allocation2 + $0x50] sm:$0xff] %vm4391, %v4337
    %4403 = vst.msk [vmem:[#allocation2 + $0x58] sm:$0xff] %vm4391, %v4338
    %4404 = vst.msk [vmem:[#allocation2 + $0x60] sm:$0xff] %vm4391, %v4339
    %4405 = vst.msk [vmem:[#allocation2 + $0x68] sm:$0xff] %vm4391, %v4340
    %4406 = vst.msk [vmem:[#allocation2 + $0x70] sm:$0xff] %vm4391, %v4341
    %4407 = vst.msk [vmem:[#allocation2 + $0x78] sm:$0xff] %vm4391, %v4342
    %4408 = vst.msk [vmem:[#allocation2 + $0x80] sm:$0xff] %vm4391, %v4343
    %4409 = vst.msk [vmem:[#allocation2 + $0x88] sm:$0xff] %vm4391, %v4344
    %4410 = vst.msk [vmem:[#allocation2 + $0x90] sm:$0xff] %vm4391, %v4345
    %4411 = vst.msk [vmem:[#allocation2 + $0x98] sm:$0xff] %vm4391, %v4346
    %4412 = vst.msk [vmem:[#allocation2 + $0xa0] sm:$0xff] %vm4391, %v4347
    %4413 = vst.msk [vmem:[#allocation2 + $0xa8] sm:$0xff] %vm4391, %v4348
    %4414 = vst.msk [vmem:[#allocation2 + $0xb0] sm:$0xff] %vm4391, %v4349
    %4415 = vst.msk [vmem:[#allocation2 + $0xb8] sm:$0xff] %vm4391, %v4350
    %4416 = vst.msk [vmem:[#allocation2 + $0xc0] sm:$0xff] %vm4391, %v4351
    %4417 = vst.msk [vmem:[#allocation2 + $0xc8] sm:$0xff] %vm4391, %v4352
    %4418 = vst.msk [vmem:[#allocation2 + $0xd0] sm:$0xff] %vm4391, %v4353
    %4419 = vst.msk [vmem:[#allocation2 + $0xd8] sm:$0xff] %vm4391, %v4354
    %4420 = vst.msk [vmem:[#allocation2 + $0xe0] sm:$0xff] %vm4391, %v4355
    %4421 = vst.msk [vmem:[#allocation2 + $0xe8] sm:$0xff] %vm4391, %v4356
    %4422 = vst.msk [vmem:[#allocation2 + $0xf0] sm:$0xff] %vm4391, %v4357
    %4423 = vst.msk [vmem:[#allocation2 + $0xf8] sm:$0xff] %vm4391, %v4358
    %4424 = vst.msk [vmem:[#allocation2 + $0x100] sm:$0xff] %vm4391, %v4359
    %4425 = vst.msk [vmem:[#allocation2 + $0x108] sm:$0xff] %vm4391, %v4360
    %4426 = vst.msk [vmem:[#allocation2 + $0x110] sm:$0xff] %vm4391, %v4361
    %4427 = vst.msk [vmem:[#allocation2 + $0x118] sm:$0xff] %vm4391, %v4362
    %4428 = vst.msk [vmem:[#allocation2 + $0x120] sm:$0xff] %vm4391, %v4363
    %4429 = vst.msk [vmem:[#allocation2 + $0x128] sm:$0xff] %vm4391, %v4364
    %4430 = vst.msk [vmem:[#allocation2 + $0x130] sm:$0xff] %vm4391, %v4365
    %4431 = vst.msk [vmem:[#allocation2 + $0x138] sm:$0xff] %vm4391, %v4366
    %4432 = vst.msk [vmem:[#allocation2 + $0x140] sm:$0xff] %vm4391, %v4367
    %4433 = vst.msk [vmem:[#allocation2 + $0x148] sm:$0xff] %vm4391, %v4368
    %4434 = vst.msk [vmem:[#allocation2 + $0x150] sm:$0xff] %vm4391, %v4369
    %4435 = vst.msk [vmem:[#allocation2 + $0x158] sm:$0xff] %vm4391, %v4370
    %4436 = vst.msk [vmem:[#allocation2 + $0x160] sm:$0xff] %vm4391, %v4371
    %4437 = vst.msk [vmem:[#allocation2 + $0x168] sm:$0xff] %vm4391, %v4372
    %4438 = vst.msk [vmem:[#allocation2 + $0x170] sm:$0xff] %vm4391, %v4373
    %4439 = vst.msk [vmem:[#allocation2 + $0x178] sm:$0xff] %vm4391, %v4374
    %4440 = vst.msk [vmem:[#allocation2 + $0x180] sm:$0xff] %vm4391, %v4375
    %4441 = vst.msk [vmem:[#allocation2 + $0x188] sm:$0xff] %vm4391, %v4376
    %4442 = vst.msk [vmem:[#allocation2 + $0x190] sm:$0xff] %vm4391, %v4377
    %4443 = vst.msk [vmem:[#allocation2 + $0x198] sm:$0xff] %vm4391, %v4378
    %4444 = vst.msk [vmem:[#allocation2 + $0x1a0] sm:$0xff] %vm4391, %v4379
    %4445 = vst.msk [vmem:[#allocation2 + $0x1a8] sm:$0xff] %vm4391, %v4380
    %4446 = vst.msk [vmem:[#allocation2 + $0x1b0] sm:$0xff] %vm4391, %v4381
    %4447 = vst.msk [vmem:[#allocation2 + $0x1b8] sm:$0xff] %vm4391, %v4382
    %4448 = vst.msk [vmem:[#allocation2 + $0x1c0] sm:$0xff] %vm4391, %v4383
    %4449 = vst.msk [vmem:[#allocation2 + $0x1c8] sm:$0xff] %vm4391, %v4384
    %4450 = vst.msk [vmem:[#allocation2 + $0x1d0] sm:$0xff] %vm4391, %v4385
    %4451 = vst.msk [vmem:[#allocation2 + $0x1d8] sm:$0xff] %vm4391, %v4386
    %4452 = vst.msk [vmem:[#allocation2 + $0x1e0] sm:$0xff] %vm4391, %v4387
    %4453 = vst.msk [vmem:[#allocation2 + $0x1e8] sm:$0xff] %vm4391, %v4388
    %4454 = vst.msk [vmem:[#allocation2 + $0x1f0] sm:$0xff] %vm4391, %v4389
    %4455 = vst.msk [vmem:[#allocation2 + $0x1f8] sm:$0xff] %vm4391, %v4390
    // Predicated region
    $region14: #{conv2d_pallas.1} parent=1 // pred_check
      _
    $region15: #{conv2d_pallas.1} parent=1 // pred_check_branch
      %4457 = sbr.rel (0) target = $region17
    $region16: #{conv2d_pallas.1} parent=1 // pred_region
      %s4459 = ssub.s32 8192, 8192
      %4460 = vsyncadd [#allocation3], %s4459
      %s4461 = sshll.u32 [#allocation2], 4
      %s4462 = int_to_ptr.vmem [resolvable:$true] %s4461
      %4467 = dma.vmem_to_hbm [thread:$0]  %s4462, 8192, %s3, [#allocation3], 128, 128, 8
    $region17: #{conv2d_pallas.1} parent=1 // pred_fallthru
      _
    // Predicated region
    $region18: #{conv2d_pallas.1} parent=1 // pred_check
      _
    $region19: #{conv2d_pallas.1} parent=1 // pred_check_branch
      %4469 = sbr.rel (0) target = $region21
    $region20: #{conv2d_pallas.1} parent=1 // pred_region
      %4470 = dma.done [#allocation3], 8192
    $region21: #{conv2d_pallas.1} parent=1 // pred_fallthru
      _
    %4471 = vsyncpa [#allocation3], 1

</llo_original>
